<compile_context>
chip_gen: v6e
topology: v6e:2x2x1
jax: 0.10.0
libtpu: 0.0.40
codegen_flags: <defaults>
</compile_context>

<pallas_src>
import math

import jax
import jax.numpy as jnp
from jax import lax
from jax.experimental import pallas as pl
from jax.experimental.pallas import tpu as pltpu

# ----- model config (small, consistent with the module's forward) -----
BLOCK_SIZE = 128          # max sequence length (tril buffer size)
N_EMBD = 128              # embedding dim (module uses 768; shrunk for demo)
NUM_HEADS = 4
HEAD_SIZE = 32            # NUM_HEADS * HEAD_SIZE == proj input dim
B = 2                     # batch
T = 128                   # sequence length (<= BLOCK_SIZE)


# ---------------------------------------------------------------------------
# Fused kernel: one grid step per batch row.
#   qkv = x @ Wqkv                      (all heads, one MXU matmul, scaled Wq)
#   per head: s = q k^T (causal softmax), out_h = p @ v
#   y = bp + sum_h out_h @ Wp_h         (lane-dense (T, n_embd) store)
# ---------------------------------------------------------------------------
def _mha_fused_kernel(x_ref, wqkv_ref, wp_ref, bp_ref, o_ref):
    x = x_ref[0]                                    # (T, C) f32
    xb = x.astype(jnp.bfloat16)

    # QKV projection for all heads at once: (T, C) @ (C, 3*H*D), f32 accum.
    qkv = jnp.dot(xb, wqkv_ref[...],
                  preferred_element_type=jnp.float32)        # (T, 3*H*D)

    t = x.shape[0]
    row = lax.broadcasted_iota(jnp.int32, (t, t), 0)
    col = lax.broadcasted_iota(jnp.int32, (t, t), 1)
    causal = col <= row                              # diagonal unmasked -> no NaN

    hd = NUM_HEADS * HEAD_SIZE

    # f32 accumulator for the fused output projection, pre-loaded with bias.
    y = jnp.broadcast_to(bp_ref[...], (t, o_ref.shape[-1])).astype(jnp.float32)

    for h in range(NUM_HEADS):                       # static unroll (4 heads)
        q = qkv[:, h * HEAD_SIZE:(h + 1) * HEAD_SIZE]          # scale pre-folded
        k = qkv[:, hd + h * HEAD_SIZE: hd + (h + 1) * HEAD_SIZE]
        v = qkv[:, 2 * hd + h * HEAD_SIZE: 2 * hd + (h + 1) * HEAD_SIZE]

        # s = q @ k^T without materializing k.T (contract last dims on MXU).
        s = lax.dot_general(
            q.astype(jnp.bfloat16), k.astype(jnp.bfloat16),
            (((1,), (1,)), ((), ())),
            preferred_element_type=jnp.float32)                # (T, T) f32

        s = jnp.where(causal, s, -jnp.inf)

        # numerically-stable softmax over last axis (f32 throughout)
        m = jnp.max(s, axis=-1, keepdims=True)
        p = jnp.exp(s - m)
        denom = jnp.sum(p, axis=-1, keepdims=True)
        p = p * pl.reciprocal(denom, approx=True)

        out_h = jnp.dot(p.astype(jnp.bfloat16), v.astype(jnp.bfloat16),
                        preferred_element_type=jnp.float32)    # (T, D)

        # Per-head slice of the projection weight: (D, C).  Accumulate the
        # projection directly instead of concatenating head outputs on lanes.
        wp_h = wp_ref[h * HEAD_SIZE:(h + 1) * HEAD_SIZE, :]
        y = y + jnp.dot(out_h.astype(jnp.bfloat16), wp_h,
                        preferred_element_type=jnp.float32)    # (T, C)

    o_ref[0] = y.astype(o_ref.dtype)


def multi_head_attention(x, packed_params):
    """x: (B, T, C); packed: (wqkv (C,3HD) bf16, wp (HD,C) bf16, bp (1,C) f32)."""
    wqkv, wp, bp = packed_params
    Bb, Tt, Cc = x.shape
    HD3 = wqkv.shape[1]
    HD = wp.shape[0]
    return pl.pallas_call(
        _mha_fused_kernel,
        out_shape=jax.ShapeDtypeStruct((Bb, Tt, Cc), jnp.float32),
        grid_spec=pltpu.PrefetchScalarGridSpec(
            num_scalar_prefetch=0,
            grid=(Bb,),
            in_specs=[
                pl.BlockSpec((1, Tt, Cc), lambda b: (b, 0, 0)),
                pl.BlockSpec((Cc, HD3), lambda b: (0, 0)),
                pl.BlockSpec((HD, Cc), lambda b: (0, 0)),
                pl.BlockSpec((1, Cc), lambda b: (0, 0)),
            ],
            out_specs=pl.BlockSpec((1, Tt, Cc), lambda b: (b, 0, 0)),
        ),
        compiler_params=pltpu.CompilerParams(
            dimension_semantics=("parallel",)),   # 2 TCs on v7x each take a batch row
    )(x, wqkv, wp, bp)


# ---------------------------------------------------------------------------
# Weight packing (trace-time, free): (H,C,D) q/k/v -> one (C, 3*H*D) bf16,
# with the 1/sqrt(head_size) scale folded into Wq.
# ---------------------------------------------------------------------------
def pack_params(params):
    wq, wk, wv, wp, bp = params
    scale = 1.0 / math.sqrt(HEAD_SIZE)

    def to_cd(w):   # (H, C, D) -> (C, H*D), matching per-head static slices
        return jnp.transpose(w, (1, 0, 2)).reshape(N_EMBD, NUM_HEADS * HEAD_SIZE)

    wqkv = jnp.concatenate(
        [to_cd(wq * scale), to_cd(wk), to_cd(wv)], axis=-1).astype(jnp.bfloat16)
    return wqkv, wp.astype(jnp.bfloat16), bp


# ---------------------------------------------------------------------------
# Pure-JAX f32 reference for validation (mirrors the PyTorch module, eval mode)
# ---------------------------------------------------------------------------
def reference_forward(x, params):
    wq, wk, wv, wp, bp = params
    q = jnp.einsum('btc,hcd->bhtd', x, wq)
    k = jnp.einsum('btc,hcd->bhtd', x, wk)
    v = jnp.einsum('btc,hcd->bhtd', x, wv)
    s = jnp.einsum('bhtd,bhsd->bhts', q, k) * (HEAD_SIZE ** -0.5)
    tril = jnp.tril(jnp.ones((T, T), dtype=bool))
    s = jnp.where(tril[None, None], s, -jnp.inf)
    p = jax.nn.softmax(s, axis=-1)
    o = jnp.einsum('bhts,bhsd->bhtd', p, v)
    cat = jnp.transpose(o, (0, 2, 1, 3)).reshape(x.shape[0], T, -1)
    return cat @ wp + bp[0]


def init_params(key):
    k1, k2, k3, k4, k5 = jax.random.split(key, 5)
    std = 0.02
    wq = jax.random.normal(k1, (NUM_HEADS, N_EMBD, HEAD_SIZE), jnp.float32) * std
    wk = jax.random.normal(k2, (NUM_HEADS, N_EMBD, HEAD_SIZE), jnp.float32) * std
    wv = jax.random.normal(k3, (NUM_HEADS, N_EMBD, HEAD_SIZE), jnp.float32) * std
    wp = jax.random.normal(k4, (NUM_HEADS * HEAD_SIZE, N_EMBD), jnp.float32) * std
    bp = jax.random.normal(k5, (1, N_EMBD), jnp.float32) * std
    return wq, wk, wv, wp, bp


if __name__ == "__main__":
    key = jax.random.PRNGKey(0)
    kx, kp = jax.random.split(key)
    x = jax.random.normal(kx, (B, T, N_EMBD), jnp.float32)
    params = init_params(kp)
    packed = pack_params(params)

    out = jax.block_until_ready(multi_head_attention(x, packed))
    ref = jax.block_until_ready(reference_forward(x, params))

    assert out.shape == (B, T, N_EMBD), out.shape
    # bf16 MXU inputs + approx reciprocal -> loosened tolerance vs f32 reference.
    assert jnp.allclose(out, ref, atol=2e-2, rtol=2e-2), float(
        jnp.max(jnp.abs(out - ref)))
    print("KERNEL_OK")
</pallas_src>

<mosaic_0001>
module attributes {stable_mosaic.version = 11 : i64} {
  func.func @_mha_fused_kernel(%arg0: i32, %arg1: memref<1x128x128xf32, #tpu.memory_space<vmem>>, %arg2: memref<128x384xbf16, #tpu.memory_space<vmem>>, %arg3: memref<128x128xbf16, #tpu.memory_space<vmem>>, %arg4: memref<1x128xf32, #tpu.memory_space<vmem>>, %arg5: memref<1x128x128xf32, #tpu.memory_space<vmem>>) attributes {dimension_semantics = [#tpu.dimension_semantics<parallel>], iteration_bounds = array<i64: 2>, scalar_prefetch = 0 : i64, scratch_operands = 0 : i64, tpu.core_type = #tpu.core_type<tc>, window_params = [{transform_indices = @transform_0, window_bounds = array<i64: 1, 128, 128>}, {pipeline_mode = #tpu.pipeline_mode<synchronous>, transform_indices = @transform_1, window_bounds = array<i64: 128, 384>}, {pipeline_mode = #tpu.pipeline_mode<synchronous>, transform_indices = @transform_2, window_bounds = array<i64: 128, 128>}, {pipeline_mode = #tpu.pipeline_mode<synchronous>, transform_indices = @transform_3, window_bounds = array<i64: 1, 128>}, {transform_indices = @transform_4, window_bounds = array<i64: 1, 128, 128>}]} {
    %c0 = arith.constant 0 : index
    %c0_0 = arith.constant 0 : index
    %c0_1 = arith.constant 0 : index
    %0 = vector.load %arg1[%c0, %c0_0, %c0_1] : memref<1x128x128xf32, #tpu.memory_space<vmem>>, vector<1x128x128xf32>
    %1 = vector.shape_cast %0 : vector<1x128x128xf32> to vector<128x128xf32>
    %2 = arith.truncf %1 : vector<128x128xf32> to vector<128x128xbf16>
    %c0_2 = arith.constant 0 : index
    %c0_3 = arith.constant 0 : index
    %3 = vector.load %arg2[%c0_2, %c0_3] : memref<128x384xbf16, #tpu.memory_space<vmem>>, vector<128x384xbf16>
    %cst = arith.constant dense<0.000000e+00> : vector<128x384xf32>
    %4 = tpu.matmul %2, %3, %cst {dimension_numbers = #tpu.dot_dimension_numbers<[1], [0], [0], [1], [0, 0, 1, 1], [], []>} : vector<128x128xbf16>, vector<128x384xbf16>, vector<128x384xf32> -> vector<128x384xf32>
    %5 = tpu.iota {dimensions = array<i32: 0>} : vector<128x128xi32>
    %6 = tpu.iota {dimensions = array<i32: 1>} : vector<128x128xi32>
    %7 = arith.cmpi sle, %6, %5 : vector<128x128xi32>
    %c0_4 = arith.constant 0 : index
    %c0_5 = arith.constant 0 : index
    %8 = vector.load %arg4[%c0_4, %c0_5] : memref<1x128xf32, #tpu.memory_space<vmem>>, vector<1x128xf32>
    %9 = vector.shape_cast %8 : vector<1x128xf32> to vector<1x128xf32>
    %10 = vector.broadcast %9 : vector<1x128xf32> to vector<128x128xf32>
    %11 = vector.extract_strided_slice %4 {offsets = [0, 0], sizes = [128, 32], strides = [1, 1]} : vector<128x384xf32> to vector<128x32xf32>
    %12 = vector.extract_strided_slice %4 {offsets = [0, 128], sizes = [128, 32], strides = [1, 1]} : vector<128x384xf32> to vector<128x32xf32>
    %13 = vector.extract_strided_slice %4 {offsets = [0, 256], sizes = [128, 32], strides = [1, 1]} : vector<128x384xf32> to vector<128x32xf32>
    %14 = arith.truncf %11 : vector<128x32xf32> to vector<128x32xbf16>
    %15 = arith.truncf %12 : vector<128x32xf32> to vector<128x32xbf16>
    %cst_6 = arith.constant dense<0.000000e+00> : vector<128x128xf32>
    %16 = tpu.matmul %14, %15, %cst_6 {dimension_numbers = #tpu.dot_dimension_numbers<[1], [1], [0], [0], [0, 0, 1, 0], [], []>} : vector<128x32xbf16>, vector<128x32xbf16>, vector<128x128xf32> -> vector<128x128xf32>
    %cst_7 = arith.constant 0xFF800000 : f32
    %17 = vector.broadcast %cst_7 : f32 to vector<128x128xf32>
    %18 = arith.select %7, %16, %17 : vector<128x128xi1>, vector<128x128xf32>
    %cst_8 = arith.constant dense<0xFF800000> : vector<128xf32>
    %19 = vector.multi_reduction <maximumf>, %18, %cst_8 [1] : vector<128x128xf32> to vector<128xf32>
    %20 = vector.shape_cast %19 : vector<128xf32> to vector<128x1xf32>
    %21 = vector.broadcast %20 : vector<128x1xf32> to vector<128x128xf32>
    %22 = arith.subf %18, %21 : vector<128x128xf32>
    %23 = math.exp %22 : vector<128x128xf32>
    %cst_9 = arith.constant dense<0.000000e+00> : vector<128xf32>
    %24 = vector.multi_reduction <add>, %23, %cst_9 [1] : vector<128x128xf32> to vector<128xf32>
    %25 = vector.shape_cast %24 : vector<128xf32> to vector<128x1xf32>
    %26 = tpu.reciprocal %25 {approx = true} : vector<128x1xf32> -> vector<128x1xf32>
    %27 = vector.broadcast %26 : vector<128x1xf32> to vector<128x128xf32>
    %28 = arith.mulf %23, %27 : vector<128x128xf32>
    %29 = arith.truncf %28 : vector<128x128xf32> to vector<128x128xbf16>
    %30 = arith.truncf %13 : vector<128x32xf32> to vector<128x32xbf16>
    %cst_10 = arith.constant dense<0.000000e+00> : vector<128x32xf32>
    %31 = tpu.matmul %29, %30, %cst_10 {dimension_numbers = #tpu.dot_dimension_numbers<[1], [0], [0], [1], [0, 0, 1, 1], [], []>} : vector<128x128xbf16>, vector<128x32xbf16>, vector<128x32xf32> -> vector<128x32xf32>
    %c0_11 = arith.constant 0 : index
    %c0_12 = arith.constant 0 : index
    %32 = vector.load %arg3[%c0_11, %c0_12] : memref<128x128xbf16, #tpu.memory_space<vmem>>, vector<32x128xbf16>
    %33 = arith.truncf %31 : vector<128x32xf32> to vector<128x32xbf16>
    %cst_13 = arith.constant dense<0.000000e+00> : vector<128x128xf32>
    %34 = tpu.matmul %33, %32, %cst_13 {dimension_numbers = #tpu.dot_dimension_numbers<[1], [0], [0], [1], [0, 0, 1, 1], [], []>} : vector<128x32xbf16>, vector<32x128xbf16>, vector<128x128xf32> -> vector<128x128xf32>
    %35 = arith.addf %10, %34 : vector<128x128xf32>
    %36 = vector.extract_strided_slice %4 {offsets = [0, 32], sizes = [128, 32], strides = [1, 1]} : vector<128x384xf32> to vector<128x32xf32>
    %37 = vector.extract_strided_slice %4 {offsets = [0, 160], sizes = [128, 32], strides = [1, 1]} : vector<128x384xf32> to vector<128x32xf32>
    %38 = vector.extract_strided_slice %4 {offsets = [0, 288], sizes = [128, 32], strides = [1, 1]} : vector<128x384xf32> to vector<128x32xf32>
    %39 = arith.truncf %36 : vector<128x32xf32> to vector<128x32xbf16>
    %40 = arith.truncf %37 : vector<128x32xf32> to vector<128x32xbf16>
    %cst_14 = arith.constant dense<0.000000e+00> : vector<128x128xf32>
    %41 = tpu.matmul %39, %40, %cst_14 {dimension_numbers = #tpu.dot_dimension_numbers<[1], [1], [0], [0], [0, 0, 1, 0], [], []>} : vector<128x32xbf16>, vector<128x32xbf16>, vector<128x128xf32> -> vector<128x128xf32>
    %cst_15 = arith.constant 0xFF800000 : f32
    %42 = vector.broadcast %cst_15 : f32 to vector<128x128xf32>
    %43 = arith.select %7, %41, %42 : vector<128x128xi1>, vector<128x128xf32>
    %cst_16 = arith.constant dense<0xFF800000> : vector<128xf32>
    %44 = vector.multi_reduction <maximumf>, %43, %cst_16 [1] : vector<128x128xf32> to vector<128xf32>
    %45 = vector.shape_cast %44 : vector<128xf32> to vector<128x1xf32>
    %46 = vector.broadcast %45 : vector<128x1xf32> to vector<128x128xf32>
    %47 = arith.subf %43, %46 : vector<128x128xf32>
    %48 = math.exp %47 : vector<128x128xf32>
    %cst_17 = arith.constant dense<0.000000e+00> : vector<128xf32>
    %49 = vector.multi_reduction <add>, %48, %cst_17 [1] : vector<128x128xf32> to vector<128xf32>
    %50 = vector.shape_cast %49 : vector<128xf32> to vector<128x1xf32>
    %51 = tpu.reciprocal %50 {approx = true} : vector<128x1xf32> -> vector<128x1xf32>
    %52 = vector.broadcast %51 : vector<128x1xf32> to vector<128x128xf32>
    %53 = arith.mulf %48, %52 : vector<128x128xf32>
    %54 = arith.truncf %53 : vector<128x128xf32> to vector<128x128xbf16>
    %55 = arith.truncf %38 : vector<128x32xf32> to vector<128x32xbf16>
    %cst_18 = arith.constant dense<0.000000e+00> : vector<128x32xf32>
    %56 = tpu.matmul %54, %55, %cst_18 {dimension_numbers = #tpu.dot_dimension_numbers<[1], [0], [0], [1], [0, 0, 1, 1], [], []>} : vector<128x128xbf16>, vector<128x32xbf16>, vector<128x32xf32> -> vector<128x32xf32>
    %c32 = arith.constant 32 : index
    %c0_19 = arith.constant 0 : index
    %57 = vector.load %arg3[%c32, %c0_19] : memref<128x128xbf16, #tpu.memory_space<vmem>>, vector<32x128xbf16>
    %58 = arith.truncf %56 : vector<128x32xf32> to vector<128x32xbf16>
    %cst_20 = arith.constant dense<0.000000e+00> : vector<128x128xf32>
    %59 = tpu.matmul %58, %57, %cst_20 {dimension_numbers = #tpu.dot_dimension_numbers<[1], [0], [0], [1], [0, 0, 1, 1], [], []>} : vector<128x32xbf16>, vector<32x128xbf16>, vector<128x128xf32> -> vector<128x128xf32>
    %60 = arith.addf %35, %59 : vector<128x128xf32>
    %61 = vector.extract_strided_slice %4 {offsets = [0, 64], sizes = [128, 32], strides = [1, 1]} : vector<128x384xf32> to vector<128x32xf32>
    %62 = vector.extract_strided_slice %4 {offsets = [0, 192], sizes = [128, 32], strides = [1, 1]} : vector<128x384xf32> to vector<128x32xf32>
    %63 = vector.extract_strided_slice %4 {offsets = [0, 320], sizes = [128, 32], strides = [1, 1]} : vector<128x384xf32> to vector<128x32xf32>
    %64 = arith.truncf %61 : vector<128x32xf32> to vector<128x32xbf16>
    %65 = arith.truncf %62 : vector<128x32xf32> to vector<128x32xbf16>
    %cst_21 = arith.constant dense<0.000000e+00> : vector<128x128xf32>
    %66 = tpu.matmul %64, %65, %cst_21 {dimension_numbers = #tpu.dot_dimension_numbers<[1], [1], [0], [0], [0, 0, 1, 0], [], []>} : vector<128x32xbf16>, vector<128x32xbf16>, vector<128x128xf32> -> vector<128x128xf32>
    %cst_22 = arith.constant 0xFF800000 : f32
    %67 = vector.broadcast %cst_22 : f32 to vector<128x128xf32>
    %68 = arith.select %7, %66, %67 : vector<128x128xi1>, vector<128x128xf32>
    %cst_23 = arith.constant dense<0xFF800000> : vector<128xf32>
    %69 = vector.multi_reduction <maximumf>, %68, %cst_23 [1] : vector<128x128xf32> to vector<128xf32>
    %70 = vector.shape_cast %69 : vector<128xf32> to vector<128x1xf32>
    %71 = vector.broadcast %70 : vector<128x1xf32> to vector<128x128xf32>
    %72 = arith.subf %68, %71 : vector<128x128xf32>
    %73 = math.exp %72 : vector<128x128xf32>
    %cst_24 = arith.constant dense<0.000000e+00> : vector<128xf32>
    %74 = vector.multi_reduction <add>, %73, %cst_24 [1] : vector<128x128xf32> to vector<128xf32>
    %75 = vector.shape_cast %74 : vector<128xf32> to vector<128x1xf32>
    %76 = tpu.reciprocal %75 {approx = true} : vector<128x1xf32> -> vector<128x1xf32>
    %77 = vector.broadcast %76 : vector<128x1xf32> to vector<128x128xf32>
    %78 = arith.mulf %73, %77 : vector<128x128xf32>
    %79 = arith.truncf %78 : vector<128x128xf32> to vector<128x128xbf16>
    %80 = arith.truncf %63 : vector<128x32xf32> to vector<128x32xbf16>
    %cst_25 = arith.constant dense<0.000000e+00> : vector<128x32xf32>
    %81 = tpu.matmul %79, %80, %cst_25 {dimension_numbers = #tpu.dot_dimension_numbers<[1], [0], [0], [1], [0, 0, 1, 1], [], []>} : vector<128x128xbf16>, vector<128x32xbf16>, vector<128x32xf32> -> vector<128x32xf32>
    %c64 = arith.constant 64 : index
    %c0_26 = arith.constant 0 : index
    %82 = vector.load %arg3[%c64, %c0_26] : memref<128x128xbf16, #tpu.memory_space<vmem>>, vector<32x128xbf16>
    %83 = arith.truncf %81 : vector<128x32xf32> to vector<128x32xbf16>
    %cst_27 = arith.constant dense<0.000000e+00> : vector<128x128xf32>
    %84 = tpu.matmul %83, %82, %cst_27 {dimension_numbers = #tpu.dot_dimension_numbers<[1], [0], [0], [1], [0, 0, 1, 1], [], []>} : vector<128x32xbf16>, vector<32x128xbf16>, vector<128x128xf32> -> vector<128x128xf32>
    %85 = arith.addf %60, %84 : vector<128x128xf32>
    %86 = vector.extract_strided_slice %4 {offsets = [0, 96], sizes = [128, 32], strides = [1, 1]} : vector<128x384xf32> to vector<128x32xf32>
    %87 = vector.extract_strided_slice %4 {offsets = [0, 224], sizes = [128, 32], strides = [1, 1]} : vector<128x384xf32> to vector<128x32xf32>
    %88 = vector.extract_strided_slice %4 {offsets = [0, 352], sizes = [128, 32], strides = [1, 1]} : vector<128x384xf32> to vector<128x32xf32>
    %89 = arith.truncf %86 : vector<128x32xf32> to vector<128x32xbf16>
    %90 = arith.truncf %87 : vector<128x32xf32> to vector<128x32xbf16>
    %cst_28 = arith.constant dense<0.000000e+00> : vector<128x128xf32>
    %91 = tpu.matmul %89, %90, %cst_28 {dimension_numbers = #tpu.dot_dimension_numbers<[1], [1], [0], [0], [0, 0, 1, 0], [], []>} : vector<128x32xbf16>, vector<128x32xbf16>, vector<128x128xf32> -> vector<128x128xf32>
    %cst_29 = arith.constant 0xFF800000 : f32
    %92 = vector.broadcast %cst_29 : f32 to vector<128x128xf32>
    %93 = arith.select %7, %91, %92 : vector<128x128xi1>, vector<128x128xf32>
    %cst_30 = arith.constant dense<0xFF800000> : vector<128xf32>
    %94 = vector.multi_reduction <maximumf>, %93, %cst_30 [1] : vector<128x128xf32> to vector<128xf32>
    %95 = vector.shape_cast %94 : vector<128xf32> to vector<128x1xf32>
    %96 = vector.broadcast %95 : vector<128x1xf32> to vector<128x128xf32>
    %97 = arith.subf %93, %96 : vector<128x128xf32>
    %98 = math.exp %97 : vector<128x128xf32>
    %cst_31 = arith.constant dense<0.000000e+00> : vector<128xf32>
    %99 = vector.multi_reduction <add>, %98, %cst_31 [1] : vector<128x128xf32> to vector<128xf32>
    %100 = vector.shape_cast %99 : vector<128xf32> to vector<128x1xf32>
    %101 = tpu.reciprocal %100 {approx = true} : vector<128x1xf32> -> vector<128x1xf32>
    %102 = vector.broadcast %101 : vector<128x1xf32> to vector<128x128xf32>
    %103 = arith.mulf %98, %102 : vector<128x128xf32>
    %104 = arith.truncf %103 : vector<128x128xf32> to vector<128x128xbf16>
    %105 = arith.truncf %88 : vector<128x32xf32> to vector<128x32xbf16>
    %cst_32 = arith.constant dense<0.000000e+00> : vector<128x32xf32>
    %106 = tpu.matmul %104, %105, %cst_32 {dimension_numbers = #tpu.dot_dimension_numbers<[1], [0], [0], [1], [0, 0, 1, 1], [], []>} : vector<128x128xbf16>, vector<128x32xbf16>, vector<128x32xf32> -> vector<128x32xf32>
    %c96 = arith.constant 96 : index
    %c0_33 = arith.constant 0 : index
    %107 = vector.load %arg3[%c96, %c0_33] : memref<128x128xbf16, #tpu.memory_space<vmem>>, vector<32x128xbf16>
    %108 = arith.truncf %106 : vector<128x32xf32> to vector<128x32xbf16>
    %cst_34 = arith.constant dense<0.000000e+00> : vector<128x128xf32>
    %109 = tpu.matmul %108, %107, %cst_34 {dimension_numbers = #tpu.dot_dimension_numbers<[1], [0], [0], [1], [0, 0, 1, 1], [], []>} : vector<128x32xbf16>, vector<32x128xbf16>, vector<128x128xf32> -> vector<128x128xf32>
    %110 = arith.addf %85, %109 : vector<128x128xf32>
    %c0_35 = arith.constant 0 : index
    %c0_36 = arith.constant 0 : index
    %c0_37 = arith.constant 0 : index
    %111 = vector.load %arg5[%c0_35, %c0_36, %c0_37] : memref<1x128x128xf32, #tpu.memory_space<vmem>>, vector<1x128x128xf32>
    %112 = vector.shape_cast %111 : vector<1x128x128xf32> to vector<128x128xf32>
    %113 = vector.shape_cast %110 : vector<128x128xf32> to vector<1x128x128xf32>
    tpu.vector_store %arg5[%c0_35, %c0_36, %c0_37], %113 {strides = array<i32>} : memref<1x128x128xf32, #tpu.memory_space<vmem>>, vector<1x128x128xf32>,
    return
  }
  func.func @transform_0(%arg0: i32) -> (i32, i32, i32) {
    %c0_i32 = arith.constant 0 : i32
    %c0_i32_0 = arith.constant 0 : i32
    %c0_i32_1 = arith.constant 0 : i32
    return %arg0, %c0_i32, %c0_i32_0 : i32, i32, i32
  }
  func.func @transform_1(%arg0: i32) -> (i32, i32) {
    %c0_i32 = arith.constant 0 : i32
    %c0_i32_0 = arith.constant 0 : i32
    %c0_i32_1 = arith.constant 0 : i32
    return %c0_i32, %c0_i32_0 : i32, i32
  }
  func.func @transform_2(%arg0: i32) -> (i32, i32) {
    %c0_i32 = arith.constant 0 : i32
    %c0_i32_0 = arith.constant 0 : i32
    %c0_i32_1 = arith.constant 0 : i32
    return %c0_i32, %c0_i32_0 : i32, i32
  }
  func.func @transform_3(%arg0: i32) -> (i32, i32) {
    %c0_i32 = arith.constant 0 : i32
    %c0_i32_0 = arith.constant 0 : i32
    %c0_i32_1 = arith.constant 0 : i32
    return %c0_i32, %c0_i32_0 : i32, i32
  }
  func.func @transform_4(%arg0: i32) -> (i32, i32, i32) {
    %c0_i32 = arith.constant 0 : i32
    %c0_i32_0 = arith.constant 0 : i32
    %c0_i32_1 = arith.constant 0 : i32
    return %arg0, %c0_i32, %c0_i32_0 : i32, i32, i32
  }
}

</mosaic_0001>

<llo_original>
// kernel: tpu_custom_call.1
$region0: #{tpu_custom_call.1}
  #allocation0 [shape = 'u32[]', space=smem, size = 0x4, offset = 0x4, fixed_abs, tag = 'smem constant byte address 0x4 - core index']
  #allocation1 [shape = 'u32[144,128]{1,0:T(1,128)}', space=vmem, size = 0x12000, scoped, tag = 'internal scratch']
  %s0 = inlined_call_operand.hbm [shape: f32[2,128,128], index: 0, kind: input, shape index: {}]
  %s1 = inlined_call_operand.hbm [shape: bf16[128,384], index: 1, kind: input, shape index: {}]
  %s2 = inlined_call_operand.hbm [shape: bf16[128,128], index: 2, kind: input, shape index: {}]
  %s3 = inlined_call_operand.vmem [shape: f32[1,128], index: 3, kind: input, shape index: {}]
  %s4 = inlined_call_operand.hbm [shape: f32[2,128,128], index: 4, kind: output, shape index: {}]
  %s5 = sld [smem:[#allocation0]]
  $region61: #{tpu_custom_call.1} parent=0
    _
  %s7 = ssub.s32 1, %s5
  %s8 = scalar_select 0, %s7, %s5
  $region1: #{tpu_custom_call.1} parent=0
    #allocation2 [shape = 'u8[131072]{0}', space=vmem, size = 0x20000, scoped, tag = 'input window, operand 0']
    #allocation3 [shape = 's32[2]{0}', space=sflag, size = 0x8, scoped, tag = 'scoped memory for tpu_custom_call.1']
    #allocation4 [shape = 's32[2]{0}', space=sflag, size = 0x8, scoped, tag = 'scoped memory for tpu_custom_call.1']
    #allocation5 [shape = 'u8[98304]{0}', space=vmem, size = 0x18000, scoped, tag = 'input window, operand 1, single buffered']
    #allocation6 [shape = 's32[1]{0}', space=sflag, size = 0x4, scoped, tag = 'scoped memory for tpu_custom_call.1']
    #allocation7 [shape = 'u8[32768]{0}', space=vmem, size = 0x8000, scoped, tag = 'input window, operand 2, single buffered']
    #allocation8 [shape = 'u8[131072]{0}', space=vmem, size = 0x20000, scoped, tag = 'output window, operand 0']
    %9 = vsyncpa [#allocation3], 0
    %s10 = scalar_lea.sflag [#allocation3], 1
    %11 = vsyncpa %s10, 0
    %12 = vsyncpa [#allocation6], 0
    %13 = vsyncpa [#allocation4], 0
    %s14 = scalar_lea.sflag [#allocation4], 1
    %15 = vsyncpa %s14, 0
    loop: start=0, step=1, limit=4
    $region2: #{tpu_custom_call.1} parent=1 // loop_pre_header
      _
    $region3: #{tpu_custom_call.1} parent=1 // loop_header
      %s17 = sphi 0, %s21
      %p18 = scmp.ge.s32.totalorder %s17, 4
      %s27 = sphi 0, %s29
      %s30 = sphi 0, %s27
      %s31 = sphi 0, %s30
      %s47 = sphi 0, %s31
      %s51 = sphi 0, %s51
      %s53 = sphi 0, %s51
      %s54 = sphi 0, %s53
      %s68 = sphi 0, %s54
      %s72 = sphi 0, %s72
      %s74 = sphi 0, %s72
      %s75 = sphi 0, %s74
      %s89 = sphi 0, %s75
      %s93 = sphi 0, %s93
      %s95 = sphi 0, %s93
      %s96 = sphi 0, %s95
      %s110 = sphi 0, %s96
      %s116 = sphi 0, %s118
      %s119 = sphi 0, %s116
      %s120 = sphi 0, %s119
      %s136 = sphi 0, %s120
    $region4: #{tpu_custom_call.1} parent=1 // loop_header_branch
      %20 = sbr.rel (%p18) target = $region8
    $region5: #{tpu_custom_call.1} parent=1 // loop_body
      %s22 = ssub.s32 %s17, 1
      %s23 = ssub.s32 %s17, 2
      %s24 = sadd.s32 %s17, 1
      %s25 = ssub.s32 %s17, %s24
      %p26 = scmp.eq.s32.totalorder %s25, 0
      %s28 = sadd.s32 %s27, 1
      %s29 = scalar_select %p26, %s27, %s28
      %p32 = pneg %p26
      %p33 = scmp.eq.s32.totalorder %s17, 1
      %p34 = por %p32, %p33
      %p35 = scmp.ne.s32.totalorder %s27, %s30
      %p36 = scmp.eq.s32.totalorder %s17, 0
      %p37 = por %p35, %p36
      %p38 = scmp.ne.s32.totalorder %s27, %s30
      %p39 = scmp.eq.s32.totalorder %s22, 1
      %p40 = por %p38, %p39
      %p41 = scmp.ne.s32.totalorder %s30, %s31
      %p42 = scmp.eq.s32.totalorder %s22, 0
      %p43 = por %p41, %p42
      %p44 = scmp.ne.s32.totalorder %s30, %s31
      %p45 = scmp.eq.s32.totalorder %s23, 1
      %p46 = por %p44, %p45
      %p48 = scmp.ne.s32.totalorder %s31, %s47
      %p49 = scmp.eq.s32.totalorder %s23, 0
      %p50 = por %p48, %p49
      %s52 = sadd.s32 %s51, 1
      %p55 = scmp.eq.s32.totalorder %s17, 1
      %p56 = scmp.ne.s32.totalorder %s51, %s53
      %p57 = scmp.eq.s32.totalorder %s17, 0
      %p58 = por %p56, %p57
      %p59 = scmp.ne.s32.totalorder %s51, %s53
      %p60 = scmp.eq.s32.totalorder %s22, 1
      %p61 = por %p59, %p60
      %p62 = scmp.ne.s32.totalorder %s53, %s54
      %p63 = scmp.eq.s32.totalorder %s22, 0
      %p64 = por %p62, %p63
      %p65 = scmp.ne.s32.totalorder %s53, %s54
      %p66 = scmp.eq.s32.totalorder %s23, 1
      %p67 = por %p65, %p66
      %p69 = scmp.ne.s32.totalorder %s54, %s68
      %p70 = scmp.eq.s32.totalorder %s23, 0
      %p71 = por %p69, %p70
      %s73 = sadd.s32 %s72, 1
      %p76 = scmp.eq.s32.totalorder %s17, 1
      %p77 = scmp.ne.s32.totalorder %s72, %s74
      %p78 = scmp.eq.s32.totalorder %s17, 0
      %p79 = por %p77, %p78
      %p80 = scmp.ne.s32.totalorder %s72, %s74
      %p81 = scmp.eq.s32.totalorder %s22, 1
      %p82 = por %p80, %p81
      %p83 = scmp.ne.s32.totalorder %s74, %s75
      %p84 = scmp.eq.s32.totalorder %s22, 0
      %p85 = por %p83, %p84
      %p86 = scmp.ne.s32.totalorder %s74, %s75
      %p87 = scmp.eq.s32.totalorder %s23, 1
      %p88 = por %p86, %p87
      %p90 = scmp.ne.s32.totalorder %s75, %s89
      %p91 = scmp.eq.s32.totalorder %s23, 0
      %p92 = por %p90, %p91
      %s94 = sadd.s32 %s93, 1
      %p97 = scmp.eq.s32.totalorder %s17, 1
      %p98 = scmp.ne.s32.totalorder %s93, %s95
      %p99 = scmp.eq.s32.totalorder %s17, 0
      %p100 = por %p98, %p99
      %p101 = scmp.ne.s32.totalorder %s93, %s95
      %p102 = scmp.eq.s32.totalorder %s22, 1
      %p103 = por %p101, %p102
      %p104 = scmp.ne.s32.totalorder %s95, %s96
      %p105 = scmp.eq.s32.totalorder %s22, 0
      %p106 = por %p104, %p105
      %p107 = scmp.ne.s32.totalorder %s95, %s96
      %p108 = scmp.eq.s32.totalorder %s23, 1
      %p109 = por %p107, %p108
      %p111 = scmp.ne.s32.totalorder %s96, %s110
      %p112 = scmp.eq.s32.totalorder %s23, 0
      %p113 = por %p111, %p112
      %s114 = ssub.s32 %s17, %s24
      %p115 = scmp.eq.s32.totalorder %s114, 0
      %s117 = sadd.s32 %s116, 1
      %s118 = scalar_select %p115, %s116, %s117
      %p121 = pneg %p115
      %p122 = scmp.eq.s32.totalorder %s17, 1
      %p123 = por %p121, %p122
      %p124 = scmp.ne.s32.totalorder %s116, %s119
      %p125 = scmp.eq.s32.totalorder %s17, 0
      %p126 = por %p124, %p125
      %p127 = scmp.ne.s32.totalorder %s116, %s119
      %p128 = scmp.eq.s32.totalorder %s22, 1
      %p129 = por %p127, %p128
      %p130 = scmp.ne.s32.totalorder %s119, %s120
      %p131 = scmp.eq.s32.totalorder %s22, 0
      %p132 = por %p130, %p131
      %p133 = scmp.ne.s32.totalorder %s119, %s120
      %p134 = scmp.eq.s32.totalorder %s23, 1
      %p135 = por %p133, %p134
      %p137 = scmp.ne.s32.totalorder %s120, %s136
      %p138 = scmp.eq.s32.totalorder %s23, 0
      %p139 = por %p137, %p138
      %p140 = scmp.le.s32.totalorder 1, %s17
      %p141 = scmp.lt.s32.totalorder %s17, 3
      %p142 = pnand %p140, %p141
      %p143 = pneg %p142
      // Predicated region
      $region9: #{tpu_custom_call.1} parent=5 // pred_check
        _
      $region10: #{tpu_custom_call.1} parent=5 // pred_check_branch
        %145 = sbr.rel (%p142) target = $region12
      $region11: #{tpu_custom_call.1} parent=5 // pred_region
        %s146 = ssub.s32 %s17, 1
        // Predicated region
        $region13: #{tpu_custom_call.1} parent=11 // pred_check
          %p147 = pneg %p64
        $region14: #{tpu_custom_call.1} parent=11 // pred_check_branch
          %149 = sbr.rel (%p147) target = $region16
        $region15: #{tpu_custom_call.1} parent=11 // pred_region
          %s151 = ssub.s32 3072, 3072
          %152 = vsyncadd [#allocation6], %s151
          %s153 = sshll.u32 [#allocation5], 4
          %s154 = int_to_ptr.vmem [resolvable:$true] %s153
          %159 = dma.hbm_to_vmem [thread:$0]  %s1, 3072, %s154, [#allocation6], 192, 192, 12
        $region16: #{tpu_custom_call.1} parent=11 // pred_fallthru
          _
        // Predicated region
        $region17: #{tpu_custom_call.1} parent=11 // pred_check
          %p160 = pneg %p85
        $region18: #{tpu_custom_call.1} parent=11 // pred_check_branch
          %162 = sbr.rel (%p160) target = $region20
        $region19: #{tpu_custom_call.1} parent=11 // pred_region
          %s164 = ssub.s32 1024, 1024
          %165 = vsyncadd [#allocation6], %s164
          %s166 = sshll.u32 [#allocation7], 4
          %s167 = int_to_ptr.vmem [resolvable:$true] %s166
          %172 = dma.hbm_to_vmem [thread:$0]  %s2, 1024, %s167, [#allocation6], 64, 64, 4
        $region20: #{tpu_custom_call.1} parent=11 // pred_fallthru
          _
        // Predicated region
        $region21: #{tpu_custom_call.1} parent=11 // pred_check
          %p173 = pneg %p106
        $region22: #{tpu_custom_call.1} parent=11 // pred_check_branch
          %175 = sbr.rel (%p173) target = $region24
        $region23: #{tpu_custom_call.1} parent=11 // pred_region
          _
        $region24: #{tpu_custom_call.1} parent=11 // pred_fallthru
          _
      $region12: #{tpu_custom_call.1} parent=5 // pred_fallthru
        _
      %p176 = scmp.lt.s32.totalorder %s17, 2
      // Predicated region
      $region25: #{tpu_custom_call.1} parent=5 // pred_check
        %p177 = pneg %p176
      $region26: #{tpu_custom_call.1} parent=5 // pred_check_branch
        %179 = sbr.rel (%p177) target = $region28
      $region27: #{tpu_custom_call.1} parent=5 // pred_region
        // Predicated region
        $region29: #{tpu_custom_call.1} parent=27 // pred_check
          %p180 = pneg %p37
        $region30: #{tpu_custom_call.1} parent=27 // pred_check_branch
          %182 = sbr.rel (%p180) target = $region32
        $region31: #{tpu_custom_call.1} parent=27 // pred_region
          %s183 = sand.u32 %s27, 1
          %s184 = scalar_lea.sflag [#allocation3], %s183
          %s185 = sand.u32 %s27, 1
          %s186 = smul.addr %s185, 128
          %s187 = scalar_lea.vmem [#allocation2], %s186
          %s189 = ssub.s32 2048, 2048
          %190 = vsyncadd %s184, %s189
          %s191 = smul.addr %s17, 16
          %s192 = smul.addr %s191, 128
          %s193 = scalar_lea.hbm %s0, %s192
          %s194 = sshll.u32 %s187, 4
          %s195 = int_to_ptr.vmem [resolvable:$true] %s194
          %200 = dma.hbm_to_vmem [thread:$0]  %s193, 2048, %s195, %s184, 128, 128, 8
        $region32: #{tpu_custom_call.1} parent=27 // pred_fallthru
          _
      $region28: #{tpu_custom_call.1} parent=5 // pred_fallthru
        _
      %p201 = scmp.le.s32.totalorder 1, %s17
      %p202 = scmp.lt.s32.totalorder %s17, 3
      %p203 = pnand %p201, %p202
      %p204 = pneg %p203
      // Predicated region
      $region33: #{tpu_custom_call.1} parent=5 // pred_check
        _
      $region34: #{tpu_custom_call.1} parent=5 // pred_check_branch
        %206 = sbr.rel (%p203) target = $region36
      $region35: #{tpu_custom_call.1} parent=5 // pred_region
        %s207 = ssub.s32 %s17, 1
        %s208 = sand.u32 %s30, 1
        %s209 = scalar_lea.sflag [#allocation3], %s208
        %s210 = sand.u32 %s30, 1
        %s211 = smul.addr %s210, 128
        %s212 = scalar_lea.vmem [#allocation2], %s211
        // Predicated region
        $region37: #{tpu_custom_call.1} parent=35 // pred_check
          %p213 = pneg %p43
        $region38: #{tpu_custom_call.1} parent=35 // pred_check_branch
          %215 = sbr.rel (%p213) target = $region40
        $region39: #{tpu_custom_call.1} parent=35 // pred_region
          %216 = dma.done %s209, 2048
        $region40: #{tpu_custom_call.1} parent=35 // pred_fallthru
          _
        // Predicated region
        $region41: #{tpu_custom_call.1} parent=35 // pred_check
          %p217 = pneg %p64
        $region42: #{tpu_custom_call.1} parent=35 // pred_check_branch
          %219 = sbr.rel (%p217) target = $region44
        $region43: #{tpu_custom_call.1} parent=35 // pred_region
          %220 = dma.done [#allocation6], 3072
        $region44: #{tpu_custom_call.1} parent=35 // pred_fallthru
          _
        // Predicated region
        $region45: #{tpu_custom_call.1} parent=35 // pred_check
          %p221 = pneg %p85
        $region46: #{tpu_custom_call.1} parent=35 // pred_check_branch
          %223 = sbr.rel (%p221) target = $region48
        $region47: #{tpu_custom_call.1} parent=35 // pred_region
          %224 = dma.done [#allocation6], 1024
        $region48: #{tpu_custom_call.1} parent=35 // pred_fallthru
          _
        %s225 = sand.u32 %s30, 1
        %s226 = scalar_lea.sflag [#allocation3], %s225
        %s227 = sand.u32 %s30, 1
        %s228 = smul.addr %s227, 128
        %s229 = scalar_lea.vmem [#allocation2], %s228
        %p230 = pneg %p43
        %p231 = pneg %p40
        %p232 = pneg %p64
        %p233 = pneg %p61
        %p234 = pneg %p85
        %p235 = pneg %p82
        %p236 = pneg %p106
        %p237 = pneg %p103
        %p238 = pneg %p132
        %p239 = pneg %p129
        %s240 = sand.u32 %s119, 1
        %s241 = scalar_lea.sflag [#allocation4], %s240
        %s242 = sand.u32 %s119, 1
        %s243 = smul.addr %s242, 128
        %s244 = scalar_lea.vmem [#allocation8], %s243
        %v246 = vld [vmem:[%s212] sm:$0xff]
        %v247 = vld [vmem:[%s212 + $0x8] sm:$0xff]
        %v248 = vld [vmem:[%s212 + $0x10] sm:$0xff]
        %v249 = vld [vmem:[%s212 + $0x18] sm:$0xff]
        %v250 = vld [vmem:[%s212 + $0x20] sm:$0xff]
        %v251 = vld [vmem:[%s212 + $0x28] sm:$0xff]
        %v252 = vld [vmem:[%s212 + $0x30] sm:$0xff]
        %v253 = vld [vmem:[%s212 + $0x38] sm:$0xff]
        %v254 = vld [vmem:[%s212 + $0x40] sm:$0xff]
        %v255 = vld [vmem:[%s212 + $0x48] sm:$0xff]
        %v256 = vld [vmem:[%s212 + $0x50] sm:$0xff]
        %v257 = vld [vmem:[%s212 + $0x58] sm:$0xff]
        %v258 = vld [vmem:[%s212 + $0x60] sm:$0xff]
        %v259 = vld [vmem:[%s212 + $0x68] sm:$0xff]
        %v260 = vld [vmem:[%s212 + $0x70] sm:$0xff]
        %v261 = vld [vmem:[%s212 + $0x78] sm:$0xff]
        %v262 = vpack.c.bf16 %v247, %v246
        %v263 = vpack.c.bf16 %v249, %v248
        %v264 = vpack.c.bf16 %v251, %v250
        %v265 = vpack.c.bf16 %v253, %v252
        %v266 = vpack.c.bf16 %v255, %v254
        %v267 = vpack.c.bf16 %v257, %v256
        %v268 = vpack.c.bf16 %v259, %v258
        %v269 = vpack.c.bf16 %v261, %v260
        %v270 = vld [vmem:[#allocation5] sm:$0xff]
        %v271 = vld [vmem:[#allocation5 + $0x8] sm:$0xf]
        %v272 = vld [vmem:[#allocation5 + $0xc] sm:$0xff]
        %v273 = vld [vmem:[#allocation5 + $0x14] sm:$0xf]
        %v274 = vld [vmem:[#allocation5 + $0x18] sm:$0xff]
        %v275 = vld [vmem:[#allocation5 + $0x20] sm:$0xf]
        %v276 = vld [vmem:[#allocation5 + $0x24] sm:$0xff]
        %v277 = vld [vmem:[#allocation5 + $0x2c] sm:$0xf]
        %v278 = vld [vmem:[#allocation5 + $0x30] sm:$0xff]
        %v279 = vld [vmem:[#allocation5 + $0x38] sm:$0xf]
        %v280 = vld [vmem:[#allocation5 + $0x3c] sm:$0xff]
        %v281 = vld [vmem:[#allocation5 + $0x44] sm:$0xf]
        %v282 = vld [vmem:[#allocation5 + $0x48] sm:$0xff]
        %v283 = vld [vmem:[#allocation5 + $0x50] sm:$0xf]
        %v284 = vld [vmem:[#allocation5 + $0x54] sm:$0xff]
        %v285 = vld [vmem:[#allocation5 + $0x5c] sm:$0xf]
        %v286 = vld [vmem:[#allocation5 + $0x60] sm:$0xff]
        %v287 = vld [vmem:[#allocation5 + $0x68] sm:$0xf]
        %v288 = vld [vmem:[#allocation5 + $0x6c] sm:$0xff]
        %v289 = vld [vmem:[#allocation5 + $0x74] sm:$0xf]
        %v290 = vld [vmem:[#allocation5 + $0x78] sm:$0xff]
        %v291 = vld [vmem:[#allocation5 + $0x80] sm:$0xf]
        %v292 = vld [vmem:[#allocation5 + $0x84] sm:$0xff]
        %v293 = vld [vmem:[#allocation5 + $0x8c] sm:$0xf]
        %v294 = vld [vmem:[#allocation5 + $0x90] sm:$0xff]
        %v295 = vld [vmem:[#allocation5 + $0x98] sm:$0xf]
        %v296 = vld [vmem:[#allocation5 + $0x9c] sm:$0xff]
        %v297 = vld [vmem:[#allocation5 + $0xa4] sm:$0xf]
        %v298 = vld [vmem:[#allocation5 + $0xa8] sm:$0xff]
        %v299 = vld [vmem:[#allocation5 + $0xb0] sm:$0xf]
        %v300 = vld [vmem:[#allocation5 + $0xb4] sm:$0xff]
        %v301 = vld [vmem:[#allocation5 + $0xbc] sm:$0xf]
        %v334 = vunpack.c.l.b16 %v270
        %v335 = vunpack.c.h.b16 %v270
        %v336 = vunpack.c.l.b16 %v271
        %v337 = vunpack.c.l.b16 %v272
        %v338 = vunpack.c.h.b16 %v272
        %v339 = vunpack.c.l.b16 %v273
        %v340 = vunpack.c.l.b16 %v274
        %v341 = vunpack.c.h.b16 %v274
        %v342 = vunpack.c.l.b16 %v275
        %v343 = vunpack.c.l.b16 %v276
        %v344 = vunpack.c.h.b16 %v276
        %v345 = vunpack.c.l.b16 %v277
        %v346 = vunpack.c.l.b16 %v278
        %v347 = vunpack.c.h.b16 %v278
        %v348 = vunpack.c.l.b16 %v279
        %v349 = vunpack.c.l.b16 %v280
        %v350 = vunpack.c.h.b16 %v280
        %v351 = vunpack.c.l.b16 %v281
        %v352 = vunpack.c.l.b16 %v282
        %v353 = vunpack.c.h.b16 %v282
        %v354 = vunpack.c.l.b16 %v283
        %v355 = vunpack.c.l.b16 %v284
        %v356 = vunpack.c.h.b16 %v284
        %v357 = vunpack.c.l.b16 %v285
        %v358 = vunpack.c.l.b16 %v286
        %v359 = vunpack.c.h.b16 %v286
        %v360 = vunpack.c.l.b16 %v287
        %v361 = vunpack.c.l.b16 %v288
        %v362 = vunpack.c.h.b16 %v288
        %v363 = vunpack.c.l.b16 %v289
        %v364 = vunpack.c.l.b16 %v290
        %v365 = vunpack.c.h.b16 %v290
        %v366 = vunpack.c.l.b16 %v291
        %v367 = vunpack.c.l.b16 %v292
        %v368 = vunpack.c.h.b16 %v292
        %v369 = vunpack.c.l.b16 %v293
        %v370 = vunpack.c.l.b16 %v294
        %v371 = vunpack.c.h.b16 %v294
        %v372 = vunpack.c.l.b16 %v295
        %v373 = vunpack.c.l.b16 %v296
        %v374 = vunpack.c.h.b16 %v296
        %v375 = vunpack.c.l.b16 %v297
        %v376 = vunpack.c.l.b16 %v298
        %v377 = vunpack.c.h.b16 %v298
        %v378 = vunpack.c.l.b16 %v299
        %v379 = vunpack.c.l.b16 %v300
        %v380 = vunpack.c.h.b16 %v300
        %v381 = vunpack.c.l.b16 %v301
        %v382 = vpack.c.b16 %v337, %v334
        %v383 = vpack.c.b16 %v338, %v335
        %v384 = vpack.c.b16 %v339, %v336
        %v385 = vpack.c.b16 %v343, %v340
        %v386 = vpack.c.b16 %v344, %v341
        %v387 = vpack.c.b16 %v345, %v342
        %v388 = vpack.c.b16 %v349, %v346
        %v389 = vpack.c.b16 %v350, %v347
        %v390 = vpack.c.b16 %v351, %v348
        %v391 = vpack.c.b16 %v355, %v352
        %v392 = vpack.c.b16 %v356, %v353
        %v393 = vpack.c.b16 %v357, %v354
        %v394 = vpack.c.b16 %v361, %v358
        %v395 = vpack.c.b16 %v362, %v359
        %v396 = vpack.c.b16 %v363, %v360
        %v397 = vpack.c.b16 %v367, %v364
        %v398 = vpack.c.b16 %v368, %v365
        %v399 = vpack.c.b16 %v369, %v366
        %v400 = vpack.c.b16 %v373, %v370
        %v401 = vpack.c.b16 %v374, %v371
        %v402 = vpack.c.b16 %v375, %v372
        %v403 = vpack.c.b16 %v379, %v376
        %v404 = vpack.c.b16 %v380, %v377
        %v405 = vpack.c.b16 %v381, %v378
        %430 = vmatprep.subr.bf16.mxu0 %v404
        %431 = vmatpush1.bf16.msra.mxu0 %v403
        %432 = vmatprep.subr.bf16.mxu0 %v401
        %433 = vmatpush1.bf16.msra.mxu0 %v400
        %434 = vmatprep.subr.bf16.mxu0 %v398
        %435 = vmatpush1.bf16.msra.mxu0 %v397
        %436 = vmatprep.subr.bf16.mxu0 %v395
        %437 = vmatpush1.bf16.msra.mxu0 %v394
        %438 = vmatprep.subr.bf16.mxu0 %v392
        %439 = vmatpush1.bf16.msra.mxu0 %v391
        %440 = vmatprep.subr.bf16.mxu0 %v389
        %441 = vmatpush1.bf16.msra.mxu0 %v388
        %442 = vmatprep.subr.bf16.mxu0 %v386
        %443 = vmatpush1.bf16.msra.mxu0 %v385
        %444 = vmatprep.subr.bf16.mxu0 %v383
        %445 = vmatpush1.bf16.msra.mxu0 %v382
        %446 = vmatprep.subr.bf16.mxu0 0
        %447 = vmatpush2.bf16.msra.mxu0 0
        %448 = vmatprep.subr.bf16.mxu0 0
        %449 = vmatpush2.bf16.msra.mxu0 0
        %450 = vmatprep.subr.bf16.mxu0 0
        %451 = vmatpush2.bf16.msra.mxu0 0
        %452 = vmatprep.subr.bf16.mxu0 0
        %453 = vmatpush2.bf16.msra.mxu0 0
        %454 = vmatprep.subr.bf16.mxu0 0
        %455 = vmatpush2.bf16.msra.mxu0 0
        %456 = vmatprep.subr.bf16.mxu0 0
        %457 = vmatpush2.bf16.msra.mxu0 0
        %458 = vmatprep.subr.bf16.mxu0 0
        %459 = vmatpush2.bf16.msra.mxu0 0
        %460 = vmatprep.subr.bf16.mxu0 0
        %461 = vmatpush2.bf16.msra.mxu0 0
        %462 = vmatprep.mubr.bf16.mxu0 0
        %463 = vmatmul.mubr.bf16.gmra.mxu0 %v262
        %v464 = vpop.f32.mrf.mxu0
        %v465 = vadd.f32 0.0, %v464
        %v466 = vpop.f32.mrf.mxu0
        %v467 = vadd.f32 0.0, %v466
        %v468 = vpop.f32.mrf.mxu0
        %v469 = vadd.f32 0.0, %v468
        %v470 = vpop.f32.mrf.mxu0
        %v471 = vadd.f32 0.0, %v470
        %472 = vmatprep.mubr.bf16.mxu0 0
        %473 = vmatmul.mubr.bf16.gmra.mxu0 %v263
        %v474 = vpop.f32.mrf.mxu0
        %v475 = vadd.f32 0.0, %v474
        %v476 = vpop.f32.mrf.mxu0
        %v477 = vadd.f32 0.0, %v476
        %v478 = vpop.f32.mrf.mxu0
        %v479 = vadd.f32 0.0, %v478
        %v480 = vpop.f32.mrf.mxu0
        %v481 = vadd.f32 0.0, %v480
        %482 = vmatprep.mubr.bf16.mxu0 0
        %483 = vmatmul.mubr.bf16.gmra.mxu0 %v264
        %v484 = vpop.f32.mrf.mxu0
        %v485 = vadd.f32 0.0, %v484
        %v486 = vpop.f32.mrf.mxu0
        %v487 = vadd.f32 0.0, %v486
        %v488 = vpop.f32.mrf.mxu0
        %v489 = vadd.f32 0.0, %v488
        %v490 = vpop.f32.mrf.mxu0
        %v491 = vadd.f32 0.0, %v490
        %492 = vmatprep.mubr.bf16.mxu0 0
        %493 = vmatmul.mubr.bf16.gmra.mxu0 %v265
        %v494 = vpop.f32.mrf.mxu0
        %v495 = vadd.f32 0.0, %v494
        %v496 = vpop.f32.mrf.mxu0
        %v497 = vadd.f32 0.0, %v496
        %v498 = vpop.f32.mrf.mxu0
        %v499 = vadd.f32 0.0, %v498
        %v500 = vpop.f32.mrf.mxu0
        %v501 = vadd.f32 0.0, %v500
        %502 = vmatprep.mubr.bf16.mxu0 0
        %503 = vmatmul.mubr.bf16.gmra.mxu0 %v266
        %v504 = vpop.f32.mrf.mxu0
        %v505 = vadd.f32 0.0, %v504
        %v506 = vpop.f32.mrf.mxu0
        %v507 = vadd.f32 0.0, %v506
        %v508 = vpop.f32.mrf.mxu0
        %v509 = vadd.f32 0.0, %v508
        %v510 = vpop.f32.mrf.mxu0
        %v511 = vadd.f32 0.0, %v510
        %512 = vmatprep.mubr.bf16.mxu0 0
        %513 = vmatmul.mubr.bf16.gmra.mxu0 %v267
        %v514 = vpop.f32.mrf.mxu0
        %v515 = vadd.f32 0.0, %v514
        %v516 = vpop.f32.mrf.mxu0
        %v517 = vadd.f32 0.0, %v516
        %v518 = vpop.f32.mrf.mxu0
        %v519 = vadd.f32 0.0, %v518
        %v520 = vpop.f32.mrf.mxu0
        %v521 = vadd.f32 0.0, %v520
        %522 = vmatprep.mubr.bf16.mxu0 0
        %523 = vmatmul.mubr.bf16.gmra.mxu0 %v268
        %v524 = vpop.f32.mrf.mxu0
        %v525 = vadd.f32 0.0, %v524
        %v526 = vpop.f32.mrf.mxu0
        %v527 = vadd.f32 0.0, %v526
        %v528 = vpop.f32.mrf.mxu0
        %v529 = vadd.f32 0.0, %v528
        %v530 = vpop.f32.mrf.mxu0
        %v531 = vadd.f32 0.0, %v530
        %532 = vmatprep.mubr.bf16.mxu0 0
        %533 = vmatmul.mubr.bf16.gmra.mxu0 %v269
        %v534 = vpop.f32.mrf.mxu0
        %v535 = vadd.f32 0.0, %v534
        %v536 = vpop.f32.mrf.mxu0
        %v537 = vadd.f32 0.0, %v536
        %v538 = vpop.f32.mrf.mxu0
        %v539 = vadd.f32 0.0, %v538
        %v540 = vpop.f32.mrf.mxu0
        %v541 = vadd.f32 0.0, %v540
        %542 = vdwg.mxu0
        %543 = vmatprep.subr.bf16.mxu0 0
        %544 = vmatpush1.bf16.msra.mxu0 %v405
        %545 = vmatprep.subr.bf16.mxu0 0
        %546 = vmatpush1.bf16.msra.mxu0 %v402
        %547 = vmatprep.subr.bf16.mxu0 0
        %548 = vmatpush1.bf16.msra.mxu0 %v399
        %549 = vmatprep.subr.bf16.mxu0 0
        %550 = vmatpush1.bf16.msra.mxu0 %v396
        %551 = vmatprep.subr.bf16.mxu0 0
        %552 = vmatpush1.bf16.msra.mxu0 %v393
        %553 = vmatprep.subr.bf16.mxu0 0
        %554 = vmatpush1.bf16.msra.mxu0 %v390
        %555 = vmatprep.subr.bf16.mxu0 0
        %556 = vmatpush1.bf16.msra.mxu0 %v387
        %557 = vmatprep.subr.bf16.mxu0 0
        %558 = vmatpush1.bf16.msra.mxu0 %v384
        %559 = vmatprep.subr.bf16.mxu0 0
        %560 = vmatpush2.bf16.msra.mxu0 0
        %561 = vmatprep.subr.bf16.mxu0 0
        %562 = vmatpush2.bf16.msra.mxu0 0
        %563 = vmatprep.subr.bf16.mxu0 0
        %564 = vmatpush2.bf16.msra.mxu0 0
        %565 = vmatprep.subr.bf16.mxu0 0
        %566 = vmatpush2.bf16.msra.mxu0 0
        %567 = vmatprep.subr.bf16.mxu0 0
        %568 = vmatpush2.bf16.msra.mxu0 0
        %569 = vmatprep.subr.bf16.mxu0 0
        %570 = vmatpush2.bf16.msra.mxu0 0
        %571 = vmatprep.subr.bf16.mxu0 0
        %572 = vmatpush2.bf16.msra.mxu0 0
        %573 = vmatprep.subr.bf16.mxu0 0
        %574 = vmatpush2.bf16.msra.mxu0 0
        %575 = vmatprep.mubr.bf16.mxu0 0
        %576 = vmatmul.mubr.bf16.gmra.mxu0 %v262
        %v577 = vpop.f32.mrf.mxu0
        %v578 = vadd.f32 0.0, %v577
        %v579 = vpop.f32.mrf.mxu0
        %v580 = vpop.f32.mrf.mxu0
        %v581 = vadd.f32 0.0, %v580
        %v582 = vpop.f32.mrf.mxu0
        %583 = vmatprep.mubr.bf16.mxu0 0
        %584 = vmatmul.mubr.bf16.gmra.mxu0 %v263
        %v585 = vpop.f32.mrf.mxu0
        %v586 = vadd.f32 0.0, %v585
        %v587 = vpop.f32.mrf.mxu0
        %v588 = vpop.f32.mrf.mxu0
        %v589 = vadd.f32 0.0, %v588
        %v590 = vpop.f32.mrf.mxu0
        %591 = vmatprep.mubr.bf16.mxu0 0
        %592 = vmatmul.mubr.bf16.gmra.mxu0 %v264
        %v593 = vpop.f32.mrf.mxu0
        %v594 = vadd.f32 0.0, %v593
        %v595 = vpop.f32.mrf.mxu0
        %v596 = vpop.f32.mrf.mxu0
        %v597 = vadd.f32 0.0, %v596
        %v598 = vpop.f32.mrf.mxu0
        %599 = vmatprep.mubr.bf16.mxu0 0
        %600 = vmatmul.mubr.bf16.gmra.mxu0 %v265
        %v601 = vpop.f32.mrf.mxu0
        %v602 = vadd.f32 0.0, %v601
        %v603 = vpop.f32.mrf.mxu0
        %v604 = vpop.f32.mrf.mxu0
        %v605 = vadd.f32 0.0, %v604
        %v606 = vpop.f32.mrf.mxu0
        %607 = vmatprep.mubr.bf16.mxu0 0
        %608 = vmatmul.mubr.bf16.gmra.mxu0 %v266
        %v609 = vpop.f32.mrf.mxu0
        %v610 = vadd.f32 0.0, %v609
        %v611 = vpop.f32.mrf.mxu0
        %v612 = vpop.f32.mrf.mxu0
        %v613 = vadd.f32 0.0, %v612
        %v614 = vpop.f32.mrf.mxu0
        %615 = vmatprep.mubr.bf16.mxu0 0
        %616 = vmatmul.mubr.bf16.gmra.mxu0 %v267
        %v617 = vpop.f32.mrf.mxu0
        %v618 = vadd.f32 0.0, %v617
        %v619 = vpop.f32.mrf.mxu0
        %v620 = vpop.f32.mrf.mxu0
        %v621 = vadd.f32 0.0, %v620
        %v622 = vpop.f32.mrf.mxu0
        %623 = vmatprep.mubr.bf16.mxu0 0
        %624 = vmatmul.mubr.bf16.gmra.mxu0 %v268
        %v625 = vpop.f32.mrf.mxu0
        %v626 = vadd.f32 0.0, %v625
        %v627 = vpop.f32.mrf.mxu0
        %v628 = vpop.f32.mrf.mxu0
        %v629 = vadd.f32 0.0, %v628
        %v630 = vpop.f32.mrf.mxu0
        %631 = vmatprep.mubr.bf16.mxu0 0
        %632 = vmatmul.mubr.bf16.gmra.mxu0 %v269
        %v633 = vpop.f32.mrf.mxu0
        %v634 = vadd.f32 0.0, %v633
        %v635 = vpop.f32.mrf.mxu0
        %v636 = vpop.f32.mrf.mxu0
        %v637 = vadd.f32 0.0, %v636
        %v638 = vpop.f32.mrf.mxu0
        %639 = vdwg.mxu0
        %v640 = vlaneseq
        %v641 = vshrl.u32 %v640, 7
        %v642 = vadd.s32 %v641, 8
        %v643 = vadd.s32 %v641, 16
        %v644 = vadd.s32 %v641, 24
        %v645 = vadd.s32 %v641, 32
        %v646 = vadd.s32 %v641, 40
        %v647 = vadd.s32 %v641, 48
        %v648 = vadd.s32 %v641, 56
        %v649 = vadd.s32 %v641, 64
        %v650 = vadd.s32 %v641, 72
        %v651 = vadd.s32 %v641, 80
        %v652 = vadd.s32 %v641, 88
        %v653 = vadd.s32 %v641, 96
        %v654 = vadd.s32 %v641, 104
        %v655 = vadd.s32 %v641, 112
        %v656 = vadd.s32 %v641, 120
        %v657 = vlaneseq
        %v658 = vand.u32 %v657, 127
        %vm659 = vcmp.le.s32.totalorder %v658, %v641
        %vm660 = vcmp.le.s32.totalorder %v658, %v642
        %vm661 = vcmp.le.s32.totalorder %v658, %v643
        %vm662 = vcmp.le.s32.totalorder %v658, %v644
        %vm663 = vcmp.le.s32.totalorder %v658, %v645
        %vm664 = vcmp.le.s32.totalorder %v658, %v646
        %vm665 = vcmp.le.s32.totalorder %v658, %v647
        %vm666 = vcmp.le.s32.totalorder %v658, %v648
        %vm667 = vcmp.le.s32.totalorder %v658, %v649
        %vm668 = vcmp.le.s32.totalorder %v658, %v650
        %vm669 = vcmp.le.s32.totalorder %v658, %v651
        %vm670 = vcmp.le.s32.totalorder %v658, %v652
        %vm671 = vcmp.le.s32.totalorder %v658, %v653
        %vm672 = vcmp.le.s32.totalorder %v658, %v654
        %vm673 = vcmp.le.s32.totalorder %v658, %v655
        %vm674 = vcmp.le.s32.totalorder %v658, %v656
        %v675 = vld [vmem:[%s3] sm:$0x1]
        %v677 = vlaneseq
        %v678 = vshrl.u32 %v677, 7
        %v679 = vsub.s32 0, %v678
        %v680 = vrot.slane %v675, %v679
        %v682 = vpack.c.bf16 %v469, %v465
        %v683 = vpack.c.bf16 %v479, %v475
        %v684 = vpack.c.bf16 %v489, %v485
        %v685 = vpack.c.bf16 %v499, %v495
        %v686 = vpack.c.bf16 %v509, %v505
        %v687 = vpack.c.bf16 %v519, %v515
        %v688 = vpack.c.bf16 %v529, %v525
        %v689 = vpack.c.bf16 %v539, %v535
        %v690 = vpack.c.bf16 %v471, %v467
        %v691 = vpack.c.bf16 %v481, %v477
        %v692 = vpack.c.bf16 %v491, %v487
        %v693 = vpack.c.bf16 %v501, %v497
        %v694 = vpack.c.bf16 %v511, %v507
        %v695 = vpack.c.bf16 %v521, %v517
        %v696 = vpack.c.bf16 %v531, %v527
        %v697 = vpack.c.bf16 %v541, %v537
        %vm698 = vcmask 261120
        %v700 = vsel %vm698, %v682, 0
        %v703 = vsel %vm698, %v683, 0
        %v706 = vsel %vm698, %v684, 0
        %v709 = vsel %vm698, %v685, 0
        %v712 = vsel %vm698, %v686, 0
        %v715 = vsel %vm698, %v687, 0
        %v718 = vsel %vm698, %v688, 0
        %v721 = vsel %vm698, %v689, 0
        %v724 = vsel %vm698, %v690, 0
        %v727 = vsel %vm698, %v691, 0
        %v730 = vsel %vm698, %v692, 0
        %v733 = vsel %vm698, %v693, 0
        %v736 = vsel %vm698, %v694, 0
        %v739 = vsel %vm698, %v695, 0
        %v742 = vsel %vm698, %v696, 0
        %v745 = vsel %vm698, %v697, 0
        %747 = vmatprep.subr.bf16.mxu0 0
        %748 = vmatpush1.bf16.xpose.msra.mxu0 %v745
        %749 = vmatprep.subr.bf16.mxu0 0
        %750 = vmatpush1.bf16.xpose.msra.mxu0 %v742
        %751 = vmatprep.subr.bf16.mxu0 0
        %752 = vmatpush1.bf16.xpose.msra.mxu0 %v739
        %753 = vmatprep.subr.bf16.mxu0 0
        %754 = vmatpush1.bf16.xpose.msra.mxu0 %v736
        %755 = vmatprep.subr.bf16.mxu0 0
        %756 = vmatpush1.bf16.xpose.msra.mxu0 %v733
        %757 = vmatprep.subr.bf16.mxu0 0
        %758 = vmatpush1.bf16.xpose.msra.mxu0 %v730
        %759 = vmatprep.subr.bf16.mxu0 0
        %760 = vmatpush1.bf16.xpose.msra.mxu0 %v727
        %761 = vmatprep.subr.bf16.mxu0 0
        %762 = vmatpush1.bf16.xpose.msra.mxu0 %v724
        %763 = vmatprep.subr.bf16.mxu0 0
        %764 = vmatpush2.bf16.xpose.msra.mxu0 0
        %765 = vmatprep.subr.bf16.mxu0 0
        %766 = vmatpush2.bf16.xpose.msra.mxu0 0
        %767 = vmatprep.subr.bf16.mxu0 0
        %768 = vmatpush2.bf16.xpose.msra.mxu0 0
        %769 = vmatprep.subr.bf16.mxu0 0
        %770 = vmatpush2.bf16.xpose.msra.mxu0 0
        %771 = vmatprep.subr.bf16.mxu0 0
        %772 = vmatpush2.bf16.xpose.msra.mxu0 0
        %773 = vmatprep.subr.bf16.mxu0 0
        %774 = vmatpush2.bf16.xpose.msra.mxu0 0
        %775 = vmatprep.subr.bf16.mxu0 0
        %776 = vmatpush2.bf16.xpose.msra.mxu0 0
        %777 = vmatprep.subr.bf16.mxu0 0
        %778 = vmatpush2.bf16.xpose.msra.mxu0 0
        %779 = vmatprep.mubr.bf16.mxu0 0
        %780 = vmatmul.mubr.bf16.gmra.mxu0 %v700
        %v781 = vpop.f32.mrf.mxu0
        %v782 = vadd.f32 0.0, %v781
        %v783 = vpop.f32.mrf.mxu0
        %v784 = vpop.f32.mrf.mxu0
        %v785 = vadd.f32 0.0, %v784
        %v786 = vpop.f32.mrf.mxu0
        %787 = vmatprep.mubr.bf16.mxu0 0
        %788 = vmatmul.mubr.bf16.gmra.mxu0 %v703
        %v789 = vpop.f32.mrf.mxu0
        %v790 = vadd.f32 0.0, %v789
        %v791 = vpop.f32.mrf.mxu0
        %v792 = vpop.f32.mrf.mxu0
        %v793 = vadd.f32 0.0, %v792
        %v794 = vpop.f32.mrf.mxu0
        %795 = vmatprep.mubr.bf16.mxu0 0
        %796 = vmatmul.mubr.bf16.gmra.mxu0 %v706
        %v797 = vpop.f32.mrf.mxu0
        %v798 = vadd.f32 0.0, %v797
        %v799 = vpop.f32.mrf.mxu0
        %v800 = vpop.f32.mrf.mxu0
        %v801 = vadd.f32 0.0, %v800
        %v802 = vpop.f32.mrf.mxu0
        %803 = vmatprep.mubr.bf16.mxu0 0
        %804 = vmatmul.mubr.bf16.gmra.mxu0 %v709
        %v805 = vpop.f32.mrf.mxu0
        %v806 = vadd.f32 0.0, %v805
        %v807 = vpop.f32.mrf.mxu0
        %v808 = vpop.f32.mrf.mxu0
        %v809 = vadd.f32 0.0, %v808
        %v810 = vpop.f32.mrf.mxu0
        %811 = vmatprep.mubr.bf16.mxu0 0
        %812 = vmatmul.mubr.bf16.gmra.mxu0 %v712
        %v813 = vpop.f32.mrf.mxu0
        %v814 = vadd.f32 0.0, %v813
        %v815 = vpop.f32.mrf.mxu0
        %v816 = vpop.f32.mrf.mxu0
        %v817 = vadd.f32 0.0, %v816
        %v818 = vpop.f32.mrf.mxu0
        %819 = vmatprep.mubr.bf16.mxu0 0
        %820 = vmatmul.mubr.bf16.gmra.mxu0 %v715
        %v821 = vpop.f32.mrf.mxu0
        %v822 = vadd.f32 0.0, %v821
        %v823 = vpop.f32.mrf.mxu0
        %v824 = vpop.f32.mrf.mxu0
        %v825 = vadd.f32 0.0, %v824
        %v826 = vpop.f32.mrf.mxu0
        %827 = vmatprep.mubr.bf16.mxu0 0
        %828 = vmatmul.mubr.bf16.gmra.mxu0 %v718
        %v829 = vpop.f32.mrf.mxu0
        %v830 = vadd.f32 0.0, %v829
        %v831 = vpop.f32.mrf.mxu0
        %v832 = vpop.f32.mrf.mxu0
        %v833 = vadd.f32 0.0, %v832
        %v834 = vpop.f32.mrf.mxu0
        %835 = vmatprep.mubr.bf16.mxu0 0
        %836 = vmatmul.mubr.bf16.gmra.mxu0 %v721
        %v837 = vpop.f32.mrf.mxu0
        %v838 = vadd.f32 0.0, %v837
        %v839 = vpop.f32.mrf.mxu0
        %v840 = vpop.f32.mrf.mxu0
        %v841 = vadd.f32 0.0, %v840
        %v842 = vpop.f32.mrf.mxu0
        %843 = vdwg.mxu0
        %v844 = vsel %vm659, %v782, -inf
        %v845 = vsel %vm660, %v785, -inf
        %v846 = vsel %vm661, %v790, -inf
        %v847 = vsel %vm662, %v793, -inf
        %v848 = vsel %vm663, %v798, -inf
        %v849 = vsel %vm664, %v801, -inf
        %v850 = vsel %vm665, %v806, -inf
        %v851 = vsel %vm666, %v809, -inf
        %v852 = vsel %vm667, %v814, -inf
        %v853 = vsel %vm668, %v817, -inf
        %v854 = vsel %vm669, %v822, -inf
        %v855 = vsel %vm670, %v825, -inf
        %v856 = vsel %vm671, %v830, -inf
        %v857 = vsel %vm672, %v833, -inf
        %v858 = vsel %vm673, %v838, -inf
        %v859 = vsel %vm674, %v841, -inf
        %860 = vmax.xlane.f32.xlu0 %v844
        %v861 = vpop.xlane.xlu0 %860
        %862 = vmax.xlane.f32.xlu0 %v845
        %v863 = vpop.xlane.xlu0 %862
        %864 = vmax.xlane.f32.xlu0 %v846
        %v865 = vpop.xlane.xlu0 %864
        %866 = vmax.xlane.f32.xlu0 %v847
        %v867 = vpop.xlane.xlu0 %866
        %868 = vmax.xlane.f32.xlu0 %v848
        %v869 = vpop.xlane.xlu0 %868
        %870 = vmax.xlane.f32.xlu0 %v849
        %v871 = vpop.xlane.xlu0 %870
        %872 = vmax.xlane.f32.xlu0 %v850
        %v873 = vpop.xlane.xlu0 %872
        %874 = vmax.xlane.f32.xlu0 %v851
        %v875 = vpop.xlane.xlu0 %874
        %876 = vmax.xlane.f32.xlu0 %v852
        %v877 = vpop.xlane.xlu0 %876
        %878 = vmax.xlane.f32.xlu0 %v853
        %v879 = vpop.xlane.xlu0 %878
        %880 = vmax.xlane.f32.xlu0 %v854
        %v881 = vpop.xlane.xlu0 %880
        %882 = vmax.xlane.f32.xlu0 %v855
        %v883 = vpop.xlane.xlu0 %882
        %884 = vmax.xlane.f32.xlu0 %v856
        %v885 = vpop.xlane.xlu0 %884
        %886 = vmax.xlane.f32.xlu0 %v857
        %v887 = vpop.xlane.xlu0 %886
        %888 = vmax.xlane.f32.xlu0 %v858
        %v889 = vpop.xlane.xlu0 %888
        %890 = vmax.xlane.f32.xlu0 %v859
        %v891 = vpop.xlane.xlu0 %890
        %v892 = vsub.f32 %v844, %v861
        %v893 = vsub.f32 %v845, %v863
        %v894 = vsub.f32 %v846, %v865
        %v895 = vsub.f32 %v847, %v867
        %v896 = vsub.f32 %v848, %v869
        %v897 = vsub.f32 %v849, %v871
        %v898 = vsub.f32 %v850, %v873
        %v899 = vsub.f32 %v851, %v875
        %v900 = vsub.f32 %v852, %v877
        %v901 = vsub.f32 %v853, %v879
        %v902 = vsub.f32 %v854, %v881
        %v903 = vsub.f32 %v855, %v883
        %v904 = vsub.f32 %v856, %v885
        %v905 = vsub.f32 %v857, %v887
        %v906 = vsub.f32 %v858, %v889
        %v907 = vsub.f32 %v859, %v891
        %v908 = vmul.f32 %v892, 1.442695
        %v909 = vpow.pop %v908
        %v910 = vmul.f32 %v893, 1.442695
        %v911 = vpow.pop %v910
        %v912 = vmul.f32 %v894, 1.442695
        %v913 = vpow.pop %v912
        %v914 = vmul.f32 %v895, 1.442695
        %v915 = vpow.pop %v914
        %v916 = vmul.f32 %v896, 1.442695
        %v917 = vpow.pop %v916
        %v918 = vmul.f32 %v897, 1.442695
        %v919 = vpow.pop %v918
        %v920 = vmul.f32 %v898, 1.442695
        %v921 = vpow.pop %v920
        %v922 = vmul.f32 %v899, 1.442695
        %v923 = vpow.pop %v922
        %v924 = vmul.f32 %v900, 1.442695
        %v925 = vpow.pop %v924
        %v926 = vmul.f32 %v901, 1.442695
        %v927 = vpow.pop %v926
        %v928 = vmul.f32 %v902, 1.442695
        %v929 = vpow.pop %v928
        %v930 = vmul.f32 %v903, 1.442695
        %v931 = vpow.pop %v930
        %v932 = vmul.f32 %v904, 1.442695
        %v933 = vpow.pop %v932
        %v934 = vmul.f32 %v905, 1.442695
        %v935 = vpow.pop %v934
        %v936 = vmul.f32 %v906, 1.442695
        %v937 = vpow.pop %v936
        %v938 = vmul.f32 %v907, 1.442695
        %v939 = vpow.pop %v938
        %940 = vadd.xlane.f32.xlu0 %v909
        %v941 = vpop.xlane.xlu0 %940
        %942 = vadd.xlane.f32.xlu0 %v911
        %v943 = vpop.xlane.xlu0 %942
        %944 = vadd.xlane.f32.xlu0 %v913
        %v945 = vpop.xlane.xlu0 %944
        %946 = vadd.xlane.f32.xlu0 %v915
        %v947 = vpop.xlane.xlu0 %946
        %948 = vadd.xlane.f32.xlu0 %v917
        %v949 = vpop.xlane.xlu0 %948
        %950 = vadd.xlane.f32.xlu0 %v919
        %v951 = vpop.xlane.xlu0 %950
        %952 = vadd.xlane.f32.xlu0 %v921
        %v953 = vpop.xlane.xlu0 %952
        %954 = vadd.xlane.f32.xlu0 %v923
        %v955 = vpop.xlane.xlu0 %954
        %956 = vadd.xlane.f32.xlu0 %v925
        %v957 = vpop.xlane.xlu0 %956
        %958 = vadd.xlane.f32.xlu0 %v927
        %v959 = vpop.xlane.xlu0 %958
        %960 = vadd.xlane.f32.xlu0 %v929
        %v961 = vpop.xlane.xlu0 %960
        %962 = vadd.xlane.f32.xlu0 %v931
        %v963 = vpop.xlane.xlu0 %962
        %964 = vadd.xlane.f32.xlu0 %v933
        %v965 = vpop.xlane.xlu0 %964
        %966 = vadd.xlane.f32.xlu0 %v935
        %v967 = vpop.xlane.xlu0 %966
        %968 = vadd.xlane.f32.xlu0 %v937
        %v969 = vpop.xlane.xlu0 %968
        %970 = vadd.xlane.f32.xlu0 %v939
        %v971 = vpop.xlane.xlu0 %970
        %v972 = vrcp.pop %v941
        %v973 = vrcp.pop %v943
        %v974 = vrcp.pop %v945
        %v975 = vrcp.pop %v947
        %v976 = vrcp.pop %v949
        %v977 = vrcp.pop %v951
        %v978 = vrcp.pop %v953
        %v979 = vrcp.pop %v955
        %v980 = vrcp.pop %v957
        %v981 = vrcp.pop %v959
        %v982 = vrcp.pop %v961
        %v983 = vrcp.pop %v963
        %v984 = vrcp.pop %v965
        %v985 = vrcp.pop %v967
        %v986 = vrcp.pop %v969
        %v987 = vrcp.pop %v971
        %v988 = vmul.f32 %v909, %v972
        %v989 = vmul.f32 %v911, %v973
        %v990 = vmul.f32 %v913, %v974
        %v991 = vmul.f32 %v915, %v975
        %v992 = vmul.f32 %v917, %v976
        %v993 = vmul.f32 %v919, %v977
        %v994 = vmul.f32 %v921, %v978
        %v995 = vmul.f32 %v923, %v979
        %v996 = vmul.f32 %v925, %v980
        %v997 = vmul.f32 %v927, %v981
        %v998 = vmul.f32 %v929, %v982
        %v999 = vmul.f32 %v931, %v983
        %v1000 = vmul.f32 %v933, %v984
        %v1001 = vmul.f32 %v935, %v985
        %v1002 = vmul.f32 %v937, %v986
        %v1003 = vmul.f32 %v939, %v987
        %v1004 = vpack.c.bf16 %v989, %v988
        %v1005 = vpack.c.bf16 %v991, %v990
        %v1006 = vpack.c.bf16 %v993, %v992
        %v1007 = vpack.c.bf16 %v995, %v994
        %v1008 = vpack.c.bf16 %v997, %v996
        %v1009 = vpack.c.bf16 %v999, %v998
        %v1010 = vpack.c.bf16 %v1001, %v1000
        %v1011 = vpack.c.bf16 %v1003, %v1002
        %v1012 = vpack.c.bf16 %v581, %v578
        %v1013 = vpack.c.bf16 %v589, %v586
        %v1014 = vpack.c.bf16 %v597, %v594
        %v1015 = vpack.c.bf16 %v605, %v602
        %v1016 = vpack.c.bf16 %v613, %v610
        %v1017 = vpack.c.bf16 %v621, %v618
        %v1018 = vpack.c.bf16 %v629, %v626
        %v1019 = vpack.c.bf16 %v637, %v634
        %1020 = vmatprep.subr.bf16.mxu0 0
        %1021 = vmatpush1.bf16.msra.mxu0 %v1019
        %1022 = vmatprep.subr.bf16.mxu0 0
        %1023 = vmatpush1.bf16.msra.mxu0 %v1018
        %1024 = vmatprep.subr.bf16.mxu0 0
        %1025 = vmatpush1.bf16.msra.mxu0 %v1017
        %1026 = vmatprep.subr.bf16.mxu0 0
        %1027 = vmatpush1.bf16.msra.mxu0 %v1016
        %1028 = vmatprep.subr.bf16.mxu0 0
        %1029 = vmatpush1.bf16.msra.mxu0 %v1015
        %1030 = vmatprep.subr.bf16.mxu0 0
        %1031 = vmatpush1.bf16.msra.mxu0 %v1014
        %1032 = vmatprep.subr.bf16.mxu0 0
        %1033 = vmatpush1.bf16.msra.mxu0 %v1013
        %1034 = vmatprep.subr.bf16.mxu0 0
        %1035 = vmatpush1.bf16.msra.mxu0 %v1012
        %1036 = vmatprep.subr.bf16.mxu0 0
        %1037 = vmatpush2.bf16.msra.mxu0 0
        %1038 = vmatprep.subr.bf16.mxu0 0
        %1039 = vmatpush2.bf16.msra.mxu0 0
        %1040 = vmatprep.subr.bf16.mxu0 0
        %1041 = vmatpush2.bf16.msra.mxu0 0
        %1042 = vmatprep.subr.bf16.mxu0 0
        %1043 = vmatpush2.bf16.msra.mxu0 0
        %1044 = vmatprep.subr.bf16.mxu0 0
        %1045 = vmatpush2.bf16.msra.mxu0 0
        %1046 = vmatprep.subr.bf16.mxu0 0
        %1047 = vmatpush2.bf16.msra.mxu0 0
        %1048 = vmatprep.subr.bf16.mxu0 0
        %1049 = vmatpush2.bf16.msra.mxu0 0
        %1050 = vmatprep.subr.bf16.mxu0 0
        %1051 = vmatpush2.bf16.msra.mxu0 0
        %1052 = vmatprep.mubr.bf16.mxu0 0
        %1053 = vmatmul.mubr.bf16.gmra.mxu0 %v1004
        %v1054 = vpop.f32.mrf.mxu0
        %v1055 = vadd.f32 0.0, %v1054
        %v1056 = vpop.f32.mrf.mxu0
        %v1057 = vpop.f32.mrf.mxu0
        %v1058 = vadd.f32 0.0, %v1057
        %v1059 = vpop.f32.mrf.mxu0
        %1060 = vmatprep.mubr.bf16.mxu0 0
        %1061 = vmatmul.mubr.bf16.gmra.mxu0 %v1005
        %v1062 = vpop.f32.mrf.mxu0
        %v1063 = vadd.f32 0.0, %v1062
        %v1064 = vpop.f32.mrf.mxu0
        %v1065 = vpop.f32.mrf.mxu0
        %v1066 = vadd.f32 0.0, %v1065
        %v1067 = vpop.f32.mrf.mxu0
        %1068 = vmatprep.mubr.bf16.mxu0 0
        %1069 = vmatmul.mubr.bf16.gmra.mxu0 %v1006
        %v1070 = vpop.f32.mrf.mxu0
        %v1071 = vadd.f32 0.0, %v1070
        %v1072 = vpop.f32.mrf.mxu0
        %v1073 = vpop.f32.mrf.mxu0
        %v1074 = vadd.f32 0.0, %v1073
        %v1075 = vpop.f32.mrf.mxu0
        %1076 = vmatprep.mubr.bf16.mxu0 0
        %1077 = vmatmul.mubr.bf16.gmra.mxu0 %v1007
        %v1078 = vpop.f32.mrf.mxu0
        %v1079 = vadd.f32 0.0, %v1078
        %v1080 = vpop.f32.mrf.mxu0
        %v1081 = vpop.f32.mrf.mxu0
        %v1082 = vadd.f32 0.0, %v1081
        %v1083 = vpop.f32.mrf.mxu0
        %1084 = vmatprep.mubr.bf16.mxu0 0
        %1085 = vmatmul.mubr.bf16.gmra.mxu0 %v1008
        %v1086 = vpop.f32.mrf.mxu0
        %v1087 = vadd.f32 0.0, %v1086
        %v1088 = vpop.f32.mrf.mxu0
        %v1089 = vpop.f32.mrf.mxu0
        %v1090 = vadd.f32 0.0, %v1089
        %v1091 = vpop.f32.mrf.mxu0
        %1092 = vmatprep.mubr.bf16.mxu0 0
        %1093 = vmatmul.mubr.bf16.gmra.mxu0 %v1009
        %v1094 = vpop.f32.mrf.mxu0
        %v1095 = vadd.f32 0.0, %v1094
        %v1096 = vpop.f32.mrf.mxu0
        %v1097 = vpop.f32.mrf.mxu0
        %v1098 = vadd.f32 0.0, %v1097
        %v1099 = vpop.f32.mrf.mxu0
        %1100 = vmatprep.mubr.bf16.mxu0 0
        %1101 = vmatmul.mubr.bf16.gmra.mxu0 %v1010
        %v1102 = vpop.f32.mrf.mxu0
        %v1103 = vadd.f32 0.0, %v1102
        %v1104 = vpop.f32.mrf.mxu0
        %v1105 = vpop.f32.mrf.mxu0
        %v1106 = vadd.f32 0.0, %v1105
        %v1107 = vpop.f32.mrf.mxu0
        %1108 = vmatprep.mubr.bf16.mxu0 0
        %1109 = vmatmul.mubr.bf16.gmra.mxu0 %v1011
        %v1110 = vpop.f32.mrf.mxu0
        %v1111 = vadd.f32 0.0, %v1110
        %v1112 = vpop.f32.mrf.mxu0
        %v1113 = vpop.f32.mrf.mxu0
        %v1114 = vadd.f32 0.0, %v1113
        %v1115 = vpop.f32.mrf.mxu0
        %1116 = vdwg.mxu0
        %v1117 = vld [vmem:[#allocation7] sm:$0xf]
        %v1118 = vld [vmem:[#allocation7 + $0x4] sm:$0xf]
        %v1119 = vld [vmem:[#allocation7 + $0x8] sm:$0xf]
        %v1120 = vld [vmem:[#allocation7 + $0xc] sm:$0xf]
        %v1121 = vpack.c.bf16 %v1058, %v1055
        %v1122 = vpack.c.bf16 %v1066, %v1063
        %v1123 = vpack.c.bf16 %v1074, %v1071
        %v1124 = vpack.c.bf16 %v1082, %v1079
        %v1125 = vpack.c.bf16 %v1090, %v1087
        %v1126 = vpack.c.bf16 %v1098, %v1095
        %v1127 = vpack.c.bf16 %v1106, %v1103
        %v1128 = vpack.c.bf16 %v1114, %v1111
        %v1133 = vunpack.c.l.b16 %v1117
        %v1134 = vunpack.c.l.b16 %v1118
        %v1135 = vunpack.c.l.b16 %v1119
        %v1136 = vunpack.c.l.b16 %v1120
        %v1137 = vpack.c.b16 %v1134, %v1133
        %v1138 = vpack.c.b16 %v1136, %v1135
        %v1142 = vsel %vm698, %v1121, 0
        %v1145 = vsel %vm698, %v1122, 0
        %v1148 = vsel %vm698, %v1123, 0
        %v1151 = vsel %vm698, %v1124, 0
        %v1154 = vsel %vm698, %v1125, 0
        %v1157 = vsel %vm698, %v1126, 0
        %v1160 = vsel %vm698, %v1127, 0
        %v1163 = vsel %vm698, %v1128, 0
        %1165 = vmatprep.subr.bf16.mxu0 0
        %1166 = vmatpush1.bf16.msra.mxu0 0
        %1167 = vmatprep.subr.bf16.mxu0 0
        %1168 = vmatpush1.bf16.msra.mxu0 0
        %1169 = vmatprep.subr.bf16.mxu0 0
        %1170 = vmatpush1.bf16.msra.mxu0 0
        %1171 = vmatprep.subr.bf16.mxu0 0
        %1172 = vmatpush1.bf16.msra.mxu0 0
        %1173 = vmatprep.subr.bf16.mxu0 0
        %1174 = vmatpush1.bf16.msra.mxu0 0
        %1175 = vmatprep.subr.bf16.mxu0 0
        %1176 = vmatpush1.bf16.msra.mxu0 0
        %1177 = vmatprep.subr.bf16.mxu0 0
        %1178 = vmatpush1.bf16.msra.mxu0 %v1138
        %1179 = vmatprep.subr.bf16.mxu0 0
        %1180 = vmatpush1.bf16.msra.mxu0 %v1137
        %1181 = vmatprep.subr.bf16.mxu0 0
        %1182 = vmatpush2.bf16.msra.mxu0 0
        %1183 = vmatprep.subr.bf16.mxu0 0
        %1184 = vmatpush2.bf16.msra.mxu0 0
        %1185 = vmatprep.subr.bf16.mxu0 0
        %1186 = vmatpush2.bf16.msra.mxu0 0
        %1187 = vmatprep.subr.bf16.mxu0 0
        %1188 = vmatpush2.bf16.msra.mxu0 0
        %1189 = vmatprep.subr.bf16.mxu0 0
        %1190 = vmatpush2.bf16.msra.mxu0 0
        %1191 = vmatprep.subr.bf16.mxu0 0
        %1192 = vmatpush2.bf16.msra.mxu0 0
        %1193 = vmatprep.subr.bf16.mxu0 0
        %1194 = vmatpush2.bf16.msra.mxu0 0
        %1195 = vmatprep.subr.bf16.mxu0 0
        %1196 = vmatpush2.bf16.msra.mxu0 0
        %1197 = vmatprep.mubr.bf16.mxu0 0
        %1198 = vmatmul.mubr.bf16.gmra.mxu0 %v1142
        %v1199 = vpop.f32.mrf.mxu0
        %v1200 = vadd.f32 0.0, %v1199
        %v1201 = vpop.f32.mrf.mxu0
        %v1202 = vpop.f32.mrf.mxu0
        %v1203 = vadd.f32 0.0, %v1202
        %v1204 = vpop.f32.mrf.mxu0
        %1205 = vmatprep.mubr.bf16.mxu0 0
        %1206 = vmatmul.mubr.bf16.gmra.mxu0 %v1145
        %v1207 = vpop.f32.mrf.mxu0
        %v1208 = vadd.f32 0.0, %v1207
        %v1209 = vpop.f32.mrf.mxu0
        %v1210 = vpop.f32.mrf.mxu0
        %v1211 = vadd.f32 0.0, %v1210
        %v1212 = vpop.f32.mrf.mxu0
        %1213 = vmatprep.mubr.bf16.mxu0 0
        %1214 = vmatmul.mubr.bf16.gmra.mxu0 %v1148
        %v1215 = vpop.f32.mrf.mxu0
        %v1216 = vadd.f32 0.0, %v1215
        %v1217 = vpop.f32.mrf.mxu0
        %v1218 = vpop.f32.mrf.mxu0
        %v1219 = vadd.f32 0.0, %v1218
        %v1220 = vpop.f32.mrf.mxu0
        %1221 = vmatprep.mubr.bf16.mxu0 0
        %1222 = vmatmul.mubr.bf16.gmra.mxu0 %v1151
        %v1223 = vpop.f32.mrf.mxu0
        %v1224 = vadd.f32 0.0, %v1223
        %v1225 = vpop.f32.mrf.mxu0
        %v1226 = vpop.f32.mrf.mxu0
        %v1227 = vadd.f32 0.0, %v1226
        %v1228 = vpop.f32.mrf.mxu0
        %1229 = vmatprep.mubr.bf16.mxu0 0
        %1230 = vmatmul.mubr.bf16.gmra.mxu0 %v1154
        %v1231 = vpop.f32.mrf.mxu0
        %v1232 = vadd.f32 0.0, %v1231
        %v1233 = vpop.f32.mrf.mxu0
        %v1234 = vpop.f32.mrf.mxu0
        %v1235 = vadd.f32 0.0, %v1234
        %v1236 = vpop.f32.mrf.mxu0
        %1237 = vmatprep.mubr.bf16.mxu0 0
        %1238 = vmatmul.mubr.bf16.gmra.mxu0 %v1157
        %v1239 = vpop.f32.mrf.mxu0
        %v1240 = vadd.f32 0.0, %v1239
        %v1241 = vpop.f32.mrf.mxu0
        %v1242 = vpop.f32.mrf.mxu0
        %v1243 = vadd.f32 0.0, %v1242
        %v1244 = vpop.f32.mrf.mxu0
        %1245 = vmatprep.mubr.bf16.mxu0 0
        %1246 = vmatmul.mubr.bf16.gmra.mxu0 %v1160
        %v1247 = vpop.f32.mrf.mxu0
        %v1248 = vadd.f32 0.0, %v1247
        %v1249 = vpop.f32.mrf.mxu0
        %v1250 = vpop.f32.mrf.mxu0
        %v1251 = vadd.f32 0.0, %v1250
        %v1252 = vpop.f32.mrf.mxu0
        %1253 = vmatprep.mubr.bf16.mxu0 0
        %1254 = vmatmul.mubr.bf16.gmra.mxu0 %v1163
        %v1255 = vpop.f32.mrf.mxu0
        %v1256 = vadd.f32 0.0, %v1255
        %v1257 = vpop.f32.mrf.mxu0
        %v1258 = vpop.f32.mrf.mxu0
        %v1259 = vadd.f32 0.0, %v1258
        %v1260 = vpop.f32.mrf.mxu0
        %1261 = vdwg.mxu0
        %v1262 = vadd.f32 %v680, %v1200
        %v1263 = vadd.f32 %v680, %v1203
        %v1264 = vadd.f32 %v680, %v1208
        %v1265 = vadd.f32 %v680, %v1211
        %v1266 = vadd.f32 %v680, %v1216
        %v1267 = vadd.f32 %v680, %v1219
        %v1268 = vadd.f32 %v680, %v1224
        %v1269 = vadd.f32 %v680, %v1227
        %v1270 = vadd.f32 %v680, %v1232
        %v1271 = vadd.f32 %v680, %v1235
        %v1272 = vadd.f32 %v680, %v1240
        %v1273 = vadd.f32 %v680, %v1243
        %v1274 = vadd.f32 %v680, %v1248
        %v1275 = vadd.f32 %v680, %v1251
        %v1276 = vadd.f32 %v680, %v1256
        %v1277 = vadd.f32 %v680, %v1259
        %1286 = vrot.lane.b32.xlu0 %v682, 96
        %v1287 = vpop.permute.xlu0 %1286
        %1288 = vrot.lane.b32.xlu0 %v683, 96
        %v1289 = vpop.permute.xlu0 %1288
        %1290 = vrot.lane.b32.xlu0 %v684, 96
        %v1291 = vpop.permute.xlu0 %1290
        %1292 = vrot.lane.b32.xlu0 %v685, 96
        %v1293 = vpop.permute.xlu0 %1292
        %1294 = vrot.lane.b32.xlu0 %v686, 96
        %v1295 = vpop.permute.xlu0 %1294
        %1296 = vrot.lane.b32.xlu0 %v687, 96
        %v1297 = vpop.permute.xlu0 %1296
        %1298 = vrot.lane.b32.xlu0 %v688, 96
        %v1299 = vpop.permute.xlu0 %1298
        %1300 = vrot.lane.b32.xlu0 %v689, 96
        %v1301 = vpop.permute.xlu0 %1300
        %1310 = vrot.lane.b32.xlu0 %v690, 96
        %v1311 = vpop.permute.xlu0 %1310
        %1312 = vrot.lane.b32.xlu0 %v691, 96
        %v1313 = vpop.permute.xlu0 %1312
        %1314 = vrot.lane.b32.xlu0 %v692, 96
        %v1315 = vpop.permute.xlu0 %1314
        %1316 = vrot.lane.b32.xlu0 %v693, 96
        %v1317 = vpop.permute.xlu0 %1316
        %1318 = vrot.lane.b32.xlu0 %v694, 96
        %v1319 = vpop.permute.xlu0 %1318
        %1320 = vrot.lane.b32.xlu0 %v695, 96
        %v1321 = vpop.permute.xlu0 %1320
        %1322 = vrot.lane.b32.xlu0 %v696, 96
        %v1323 = vpop.permute.xlu0 %1322
        %1324 = vrot.lane.b32.xlu0 %v697, 96
        %v1325 = vpop.permute.xlu0 %1324
        %v1327 = vsel %vm698, %v1287, 0
        %v1330 = vsel %vm698, %v1289, 0
        %v1333 = vsel %vm698, %v1291, 0
        %v1336 = vsel %vm698, %v1293, 0
        %v1339 = vsel %vm698, %v1295, 0
        %v1342 = vsel %vm698, %v1297, 0
        %v1345 = vsel %vm698, %v1299, 0
        %v1348 = vsel %vm698, %v1301, 0
        %v1351 = vsel %vm698, %v1311, 0
        %v1354 = vsel %vm698, %v1313, 0
        %v1357 = vsel %vm698, %v1315, 0
        %v1360 = vsel %vm698, %v1317, 0
        %v1363 = vsel %vm698, %v1319, 0
        %v1366 = vsel %vm698, %v1321, 0
        %v1369 = vsel %vm698, %v1323, 0
        %v1372 = vsel %vm698, %v1325, 0
        %1374 = vmatprep.subr.bf16.mxu0 0
        %1375 = vmatpush1.bf16.xpose.msra.mxu0 %v1372
        %1376 = vmatprep.subr.bf16.mxu0 0
        %1377 = vmatpush1.bf16.xpose.msra.mxu0 %v1369
        %1378 = vmatprep.subr.bf16.mxu0 0
        %1379 = vmatpush1.bf16.xpose.msra.mxu0 %v1366
        %1380 = vmatprep.subr.bf16.mxu0 0
        %1381 = vmatpush1.bf16.xpose.msra.mxu0 %v1363
        %1382 = vmatprep.subr.bf16.mxu0 0
        %1383 = vmatpush1.bf16.xpose.msra.mxu0 %v1360
        %1384 = vmatprep.subr.bf16.mxu0 0
        %1385 = vmatpush1.bf16.xpose.msra.mxu0 %v1357
        %1386 = vmatprep.subr.bf16.mxu0 0
        %1387 = vmatpush1.bf16.xpose.msra.mxu0 %v1354
        %1388 = vmatprep.subr.bf16.mxu0 0
        %1389 = vmatpush1.bf16.xpose.msra.mxu0 %v1351
        %1390 = vmatprep.subr.bf16.mxu0 0
        %1391 = vmatpush2.bf16.xpose.msra.mxu0 0
        %1392 = vmatprep.subr.bf16.mxu0 0
        %1393 = vmatpush2.bf16.xpose.msra.mxu0 0
        %1394 = vmatprep.subr.bf16.mxu0 0
        %1395 = vmatpush2.bf16.xpose.msra.mxu0 0
        %1396 = vmatprep.subr.bf16.mxu0 0
        %1397 = vmatpush2.bf16.xpose.msra.mxu0 0
        %1398 = vmatprep.subr.bf16.mxu0 0
        %1399 = vmatpush2.bf16.xpose.msra.mxu0 0
        %1400 = vmatprep.subr.bf16.mxu0 0
        %1401 = vmatpush2.bf16.xpose.msra.mxu0 0
        %1402 = vmatprep.subr.bf16.mxu0 0
        %1403 = vmatpush2.bf16.xpose.msra.mxu0 0
        %1404 = vmatprep.subr.bf16.mxu0 0
        %1405 = vmatpush2.bf16.xpose.msra.mxu0 0
        %1406 = vmatprep.mubr.bf16.mxu0 0
        %1407 = vmatmul.mubr.bf16.gmra.mxu0 %v1327
        %v1408 = vpop.f32.mrf.mxu0
        %v1409 = vadd.f32 0.0, %v1408
        %v1410 = vpop.f32.mrf.mxu0
        %v1411 = vpop.f32.mrf.mxu0
        %v1412 = vadd.f32 0.0, %v1411
        %v1413 = vpop.f32.mrf.mxu0
        %1414 = vmatprep.mubr.bf16.mxu0 0
        %1415 = vmatmul.mubr.bf16.gmra.mxu0 %v1330
        %v1416 = vpop.f32.mrf.mxu0
        %v1417 = vadd.f32 0.0, %v1416
        %v1418 = vpop.f32.mrf.mxu0
        %v1419 = vpop.f32.mrf.mxu0
        %v1420 = vadd.f32 0.0, %v1419
        %v1421 = vpop.f32.mrf.mxu0
        %1422 = vmatprep.mubr.bf16.mxu0 0
        %1423 = vmatmul.mubr.bf16.gmra.mxu0 %v1333
        %v1424 = vpop.f32.mrf.mxu0
        %v1425 = vadd.f32 0.0, %v1424
        %v1426 = vpop.f32.mrf.mxu0
        %v1427 = vpop.f32.mrf.mxu0
        %v1428 = vadd.f32 0.0, %v1427
        %v1429 = vpop.f32.mrf.mxu0
        %1430 = vmatprep.mubr.bf16.mxu0 0
        %1431 = vmatmul.mubr.bf16.gmra.mxu0 %v1336
        %v1432 = vpop.f32.mrf.mxu0
        %v1433 = vadd.f32 0.0, %v1432
        %v1434 = vpop.f32.mrf.mxu0
        %v1435 = vpop.f32.mrf.mxu0
        %v1436 = vadd.f32 0.0, %v1435
        %v1437 = vpop.f32.mrf.mxu0
        %1438 = vmatprep.mubr.bf16.mxu0 0
        %1439 = vmatmul.mubr.bf16.gmra.mxu0 %v1339
        %v1440 = vpop.f32.mrf.mxu0
        %v1441 = vadd.f32 0.0, %v1440
        %v1442 = vpop.f32.mrf.mxu0
        %v1443 = vpop.f32.mrf.mxu0
        %v1444 = vadd.f32 0.0, %v1443
        %v1445 = vpop.f32.mrf.mxu0
        %1446 = vmatprep.mubr.bf16.mxu0 0
        %1447 = vmatmul.mubr.bf16.gmra.mxu0 %v1342
        %v1448 = vpop.f32.mrf.mxu0
        %v1449 = vadd.f32 0.0, %v1448
        %v1450 = vpop.f32.mrf.mxu0
        %v1451 = vpop.f32.mrf.mxu0
        %v1452 = vadd.f32 0.0, %v1451
        %v1453 = vpop.f32.mrf.mxu0
        %1454 = vmatprep.mubr.bf16.mxu0 0
        %1455 = vmatmul.mubr.bf16.gmra.mxu0 %v1345
        %v1456 = vpop.f32.mrf.mxu0
        %v1457 = vadd.f32 0.0, %v1456
        %v1458 = vpop.f32.mrf.mxu0
        %v1459 = vpop.f32.mrf.mxu0
        %v1460 = vadd.f32 0.0, %v1459
        %v1461 = vpop.f32.mrf.mxu0
        %1462 = vmatprep.mubr.bf16.mxu0 0
        %1463 = vmatmul.mubr.bf16.gmra.mxu0 %v1348
        %v1464 = vpop.f32.mrf.mxu0
        %v1465 = vadd.f32 0.0, %v1464
        %v1466 = vpop.f32.mrf.mxu0
        %v1467 = vpop.f32.mrf.mxu0
        %v1468 = vadd.f32 0.0, %v1467
        %v1469 = vpop.f32.mrf.mxu0
        %1470 = vdwg.mxu0
        %v1471 = vsel %vm659, %v1409, -inf
        %v1472 = vsel %vm660, %v1412, -inf
        %v1473 = vsel %vm661, %v1417, -inf
        %v1474 = vsel %vm662, %v1420, -inf
        %v1475 = vsel %vm663, %v1425, -inf
        %v1476 = vsel %vm664, %v1428, -inf
        %v1477 = vsel %vm665, %v1433, -inf
        %v1478 = vsel %vm666, %v1436, -inf
        %v1479 = vsel %vm667, %v1441, -inf
        %v1480 = vsel %vm668, %v1444, -inf
        %v1481 = vsel %vm669, %v1449, -inf
        %v1482 = vsel %vm670, %v1452, -inf
        %v1483 = vsel %vm671, %v1457, -inf
        %v1484 = vsel %vm672, %v1460, -inf
        %v1485 = vsel %vm673, %v1465, -inf
        %v1486 = vsel %vm674, %v1468, -inf
        %1487 = vmax.xlane.f32.xlu0 %v1471
        %v1488 = vpop.xlane.xlu0 %1487
        %1489 = vmax.xlane.f32.xlu0 %v1472
        %v1490 = vpop.xlane.xlu0 %1489
        %1491 = vmax.xlane.f32.xlu0 %v1473
        %v1492 = vpop.xlane.xlu0 %1491
        %1493 = vmax.xlane.f32.xlu0 %v1474
        %v1494 = vpop.xlane.xlu0 %1493
        %1495 = vmax.xlane.f32.xlu0 %v1475
        %v1496 = vpop.xlane.xlu0 %1495
        %1497 = vmax.xlane.f32.xlu0 %v1476
        %v1498 = vpop.xlane.xlu0 %1497
        %1499 = vmax.xlane.f32.xlu0 %v1477
        %v1500 = vpop.xlane.xlu0 %1499
        %1501 = vmax.xlane.f32.xlu0 %v1478
        %v1502 = vpop.xlane.xlu0 %1501
        %1503 = vmax.xlane.f32.xlu0 %v1479
        %v1504 = vpop.xlane.xlu0 %1503
        %1505 = vmax.xlane.f32.xlu0 %v1480
        %v1506 = vpop.xlane.xlu0 %1505
        %1507 = vmax.xlane.f32.xlu0 %v1481
        %v1508 = vpop.xlane.xlu0 %1507
        %1509 = vmax.xlane.f32.xlu0 %v1482
        %v1510 = vpop.xlane.xlu0 %1509
        %1511 = vmax.xlane.f32.xlu0 %v1483
        %v1512 = vpop.xlane.xlu0 %1511
        %1513 = vmax.xlane.f32.xlu0 %v1484
        %v1514 = vpop.xlane.xlu0 %1513
        %1515 = vmax.xlane.f32.xlu0 %v1485
        %v1516 = vpop.xlane.xlu0 %1515
        %1517 = vmax.xlane.f32.xlu0 %v1486
        %v1518 = vpop.xlane.xlu0 %1517
        %v1519 = vsub.f32 %v1471, %v1488
        %v1520 = vsub.f32 %v1472, %v1490
        %v1521 = vsub.f32 %v1473, %v1492
        %v1522 = vsub.f32 %v1474, %v1494
        %v1523 = vsub.f32 %v1475, %v1496
        %v1524 = vsub.f32 %v1476, %v1498
        %v1525 = vsub.f32 %v1477, %v1500
        %v1526 = vsub.f32 %v1478, %v1502
        %v1527 = vsub.f32 %v1479, %v1504
        %v1528 = vsub.f32 %v1480, %v1506
        %v1529 = vsub.f32 %v1481, %v1508
        %v1530 = vsub.f32 %v1482, %v1510
        %v1531 = vsub.f32 %v1483, %v1512
        %v1532 = vsub.f32 %v1484, %v1514
        %v1533 = vsub.f32 %v1485, %v1516
        %v1534 = vsub.f32 %v1486, %v1518
        %v1535 = vmul.f32 %v1519, 1.442695
        %v1536 = vpow.pop %v1535
        %v1537 = vmul.f32 %v1520, 1.442695
        %v1538 = vpow.pop %v1537
        %v1539 = vmul.f32 %v1521, 1.442695
        %v1540 = vpow.pop %v1539
        %v1541 = vmul.f32 %v1522, 1.442695
        %v1542 = vpow.pop %v1541
        %v1543 = vmul.f32 %v1523, 1.442695
        %v1544 = vpow.pop %v1543
        %v1545 = vmul.f32 %v1524, 1.442695
        %v1546 = vpow.pop %v1545
        %v1547 = vmul.f32 %v1525, 1.442695
        %v1548 = vpow.pop %v1547
        %v1549 = vmul.f32 %v1526, 1.442695
        %v1550 = vpow.pop %v1549
        %v1551 = vmul.f32 %v1527, 1.442695
        %v1552 = vpow.pop %v1551
        %v1553 = vmul.f32 %v1528, 1.442695
        %v1554 = vpow.pop %v1553
        %v1555 = vmul.f32 %v1529, 1.442695
        %v1556 = vpow.pop %v1555
        %v1557 = vmul.f32 %v1530, 1.442695
        %v1558 = vpow.pop %v1557
        %v1559 = vmul.f32 %v1531, 1.442695
        %v1560 = vpow.pop %v1559
        %v1561 = vmul.f32 %v1532, 1.442695
        %v1562 = vpow.pop %v1561
        %v1563 = vmul.f32 %v1533, 1.442695
        %v1564 = vpow.pop %v1563
        %v1565 = vmul.f32 %v1534, 1.442695
        %v1566 = vpow.pop %v1565
        %1567 = vadd.xlane.f32.xlu0 %v1536
        %v1568 = vpop.xlane.xlu0 %1567
        %1569 = vadd.xlane.f32.xlu0 %v1538
        %v1570 = vpop.xlane.xlu0 %1569
        %1571 = vadd.xlane.f32.xlu0 %v1540
        %v1572 = vpop.xlane.xlu0 %1571
        %1573 = vadd.xlane.f32.xlu0 %v1542
        %v1574 = vpop.xlane.xlu0 %1573
        %1575 = vadd.xlane.f32.xlu0 %v1544
        %v1576 = vpop.xlane.xlu0 %1575
        %1577 = vadd.xlane.f32.xlu0 %v1546
        %v1578 = vpop.xlane.xlu0 %1577
        %1579 = vadd.xlane.f32.xlu0 %v1548
        %v1580 = vpop.xlane.xlu0 %1579
        %1581 = vadd.xlane.f32.xlu0 %v1550
        %v1582 = vpop.xlane.xlu0 %1581
        %1583 = vadd.xlane.f32.xlu0 %v1552
        %v1584 = vpop.xlane.xlu0 %1583
        %1585 = vadd.xlane.f32.xlu0 %v1554
        %v1586 = vpop.xlane.xlu0 %1585
        %1587 = vadd.xlane.f32.xlu0 %v1556
        %v1588 = vpop.xlane.xlu0 %1587
        %1589 = vadd.xlane.f32.xlu0 %v1558
        %v1590 = vpop.xlane.xlu0 %1589
        %1591 = vadd.xlane.f32.xlu0 %v1560
        %v1592 = vpop.xlane.xlu0 %1591
        %1593 = vadd.xlane.f32.xlu0 %v1562
        %v1594 = vpop.xlane.xlu0 %1593
        %1595 = vadd.xlane.f32.xlu0 %v1564
        %v1596 = vpop.xlane.xlu0 %1595
        %1597 = vadd.xlane.f32.xlu0 %v1566
        %v1598 = vpop.xlane.xlu0 %1597
        %v1599 = vrcp.pop %v1568
        %v1600 = vrcp.pop %v1570
        %v1601 = vrcp.pop %v1572
        %v1602 = vrcp.pop %v1574
        %v1603 = vrcp.pop %v1576
        %v1604 = vrcp.pop %v1578
        %v1605 = vrcp.pop %v1580
        %v1606 = vrcp.pop %v1582
        %v1607 = vrcp.pop %v1584
        %v1608 = vrcp.pop %v1586
        %v1609 = vrcp.pop %v1588
        %v1610 = vrcp.pop %v1590
        %v1611 = vrcp.pop %v1592
        %v1612 = vrcp.pop %v1594
        %v1613 = vrcp.pop %v1596
        %v1614 = vrcp.pop %v1598
        %v1615 = vmul.f32 %v1536, %v1599
        %v1616 = vmul.f32 %v1538, %v1600
        %v1617 = vmul.f32 %v1540, %v1601
        %v1618 = vmul.f32 %v1542, %v1602
        %v1619 = vmul.f32 %v1544, %v1603
        %v1620 = vmul.f32 %v1546, %v1604
        %v1621 = vmul.f32 %v1548, %v1605
        %v1622 = vmul.f32 %v1550, %v1606
        %v1623 = vmul.f32 %v1552, %v1607
        %v1624 = vmul.f32 %v1554, %v1608
        %v1625 = vmul.f32 %v1556, %v1609
        %v1626 = vmul.f32 %v1558, %v1610
        %v1627 = vmul.f32 %v1560, %v1611
        %v1628 = vmul.f32 %v1562, %v1612
        %v1629 = vmul.f32 %v1564, %v1613
        %v1630 = vmul.f32 %v1566, %v1614
        %v1631 = vpack.c.bf16 %v1616, %v1615
        %v1632 = vpack.c.bf16 %v1618, %v1617
        %v1633 = vpack.c.bf16 %v1620, %v1619
        %v1634 = vpack.c.bf16 %v1622, %v1621
        %v1635 = vpack.c.bf16 %v1624, %v1623
        %v1636 = vpack.c.bf16 %v1626, %v1625
        %v1637 = vpack.c.bf16 %v1628, %v1627
        %v1638 = vpack.c.bf16 %v1630, %v1629
        %1647 = vrot.lane.b32.xlu0 %v1012, 96
        %v1648 = vpop.permute.xlu0 %1647
        %1649 = vrot.lane.b32.xlu0 %v1013, 96
        %v1650 = vpop.permute.xlu0 %1649
        %1651 = vrot.lane.b32.xlu0 %v1014, 96
        %v1652 = vpop.permute.xlu0 %1651
        %1653 = vrot.lane.b32.xlu0 %v1015, 96
        %v1654 = vpop.permute.xlu0 %1653
        %1655 = vrot.lane.b32.xlu0 %v1016, 96
        %v1656 = vpop.permute.xlu0 %1655
        %1657 = vrot.lane.b32.xlu0 %v1017, 96
        %v1658 = vpop.permute.xlu0 %1657
        %1659 = vrot.lane.b32.xlu0 %v1018, 96
        %v1660 = vpop.permute.xlu0 %1659
        %1661 = vrot.lane.b32.xlu0 %v1019, 96
        %v1662 = vpop.permute.xlu0 %1661
        %1671 = vmatprep.subr.bf16.mxu0 0
        %1672 = vmatpush1.bf16.msra.mxu0 %v1662
        %1673 = vmatprep.subr.bf16.mxu0 0
        %1674 = vmatpush1.bf16.msra.mxu0 %v1660
        %1675 = vmatprep.subr.bf16.mxu0 0
        %1676 = vmatpush1.bf16.msra.mxu0 %v1658
        %1677 = vmatprep.subr.bf16.mxu0 0
        %1678 = vmatpush1.bf16.msra.mxu0 %v1656
        %1679 = vmatprep.subr.bf16.mxu0 0
        %1680 = vmatpush1.bf16.msra.mxu0 %v1654
        %1681 = vmatprep.subr.bf16.mxu0 0
        %1682 = vmatpush1.bf16.msra.mxu0 %v1652
        %1683 = vmatprep.subr.bf16.mxu0 0
        %1684 = vmatpush1.bf16.msra.mxu0 %v1650
        %1685 = vmatprep.subr.bf16.mxu0 0
        %1686 = vmatpush1.bf16.msra.mxu0 %v1648
        %1687 = vmatprep.subr.bf16.mxu0 0
        %1688 = vmatpush2.bf16.msra.mxu0 0
        %1689 = vmatprep.subr.bf16.mxu0 0
        %1690 = vmatpush2.bf16.msra.mxu0 0
        %1691 = vmatprep.subr.bf16.mxu0 0
        %1692 = vmatpush2.bf16.msra.mxu0 0
        %1693 = vmatprep.subr.bf16.mxu0 0
        %1694 = vmatpush2.bf16.msra.mxu0 0
        %1695 = vmatprep.subr.bf16.mxu0 0
        %1696 = vmatpush2.bf16.msra.mxu0 0
        %1697 = vmatprep.subr.bf16.mxu0 0
        %1698 = vmatpush2.bf16.msra.mxu0 0
        %1699 = vmatprep.subr.bf16.mxu0 0
        %1700 = vmatpush2.bf16.msra.mxu0 0
        %1701 = vmatprep.subr.bf16.mxu0 0
        %1702 = vmatpush2.bf16.msra.mxu0 0
        %1703 = vmatprep.mubr.bf16.mxu0 0
        %1704 = vmatmul.mubr.bf16.gmra.mxu0 %v1631
        %v1705 = vpop.f32.mrf.mxu0
        %v1706 = vadd.f32 0.0, %v1705
        %v1707 = vpop.f32.mrf.mxu0
        %v1708 = vpop.f32.mrf.mxu0
        %v1709 = vadd.f32 0.0, %v1708
        %v1710 = vpop.f32.mrf.mxu0
        %1711 = vmatprep.mubr.bf16.mxu0 0
        %1712 = vmatmul.mubr.bf16.gmra.mxu0 %v1632
        %v1713 = vpop.f32.mrf.mxu0
        %v1714 = vadd.f32 0.0, %v1713
        %v1715 = vpop.f32.mrf.mxu0
        %v1716 = vpop.f32.mrf.mxu0
        %v1717 = vadd.f32 0.0, %v1716
        %v1718 = vpop.f32.mrf.mxu0
        %1719 = vmatprep.mubr.bf16.mxu0 0
        %1720 = vmatmul.mubr.bf16.gmra.mxu0 %v1633
        %v1721 = vpop.f32.mrf.mxu0
        %v1722 = vadd.f32 0.0, %v1721
        %v1723 = vpop.f32.mrf.mxu0
        %v1724 = vpop.f32.mrf.mxu0
        %v1725 = vadd.f32 0.0, %v1724
        %v1726 = vpop.f32.mrf.mxu0
        %1727 = vmatprep.mubr.bf16.mxu0 0
        %1728 = vmatmul.mubr.bf16.gmra.mxu0 %v1634
        %v1729 = vpop.f32.mrf.mxu0
        %v1730 = vadd.f32 0.0, %v1729
        %v1731 = vpop.f32.mrf.mxu0
        %v1732 = vpop.f32.mrf.mxu0
        %v1733 = vadd.f32 0.0, %v1732
        %v1734 = vpop.f32.mrf.mxu0
        %1735 = vmatprep.mubr.bf16.mxu0 0
        %1736 = vmatmul.mubr.bf16.gmra.mxu0 %v1635
        %v1737 = vpop.f32.mrf.mxu0
        %v1738 = vadd.f32 0.0, %v1737
        %v1739 = vpop.f32.mrf.mxu0
        %v1740 = vpop.f32.mrf.mxu0
        %v1741 = vadd.f32 0.0, %v1740
        %v1742 = vpop.f32.mrf.mxu0
        %1743 = vmatprep.mubr.bf16.mxu0 0
        %1744 = vmatmul.mubr.bf16.gmra.mxu0 %v1636
        %v1745 = vpop.f32.mrf.mxu0
        %v1746 = vadd.f32 0.0, %v1745
        %v1747 = vpop.f32.mrf.mxu0
        %v1748 = vpop.f32.mrf.mxu0
        %v1749 = vadd.f32 0.0, %v1748
        %v1750 = vpop.f32.mrf.mxu0
        %1751 = vmatprep.mubr.bf16.mxu0 0
        %1752 = vmatmul.mubr.bf16.gmra.mxu0 %v1637
        %v1753 = vpop.f32.mrf.mxu0
        %v1754 = vadd.f32 0.0, %v1753
        %v1755 = vpop.f32.mrf.mxu0
        %v1756 = vpop.f32.mrf.mxu0
        %v1757 = vadd.f32 0.0, %v1756
        %v1758 = vpop.f32.mrf.mxu0
        %1759 = vmatprep.mubr.bf16.mxu0 0
        %1760 = vmatmul.mubr.bf16.gmra.mxu0 %v1638
        %v1761 = vpop.f32.mrf.mxu0
        %v1762 = vadd.f32 0.0, %v1761
        %v1763 = vpop.f32.mrf.mxu0
        %v1764 = vpop.f32.mrf.mxu0
        %v1765 = vadd.f32 0.0, %v1764
        %v1766 = vpop.f32.mrf.mxu0
        %1767 = vdwg.mxu0
        %v1768 = vld [vmem:[#allocation7 + $0x10] sm:$0xf]
        %v1769 = vld [vmem:[#allocation7 + $0x14] sm:$0xf]
        %v1770 = vld [vmem:[#allocation7 + $0x18] sm:$0xf]
        %v1771 = vld [vmem:[#allocation7 + $0x1c] sm:$0xf]
        %v1772 = vpack.c.bf16 %v1709, %v1706
        %v1773 = vpack.c.bf16 %v1717, %v1714
        %v1774 = vpack.c.bf16 %v1725, %v1722
        %v1775 = vpack.c.bf16 %v1733, %v1730
        %v1776 = vpack.c.bf16 %v1741, %v1738
        %v1777 = vpack.c.bf16 %v1749, %v1746
        %v1778 = vpack.c.bf16 %v1757, %v1754
        %v1779 = vpack.c.bf16 %v1765, %v1762
        %v1784 = vunpack.c.l.b16 %v1768
        %v1785 = vunpack.c.l.b16 %v1769
        %v1786 = vunpack.c.l.b16 %v1770
        %v1787 = vunpack.c.l.b16 %v1771
        %v1788 = vpack.c.b16 %v1785, %v1784
        %v1789 = vpack.c.b16 %v1787, %v1786
        %v1793 = vsel %vm698, %v1772, 0
        %v1796 = vsel %vm698, %v1773, 0
        %v1799 = vsel %vm698, %v1774, 0
        %v1802 = vsel %vm698, %v1775, 0
        %v1805 = vsel %vm698, %v1776, 0
        %v1808 = vsel %vm698, %v1777, 0
        %v1811 = vsel %vm698, %v1778, 0
        %v1814 = vsel %vm698, %v1779, 0
        %1816 = vmatprep.subr.bf16.mxu0 0
        %1817 = vmatpush1.bf16.msra.mxu0 0
        %1818 = vmatprep.subr.bf16.mxu0 0
        %1819 = vmatpush1.bf16.msra.mxu0 0
        %1820 = vmatprep.subr.bf16.mxu0 0
        %1821 = vmatpush1.bf16.msra.mxu0 0
        %1822 = vmatprep.subr.bf16.mxu0 0
        %1823 = vmatpush1.bf16.msra.mxu0 0
        %1824 = vmatprep.subr.bf16.mxu0 0
        %1825 = vmatpush1.bf16.msra.mxu0 0
        %1826 = vmatprep.subr.bf16.mxu0 0
        %1827 = vmatpush1.bf16.msra.mxu0 0
        %1828 = vmatprep.subr.bf16.mxu0 0
        %1829 = vmatpush1.bf16.msra.mxu0 %v1789
        %1830 = vmatprep.subr.bf16.mxu0 0
        %1831 = vmatpush1.bf16.msra.mxu0 %v1788
        %1832 = vmatprep.subr.bf16.mxu0 0
        %1833 = vmatpush2.bf16.msra.mxu0 0
        %1834 = vmatprep.subr.bf16.mxu0 0
        %1835 = vmatpush2.bf16.msra.mxu0 0
        %1836 = vmatprep.subr.bf16.mxu0 0
        %1837 = vmatpush2.bf16.msra.mxu0 0
        %1838 = vmatprep.subr.bf16.mxu0 0
        %1839 = vmatpush2.bf16.msra.mxu0 0
        %1840 = vmatprep.subr.bf16.mxu0 0
        %1841 = vmatpush2.bf16.msra.mxu0 0
        %1842 = vmatprep.subr.bf16.mxu0 0
        %1843 = vmatpush2.bf16.msra.mxu0 0
        %1844 = vmatprep.subr.bf16.mxu0 0
        %1845 = vmatpush2.bf16.msra.mxu0 0
        %1846 = vmatprep.subr.bf16.mxu0 0
        %1847 = vmatpush2.bf16.msra.mxu0 0
        %1848 = vmatprep.mubr.bf16.mxu0 0
        %1849 = vmatmul.mubr.bf16.gmra.mxu0 %v1793
        %v1850 = vpop.f32.mrf.mxu0
        %v1851 = vadd.f32 0.0, %v1850
        %v1852 = vpop.f32.mrf.mxu0
        %v1853 = vpop.f32.mrf.mxu0
        %v1854 = vadd.f32 0.0, %v1853
        %v1855 = vpop.f32.mrf.mxu0
        %1856 = vmatprep.mubr.bf16.mxu0 0
        %1857 = vmatmul.mubr.bf16.gmra.mxu0 %v1796
        %v1858 = vpop.f32.mrf.mxu0
        %v1859 = vadd.f32 0.0, %v1858
        %v1860 = vpop.f32.mrf.mxu0
        %v1861 = vpop.f32.mrf.mxu0
        %v1862 = vadd.f32 0.0, %v1861
        %v1863 = vpop.f32.mrf.mxu0
        %1864 = vmatprep.mubr.bf16.mxu0 0
        %1865 = vmatmul.mubr.bf16.gmra.mxu0 %v1799
        %v1866 = vpop.f32.mrf.mxu0
        %v1867 = vadd.f32 0.0, %v1866
        %v1868 = vpop.f32.mrf.mxu0
        %v1869 = vpop.f32.mrf.mxu0
        %v1870 = vadd.f32 0.0, %v1869
        %v1871 = vpop.f32.mrf.mxu0
        %1872 = vmatprep.mubr.bf16.mxu0 0
        %1873 = vmatmul.mubr.bf16.gmra.mxu0 %v1802
        %v1874 = vpop.f32.mrf.mxu0
        %v1875 = vadd.f32 0.0, %v1874
        %v1876 = vpop.f32.mrf.mxu0
        %v1877 = vpop.f32.mrf.mxu0
        %v1878 = vadd.f32 0.0, %v1877
        %v1879 = vpop.f32.mrf.mxu0
        %1880 = vmatprep.mubr.bf16.mxu0 0
        %1881 = vmatmul.mubr.bf16.gmra.mxu0 %v1805
        %v1882 = vpop.f32.mrf.mxu0
        %v1883 = vadd.f32 0.0, %v1882
        %v1884 = vpop.f32.mrf.mxu0
        %v1885 = vpop.f32.mrf.mxu0
        %v1886 = vadd.f32 0.0, %v1885
        %v1887 = vpop.f32.mrf.mxu0
        %1888 = vmatprep.mubr.bf16.mxu0 0
        %1889 = vmatmul.mubr.bf16.gmra.mxu0 %v1808
        %v1890 = vpop.f32.mrf.mxu0
        %v1891 = vadd.f32 0.0, %v1890
        %v1892 = vpop.f32.mrf.mxu0
        %v1893 = vpop.f32.mrf.mxu0
        %v1894 = vadd.f32 0.0, %v1893
        %v1895 = vpop.f32.mrf.mxu0
        %1896 = vmatprep.mubr.bf16.mxu0 0
        %1897 = vmatmul.mubr.bf16.gmra.mxu0 %v1811
        %v1898 = vpop.f32.mrf.mxu0
        %v1899 = vadd.f32 0.0, %v1898
        %v1900 = vpop.f32.mrf.mxu0
        %v1901 = vpop.f32.mrf.mxu0
        %v1902 = vadd.f32 0.0, %v1901
        %v1903 = vpop.f32.mrf.mxu0
        %1904 = vmatprep.mubr.bf16.mxu0 0
        %1905 = vmatmul.mubr.bf16.gmra.mxu0 %v1814
        %v1906 = vpop.f32.mrf.mxu0
        %v1907 = vadd.f32 0.0, %v1906
        %v1908 = vpop.f32.mrf.mxu0
        %v1909 = vpop.f32.mrf.mxu0
        %v1910 = vadd.f32 0.0, %v1909
        %v1911 = vpop.f32.mrf.mxu0
        %1912 = vdwg.mxu0
        %v1913 = vadd.f32 %v1262, %v1851
        %v1914 = vadd.f32 %v1263, %v1854
        %v1915 = vadd.f32 %v1264, %v1859
        %v1916 = vadd.f32 %v1265, %v1862
        %v1917 = vadd.f32 %v1266, %v1867
        %v1918 = vadd.f32 %v1267, %v1870
        %v1919 = vadd.f32 %v1268, %v1875
        %v1920 = vadd.f32 %v1269, %v1878
        %v1921 = vadd.f32 %v1270, %v1883
        %v1922 = vadd.f32 %v1271, %v1886
        %v1923 = vadd.f32 %v1272, %v1891
        %v1924 = vadd.f32 %v1273, %v1894
        %v1925 = vadd.f32 %v1274, %v1899
        %v1926 = vadd.f32 %v1275, %v1902
        %v1927 = vadd.f32 %v1276, %v1907
        %v1928 = vadd.f32 %v1277, %v1910
        %1929 = vrot.lane.b32.xlu0 %v682, 64
        %v1930 = vpop.permute.xlu0 %1929
        %1931 = vrot.lane.b32.xlu0 %v683, 64
        %v1932 = vpop.permute.xlu0 %1931
        %1933 = vrot.lane.b32.xlu0 %v684, 64
        %v1934 = vpop.permute.xlu0 %1933
        %1935 = vrot.lane.b32.xlu0 %v685, 64
        %v1936 = vpop.permute.xlu0 %1935
        %1937 = vrot.lane.b32.xlu0 %v686, 64
        %v1938 = vpop.permute.xlu0 %1937
        %1939 = vrot.lane.b32.xlu0 %v687, 64
        %v1940 = vpop.permute.xlu0 %1939
        %1941 = vrot.lane.b32.xlu0 %v688, 64
        %v1942 = vpop.permute.xlu0 %1941
        %1943 = vrot.lane.b32.xlu0 %v689, 64
        %v1944 = vpop.permute.xlu0 %1943
        %1945 = vrot.lane.b32.xlu0 %v690, 64
        %v1946 = vpop.permute.xlu0 %1945
        %1947 = vrot.lane.b32.xlu0 %v691, 64
        %v1948 = vpop.permute.xlu0 %1947
        %1949 = vrot.lane.b32.xlu0 %v692, 64
        %v1950 = vpop.permute.xlu0 %1949
        %1951 = vrot.lane.b32.xlu0 %v693, 64
        %v1952 = vpop.permute.xlu0 %1951
        %1953 = vrot.lane.b32.xlu0 %v694, 64
        %v1954 = vpop.permute.xlu0 %1953
        %1955 = vrot.lane.b32.xlu0 %v695, 64
        %v1956 = vpop.permute.xlu0 %1955
        %1957 = vrot.lane.b32.xlu0 %v696, 64
        %v1958 = vpop.permute.xlu0 %1957
        %1959 = vrot.lane.b32.xlu0 %v697, 64
        %v1960 = vpop.permute.xlu0 %1959
        %v1962 = vsel %vm698, %v1930, 0
        %v1965 = vsel %vm698, %v1932, 0
        %v1968 = vsel %vm698, %v1934, 0
        %v1971 = vsel %vm698, %v1936, 0
        %v1974 = vsel %vm698, %v1938, 0
        %v1977 = vsel %vm698, %v1940, 0
        %v1980 = vsel %vm698, %v1942, 0
        %v1983 = vsel %vm698, %v1944, 0
        %v1986 = vsel %vm698, %v1946, 0
        %v1989 = vsel %vm698, %v1948, 0
        %v1992 = vsel %vm698, %v1950, 0
        %v1995 = vsel %vm698, %v1952, 0
        %v1998 = vsel %vm698, %v1954, 0
        %v2001 = vsel %vm698, %v1956, 0
        %v2004 = vsel %vm698, %v1958, 0
        %v2007 = vsel %vm698, %v1960, 0
        %2009 = vmatprep.subr.bf16.mxu0 0
        %2010 = vmatpush1.bf16.xpose.msra.mxu0 %v2007
        %2011 = vmatprep.subr.bf16.mxu0 0
        %2012 = vmatpush1.bf16.xpose.msra.mxu0 %v2004
        %2013 = vmatprep.subr.bf16.mxu0 0
        %2014 = vmatpush1.bf16.xpose.msra.mxu0 %v2001
        %2015 = vmatprep.subr.bf16.mxu0 0
        %2016 = vmatpush1.bf16.xpose.msra.mxu0 %v1998
        %2017 = vmatprep.subr.bf16.mxu0 0
        %2018 = vmatpush1.bf16.xpose.msra.mxu0 %v1995
        %2019 = vmatprep.subr.bf16.mxu0 0
        %2020 = vmatpush1.bf16.xpose.msra.mxu0 %v1992
        %2021 = vmatprep.subr.bf16.mxu0 0
        %2022 = vmatpush1.bf16.xpose.msra.mxu0 %v1989
        %2023 = vmatprep.subr.bf16.mxu0 0
        %2024 = vmatpush1.bf16.xpose.msra.mxu0 %v1986
        %2025 = vmatprep.subr.bf16.mxu0 0
        %2026 = vmatpush2.bf16.xpose.msra.mxu0 0
        %2027 = vmatprep.subr.bf16.mxu0 0
        %2028 = vmatpush2.bf16.xpose.msra.mxu0 0
        %2029 = vmatprep.subr.bf16.mxu0 0
        %2030 = vmatpush2.bf16.xpose.msra.mxu0 0
        %2031 = vmatprep.subr.bf16.mxu0 0
        %2032 = vmatpush2.bf16.xpose.msra.mxu0 0
        %2033 = vmatprep.subr.bf16.mxu0 0
        %2034 = vmatpush2.bf16.xpose.msra.mxu0 0
        %2035 = vmatprep.subr.bf16.mxu0 0
        %2036 = vmatpush2.bf16.xpose.msra.mxu0 0
        %2037 = vmatprep.subr.bf16.mxu0 0
        %2038 = vmatpush2.bf16.xpose.msra.mxu0 0
        %2039 = vmatprep.subr.bf16.mxu0 0
        %2040 = vmatpush2.bf16.xpose.msra.mxu0 0
        %2041 = vmatprep.mubr.bf16.mxu0 0
        %2042 = vmatmul.mubr.bf16.gmra.mxu0 %v1962
        %v2043 = vpop.f32.mrf.mxu0
        %v2044 = vadd.f32 0.0, %v2043
        %v2045 = vpop.f32.mrf.mxu0
        %v2046 = vpop.f32.mrf.mxu0
        %v2047 = vadd.f32 0.0, %v2046
        %v2048 = vpop.f32.mrf.mxu0
        %2049 = vmatprep.mubr.bf16.mxu0 0
        %2050 = vmatmul.mubr.bf16.gmra.mxu0 %v1965
        %v2051 = vpop.f32.mrf.mxu0
        %v2052 = vadd.f32 0.0, %v2051
        %v2053 = vpop.f32.mrf.mxu0
        %v2054 = vpop.f32.mrf.mxu0
        %v2055 = vadd.f32 0.0, %v2054
        %v2056 = vpop.f32.mrf.mxu0
        %2057 = vmatprep.mubr.bf16.mxu0 0
        %2058 = vmatmul.mubr.bf16.gmra.mxu0 %v1968
        %v2059 = vpop.f32.mrf.mxu0
        %v2060 = vadd.f32 0.0, %v2059
        %v2061 = vpop.f32.mrf.mxu0
        %v2062 = vpop.f32.mrf.mxu0
        %v2063 = vadd.f32 0.0, %v2062
        %v2064 = vpop.f32.mrf.mxu0
        %2065 = vmatprep.mubr.bf16.mxu0 0
        %2066 = vmatmul.mubr.bf16.gmra.mxu0 %v1971
        %v2067 = vpop.f32.mrf.mxu0
        %v2068 = vadd.f32 0.0, %v2067
        %v2069 = vpop.f32.mrf.mxu0
        %v2070 = vpop.f32.mrf.mxu0
        %v2071 = vadd.f32 0.0, %v2070
        %v2072 = vpop.f32.mrf.mxu0
        %2073 = vmatprep.mubr.bf16.mxu0 0
        %2074 = vmatmul.mubr.bf16.gmra.mxu0 %v1974
        %v2075 = vpop.f32.mrf.mxu0
        %v2076 = vadd.f32 0.0, %v2075
        %v2077 = vpop.f32.mrf.mxu0
        %v2078 = vpop.f32.mrf.mxu0
        %v2079 = vadd.f32 0.0, %v2078
        %v2080 = vpop.f32.mrf.mxu0
        %2081 = vmatprep.mubr.bf16.mxu0 0
        %2082 = vmatmul.mubr.bf16.gmra.mxu0 %v1977
        %v2083 = vpop.f32.mrf.mxu0
        %v2084 = vadd.f32 0.0, %v2083
        %v2085 = vpop.f32.mrf.mxu0
        %v2086 = vpop.f32.mrf.mxu0
        %v2087 = vadd.f32 0.0, %v2086
        %v2088 = vpop.f32.mrf.mxu0
        %2089 = vmatprep.mubr.bf16.mxu0 0
        %2090 = vmatmul.mubr.bf16.gmra.mxu0 %v1980
        %v2091 = vpop.f32.mrf.mxu0
        %v2092 = vadd.f32 0.0, %v2091
        %v2093 = vpop.f32.mrf.mxu0
        %v2094 = vpop.f32.mrf.mxu0
        %v2095 = vadd.f32 0.0, %v2094
        %v2096 = vpop.f32.mrf.mxu0
        %2097 = vmatprep.mubr.bf16.mxu0 0
        %2098 = vmatmul.mubr.bf16.gmra.mxu0 %v1983
        %v2099 = vpop.f32.mrf.mxu0
        %v2100 = vadd.f32 0.0, %v2099
        %v2101 = vpop.f32.mrf.mxu0
        %v2102 = vpop.f32.mrf.mxu0
        %v2103 = vadd.f32 0.0, %v2102
        %v2104 = vpop.f32.mrf.mxu0
        %2105 = vdwg.mxu0
        %v2106 = vsel %vm659, %v2044, -inf
        %v2107 = vsel %vm660, %v2047, -inf
        %v2108 = vsel %vm661, %v2052, -inf
        %v2109 = vsel %vm662, %v2055, -inf
        %v2110 = vsel %vm663, %v2060, -inf
        %v2111 = vsel %vm664, %v2063, -inf
        %v2112 = vsel %vm665, %v2068, -inf
        %v2113 = vsel %vm666, %v2071, -inf
        %v2114 = vsel %vm667, %v2076, -inf
        %v2115 = vsel %vm668, %v2079, -inf
        %v2116 = vsel %vm669, %v2084, -inf
        %v2117 = vsel %vm670, %v2087, -inf
        %v2118 = vsel %vm671, %v2092, -inf
        %v2119 = vsel %vm672, %v2095, -inf
        %v2120 = vsel %vm673, %v2100, -inf
        %v2121 = vsel %vm674, %v2103, -inf
        %2122 = vmax.xlane.f32.xlu0 %v2106
        %v2123 = vpop.xlane.xlu0 %2122
        %2124 = vmax.xlane.f32.xlu0 %v2107
        %v2125 = vpop.xlane.xlu0 %2124
        %2126 = vmax.xlane.f32.xlu0 %v2108
        %v2127 = vpop.xlane.xlu0 %2126
        %2128 = vmax.xlane.f32.xlu0 %v2109
        %v2129 = vpop.xlane.xlu0 %2128
        %2130 = vmax.xlane.f32.xlu0 %v2110
        %v2131 = vpop.xlane.xlu0 %2130
        %2132 = vmax.xlane.f32.xlu0 %v2111
        %v2133 = vpop.xlane.xlu0 %2132
        %2134 = vmax.xlane.f32.xlu0 %v2112
        %v2135 = vpop.xlane.xlu0 %2134
        %2136 = vmax.xlane.f32.xlu0 %v2113
        %v2137 = vpop.xlane.xlu0 %2136
        %2138 = vmax.xlane.f32.xlu0 %v2114
        %v2139 = vpop.xlane.xlu0 %2138
        %2140 = vmax.xlane.f32.xlu0 %v2115
        %v2141 = vpop.xlane.xlu0 %2140
        %2142 = vmax.xlane.f32.xlu0 %v2116
        %v2143 = vpop.xlane.xlu0 %2142
        %2144 = vmax.xlane.f32.xlu0 %v2117
        %v2145 = vpop.xlane.xlu0 %2144
        %2146 = vmax.xlane.f32.xlu0 %v2118
        %v2147 = vpop.xlane.xlu0 %2146
        %2148 = vmax.xlane.f32.xlu0 %v2119
        %v2149 = vpop.xlane.xlu0 %2148
        %2150 = vmax.xlane.f32.xlu0 %v2120
        %v2151 = vpop.xlane.xlu0 %2150
        %2152 = vmax.xlane.f32.xlu0 %v2121
        %v2153 = vpop.xlane.xlu0 %2152
        %v2154 = vsub.f32 %v2106, %v2123
        %v2155 = vsub.f32 %v2107, %v2125
        %v2156 = vsub.f32 %v2108, %v2127
        %v2157 = vsub.f32 %v2109, %v2129
        %v2158 = vsub.f32 %v2110, %v2131
        %v2159 = vsub.f32 %v2111, %v2133
        %v2160 = vsub.f32 %v2112, %v2135
        %v2161 = vsub.f32 %v2113, %v2137
        %v2162 = vsub.f32 %v2114, %v2139
        %v2163 = vsub.f32 %v2115, %v2141
        %v2164 = vsub.f32 %v2116, %v2143
        %v2165 = vsub.f32 %v2117, %v2145
        %v2166 = vsub.f32 %v2118, %v2147
        %v2167 = vsub.f32 %v2119, %v2149
        %v2168 = vsub.f32 %v2120, %v2151
        %v2169 = vsub.f32 %v2121, %v2153
        %v2170 = vmul.f32 %v2154, 1.442695
        %v2171 = vpow.pop %v2170
        %v2172 = vmul.f32 %v2155, 1.442695
        %v2173 = vpow.pop %v2172
        %v2174 = vmul.f32 %v2156, 1.442695
        %v2175 = vpow.pop %v2174
        %v2176 = vmul.f32 %v2157, 1.442695
        %v2177 = vpow.pop %v2176
        %v2178 = vmul.f32 %v2158, 1.442695
        %v2179 = vpow.pop %v2178
        %v2180 = vmul.f32 %v2159, 1.442695
        %v2181 = vpow.pop %v2180
        %v2182 = vmul.f32 %v2160, 1.442695
        %v2183 = vpow.pop %v2182
        %v2184 = vmul.f32 %v2161, 1.442695
        %v2185 = vpow.pop %v2184
        %v2186 = vmul.f32 %v2162, 1.442695
        %v2187 = vpow.pop %v2186
        %v2188 = vmul.f32 %v2163, 1.442695
        %v2189 = vpow.pop %v2188
        %v2190 = vmul.f32 %v2164, 1.442695
        %v2191 = vpow.pop %v2190
        %v2192 = vmul.f32 %v2165, 1.442695
        %v2193 = vpow.pop %v2192
        %v2194 = vmul.f32 %v2166, 1.442695
        %v2195 = vpow.pop %v2194
        %v2196 = vmul.f32 %v2167, 1.442695
        %v2197 = vpow.pop %v2196
        %v2198 = vmul.f32 %v2168, 1.442695
        %v2199 = vpow.pop %v2198
        %v2200 = vmul.f32 %v2169, 1.442695
        %v2201 = vpow.pop %v2200
        %2202 = vadd.xlane.f32.xlu0 %v2171
        %v2203 = vpop.xlane.xlu0 %2202
        %2204 = vadd.xlane.f32.xlu0 %v2173
        %v2205 = vpop.xlane.xlu0 %2204
        %2206 = vadd.xlane.f32.xlu0 %v2175
        %v2207 = vpop.xlane.xlu0 %2206
        %2208 = vadd.xlane.f32.xlu0 %v2177
        %v2209 = vpop.xlane.xlu0 %2208
        %2210 = vadd.xlane.f32.xlu0 %v2179
        %v2211 = vpop.xlane.xlu0 %2210
        %2212 = vadd.xlane.f32.xlu0 %v2181
        %v2213 = vpop.xlane.xlu0 %2212
        %2214 = vadd.xlane.f32.xlu0 %v2183
        %v2215 = vpop.xlane.xlu0 %2214
        %2216 = vadd.xlane.f32.xlu0 %v2185
        %v2217 = vpop.xlane.xlu0 %2216
        %2218 = vadd.xlane.f32.xlu0 %v2187
        %v2219 = vpop.xlane.xlu0 %2218
        %2220 = vadd.xlane.f32.xlu0 %v2189
        %v2221 = vpop.xlane.xlu0 %2220
        %2222 = vadd.xlane.f32.xlu0 %v2191
        %v2223 = vpop.xlane.xlu0 %2222
        %2224 = vadd.xlane.f32.xlu0 %v2193
        %v2225 = vpop.xlane.xlu0 %2224
        %2226 = vadd.xlane.f32.xlu0 %v2195
        %v2227 = vpop.xlane.xlu0 %2226
        %2228 = vadd.xlane.f32.xlu0 %v2197
        %v2229 = vpop.xlane.xlu0 %2228
        %2230 = vadd.xlane.f32.xlu0 %v2199
        %v2231 = vpop.xlane.xlu0 %2230
        %2232 = vadd.xlane.f32.xlu0 %v2201
        %v2233 = vpop.xlane.xlu0 %2232
        %v2234 = vrcp.pop %v2203
        %v2235 = vrcp.pop %v2205
        %v2236 = vrcp.pop %v2207
        %v2237 = vrcp.pop %v2209
        %v2238 = vrcp.pop %v2211
        %v2239 = vrcp.pop %v2213
        %v2240 = vrcp.pop %v2215
        %v2241 = vrcp.pop %v2217
        %v2242 = vrcp.pop %v2219
        %v2243 = vrcp.pop %v2221
        %v2244 = vrcp.pop %v2223
        %v2245 = vrcp.pop %v2225
        %v2246 = vrcp.pop %v2227
        %v2247 = vrcp.pop %v2229
        %v2248 = vrcp.pop %v2231
        %v2249 = vrcp.pop %v2233
        %v2250 = vmul.f32 %v2171, %v2234
        %v2251 = vmul.f32 %v2173, %v2235
        %v2252 = vmul.f32 %v2175, %v2236
        %v2253 = vmul.f32 %v2177, %v2237
        %v2254 = vmul.f32 %v2179, %v2238
        %v2255 = vmul.f32 %v2181, %v2239
        %v2256 = vmul.f32 %v2183, %v2240
        %v2257 = vmul.f32 %v2185, %v2241
        %v2258 = vmul.f32 %v2187, %v2242
        %v2259 = vmul.f32 %v2189, %v2243
        %v2260 = vmul.f32 %v2191, %v2244
        %v2261 = vmul.f32 %v2193, %v2245
        %v2262 = vmul.f32 %v2195, %v2246
        %v2263 = vmul.f32 %v2197, %v2247
        %v2264 = vmul.f32 %v2199, %v2248
        %v2265 = vmul.f32 %v2201, %v2249
        %v2266 = vpack.c.bf16 %v2251, %v2250
        %v2267 = vpack.c.bf16 %v2253, %v2252
        %v2268 = vpack.c.bf16 %v2255, %v2254
        %v2269 = vpack.c.bf16 %v2257, %v2256
        %v2270 = vpack.c.bf16 %v2259, %v2258
        %v2271 = vpack.c.bf16 %v2261, %v2260
        %v2272 = vpack.c.bf16 %v2263, %v2262
        %v2273 = vpack.c.bf16 %v2265, %v2264
        %2274 = vrot.lane.b32.xlu0 %v1012, 64
        %v2275 = vpop.permute.xlu0 %2274
        %2276 = vrot.lane.b32.xlu0 %v1013, 64
        %v2277 = vpop.permute.xlu0 %2276
        %2278 = vrot.lane.b32.xlu0 %v1014, 64
        %v2279 = vpop.permute.xlu0 %2278
        %2280 = vrot.lane.b32.xlu0 %v1015, 64
        %v2281 = vpop.permute.xlu0 %2280
        %2282 = vrot.lane.b32.xlu0 %v1016, 64
        %v2283 = vpop.permute.xlu0 %2282
        %2284 = vrot.lane.b32.xlu0 %v1017, 64
        %v2285 = vpop.permute.xlu0 %2284
        %2286 = vrot.lane.b32.xlu0 %v1018, 64
        %v2287 = vpop.permute.xlu0 %2286
        %2288 = vrot.lane.b32.xlu0 %v1019, 64
        %v2289 = vpop.permute.xlu0 %2288
        %2298 = vmatprep.subr.bf16.mxu0 0
        %2299 = vmatpush1.bf16.msra.mxu0 %v2289
        %2300 = vmatprep.subr.bf16.mxu0 0
        %2301 = vmatpush1.bf16.msra.mxu0 %v2287
        %2302 = vmatprep.subr.bf16.mxu0 0
        %2303 = vmatpush1.bf16.msra.mxu0 %v2285
        %2304 = vmatprep.subr.bf16.mxu0 0
        %2305 = vmatpush1.bf16.msra.mxu0 %v2283
        %2306 = vmatprep.subr.bf16.mxu0 0
        %2307 = vmatpush1.bf16.msra.mxu0 %v2281
        %2308 = vmatprep.subr.bf16.mxu0 0
        %2309 = vmatpush1.bf16.msra.mxu0 %v2279
        %2310 = vmatprep.subr.bf16.mxu0 0
        %2311 = vmatpush1.bf16.msra.mxu0 %v2277
        %2312 = vmatprep.subr.bf16.mxu0 0
        %2313 = vmatpush1.bf16.msra.mxu0 %v2275
        %2314 = vmatprep.subr.bf16.mxu0 0
        %2315 = vmatpush2.bf16.msra.mxu0 0
        %2316 = vmatprep.subr.bf16.mxu0 0
        %2317 = vmatpush2.bf16.msra.mxu0 0
        %2318 = vmatprep.subr.bf16.mxu0 0
        %2319 = vmatpush2.bf16.msra.mxu0 0
        %2320 = vmatprep.subr.bf16.mxu0 0
        %2321 = vmatpush2.bf16.msra.mxu0 0
        %2322 = vmatprep.subr.bf16.mxu0 0
        %2323 = vmatpush2.bf16.msra.mxu0 0
        %2324 = vmatprep.subr.bf16.mxu0 0
        %2325 = vmatpush2.bf16.msra.mxu0 0
        %2326 = vmatprep.subr.bf16.mxu0 0
        %2327 = vmatpush2.bf16.msra.mxu0 0
        %2328 = vmatprep.subr.bf16.mxu0 0
        %2329 = vmatpush2.bf16.msra.mxu0 0
        %2330 = vmatprep.mubr.bf16.mxu0 0
        %2331 = vmatmul.mubr.bf16.gmra.mxu0 %v2266
        %v2332 = vpop.f32.mrf.mxu0
        %v2333 = vadd.f32 0.0, %v2332
        %v2334 = vpop.f32.mrf.mxu0
        %v2335 = vpop.f32.mrf.mxu0
        %v2336 = vadd.f32 0.0, %v2335
        %v2337 = vpop.f32.mrf.mxu0
        %2338 = vmatprep.mubr.bf16.mxu0 0
        %2339 = vmatmul.mubr.bf16.gmra.mxu0 %v2267
        %v2340 = vpop.f32.mrf.mxu0
        %v2341 = vadd.f32 0.0, %v2340
        %v2342 = vpop.f32.mrf.mxu0
        %v2343 = vpop.f32.mrf.mxu0
        %v2344 = vadd.f32 0.0, %v2343
        %v2345 = vpop.f32.mrf.mxu0
        %2346 = vmatprep.mubr.bf16.mxu0 0
        %2347 = vmatmul.mubr.bf16.gmra.mxu0 %v2268
        %v2348 = vpop.f32.mrf.mxu0
        %v2349 = vadd.f32 0.0, %v2348
        %v2350 = vpop.f32.mrf.mxu0
        %v2351 = vpop.f32.mrf.mxu0
        %v2352 = vadd.f32 0.0, %v2351
        %v2353 = vpop.f32.mrf.mxu0
        %2354 = vmatprep.mubr.bf16.mxu0 0
        %2355 = vmatmul.mubr.bf16.gmra.mxu0 %v2269
        %v2356 = vpop.f32.mrf.mxu0
        %v2357 = vadd.f32 0.0, %v2356
        %v2358 = vpop.f32.mrf.mxu0
        %v2359 = vpop.f32.mrf.mxu0
        %v2360 = vadd.f32 0.0, %v2359
        %v2361 = vpop.f32.mrf.mxu0
        %2362 = vmatprep.mubr.bf16.mxu0 0
        %2363 = vmatmul.mubr.bf16.gmra.mxu0 %v2270
        %v2364 = vpop.f32.mrf.mxu0
        %v2365 = vadd.f32 0.0, %v2364
        %v2366 = vpop.f32.mrf.mxu0
        %v2367 = vpop.f32.mrf.mxu0
        %v2368 = vadd.f32 0.0, %v2367
        %v2369 = vpop.f32.mrf.mxu0
        %2370 = vmatprep.mubr.bf16.mxu0 0
        %2371 = vmatmul.mubr.bf16.gmra.mxu0 %v2271
        %v2372 = vpop.f32.mrf.mxu0
        %v2373 = vadd.f32 0.0, %v2372
        %v2374 = vpop.f32.mrf.mxu0
        %v2375 = vpop.f32.mrf.mxu0
        %v2376 = vadd.f32 0.0, %v2375
        %v2377 = vpop.f32.mrf.mxu0
        %2378 = vmatprep.mubr.bf16.mxu0 0
        %2379 = vmatmul.mubr.bf16.gmra.mxu0 %v2272
        %v2380 = vpop.f32.mrf.mxu0
        %v2381 = vadd.f32 0.0, %v2380
        %v2382 = vpop.f32.mrf.mxu0
        %v2383 = vpop.f32.mrf.mxu0
        %v2384 = vadd.f32 0.0, %v2383
        %v2385 = vpop.f32.mrf.mxu0
        %2386 = vmatprep.mubr.bf16.mxu0 0
        %2387 = vmatmul.mubr.bf16.gmra.mxu0 %v2273
        %v2388 = vpop.f32.mrf.mxu0
        %v2389 = vadd.f32 0.0, %v2388
        %v2390 = vpop.f32.mrf.mxu0
        %v2391 = vpop.f32.mrf.mxu0
        %v2392 = vadd.f32 0.0, %v2391
        %v2393 = vpop.f32.mrf.mxu0
        %2394 = vdwg.mxu0
        %v2395 = vld [vmem:[#allocation7 + $0x20] sm:$0xf]
        %v2396 = vld [vmem:[#allocation7 + $0x24] sm:$0xf]
        %v2397 = vld [vmem:[#allocation7 + $0x28] sm:$0xf]
        %v2398 = vld [vmem:[#allocation7 + $0x2c] sm:$0xf]
        %v2399 = vpack.c.bf16 %v2336, %v2333
        %v2400 = vpack.c.bf16 %v2344, %v2341
        %v2401 = vpack.c.bf16 %v2352, %v2349
        %v2402 = vpack.c.bf16 %v2360, %v2357
        %v2403 = vpack.c.bf16 %v2368, %v2365
        %v2404 = vpack.c.bf16 %v2376, %v2373
        %v2405 = vpack.c.bf16 %v2384, %v2381
        %v2406 = vpack.c.bf16 %v2392, %v2389
        %v2411 = vunpack.c.l.b16 %v2395
        %v2412 = vunpack.c.l.b16 %v2396
        %v2413 = vunpack.c.l.b16 %v2397
        %v2414 = vunpack.c.l.b16 %v2398
        %v2415 = vpack.c.b16 %v2412, %v2411
        %v2416 = vpack.c.b16 %v2414, %v2413
        %v2420 = vsel %vm698, %v2399, 0
        %v2423 = vsel %vm698, %v2400, 0
        %v2426 = vsel %vm698, %v2401, 0
        %v2429 = vsel %vm698, %v2402, 0
        %v2432 = vsel %vm698, %v2403, 0
        %v2435 = vsel %vm698, %v2404, 0
        %v2438 = vsel %vm698, %v2405, 0
        %v2441 = vsel %vm698, %v2406, 0
        %2443 = vmatprep.subr.bf16.mxu0 0
        %2444 = vmatpush1.bf16.msra.mxu0 0
        %2445 = vmatprep.subr.bf16.mxu0 0
        %2446 = vmatpush1.bf16.msra.mxu0 0
        %2447 = vmatprep.subr.bf16.mxu0 0
        %2448 = vmatpush1.bf16.msra.mxu0 0
        %2449 = vmatprep.subr.bf16.mxu0 0
        %2450 = vmatpush1.bf16.msra.mxu0 0
        %2451 = vmatprep.subr.bf16.mxu0 0
        %2452 = vmatpush1.bf16.msra.mxu0 0
        %2453 = vmatprep.subr.bf16.mxu0 0
        %2454 = vmatpush1.bf16.msra.mxu0 0
        %2455 = vmatprep.subr.bf16.mxu0 0
        %2456 = vmatpush1.bf16.msra.mxu0 %v2416
        %2457 = vmatprep.subr.bf16.mxu0 0
        %2458 = vmatpush1.bf16.msra.mxu0 %v2415
        %2459 = vmatprep.subr.bf16.mxu0 0
        %2460 = vmatpush2.bf16.msra.mxu0 0
        %2461 = vmatprep.subr.bf16.mxu0 0
        %2462 = vmatpush2.bf16.msra.mxu0 0
        %2463 = vmatprep.subr.bf16.mxu0 0
        %2464 = vmatpush2.bf16.msra.mxu0 0
        %2465 = vmatprep.subr.bf16.mxu0 0
        %2466 = vmatpush2.bf16.msra.mxu0 0
        %2467 = vmatprep.subr.bf16.mxu0 0
        %2468 = vmatpush2.bf16.msra.mxu0 0
        %2469 = vmatprep.subr.bf16.mxu0 0
        %2470 = vmatpush2.bf16.msra.mxu0 0
        %2471 = vmatprep.subr.bf16.mxu0 0
        %2472 = vmatpush2.bf16.msra.mxu0 0
        %2473 = vmatprep.subr.bf16.mxu0 0
        %2474 = vmatpush2.bf16.msra.mxu0 0
        %2475 = vmatprep.mubr.bf16.mxu0 0
        %2476 = vmatmul.mubr.bf16.gmra.mxu0 %v2420
        %v2477 = vpop.f32.mrf.mxu0
        %v2478 = vadd.f32 0.0, %v2477
        %v2479 = vpop.f32.mrf.mxu0
        %v2480 = vpop.f32.mrf.mxu0
        %v2481 = vadd.f32 0.0, %v2480
        %v2482 = vpop.f32.mrf.mxu0
        %2483 = vmatprep.mubr.bf16.mxu0 0
        %2484 = vmatmul.mubr.bf16.gmra.mxu0 %v2423
        %v2485 = vpop.f32.mrf.mxu0
        %v2486 = vadd.f32 0.0, %v2485
        %v2487 = vpop.f32.mrf.mxu0
        %v2488 = vpop.f32.mrf.mxu0
        %v2489 = vadd.f32 0.0, %v2488
        %v2490 = vpop.f32.mrf.mxu0
        %2491 = vmatprep.mubr.bf16.mxu0 0
        %2492 = vmatmul.mubr.bf16.gmra.mxu0 %v2426
        %v2493 = vpop.f32.mrf.mxu0
        %v2494 = vadd.f32 0.0, %v2493
        %v2495 = vpop.f32.mrf.mxu0
        %v2496 = vpop.f32.mrf.mxu0
        %v2497 = vadd.f32 0.0, %v2496
        %v2498 = vpop.f32.mrf.mxu0
        %2499 = vmatprep.mubr.bf16.mxu0 0
        %2500 = vmatmul.mubr.bf16.gmra.mxu0 %v2429
        %v2501 = vpop.f32.mrf.mxu0
        %v2502 = vadd.f32 0.0, %v2501
        %v2503 = vpop.f32.mrf.mxu0
        %v2504 = vpop.f32.mrf.mxu0
        %v2505 = vadd.f32 0.0, %v2504
        %v2506 = vpop.f32.mrf.mxu0
        %2507 = vmatprep.mubr.bf16.mxu0 0
        %2508 = vmatmul.mubr.bf16.gmra.mxu0 %v2432
        %v2509 = vpop.f32.mrf.mxu0
        %v2510 = vadd.f32 0.0, %v2509
        %v2511 = vpop.f32.mrf.mxu0
        %v2512 = vpop.f32.mrf.mxu0
        %v2513 = vadd.f32 0.0, %v2512
        %v2514 = vpop.f32.mrf.mxu0
        %2515 = vmatprep.mubr.bf16.mxu0 0
        %2516 = vmatmul.mubr.bf16.gmra.mxu0 %v2435
        %v2517 = vpop.f32.mrf.mxu0
        %v2518 = vadd.f32 0.0, %v2517
        %v2519 = vpop.f32.mrf.mxu0
        %v2520 = vpop.f32.mrf.mxu0
        %v2521 = vadd.f32 0.0, %v2520
        %v2522 = vpop.f32.mrf.mxu0
        %2523 = vmatprep.mubr.bf16.mxu0 0
        %2524 = vmatmul.mubr.bf16.gmra.mxu0 %v2438
        %v2525 = vpop.f32.mrf.mxu0
        %v2526 = vadd.f32 0.0, %v2525
        %v2527 = vpop.f32.mrf.mxu0
        %v2528 = vpop.f32.mrf.mxu0
        %v2529 = vadd.f32 0.0, %v2528
        %v2530 = vpop.f32.mrf.mxu0
        %2531 = vmatprep.mubr.bf16.mxu0 0
        %2532 = vmatmul.mubr.bf16.gmra.mxu0 %v2441
        %v2533 = vpop.f32.mrf.mxu0
        %v2534 = vadd.f32 0.0, %v2533
        %v2535 = vpop.f32.mrf.mxu0
        %v2536 = vpop.f32.mrf.mxu0
        %v2537 = vadd.f32 0.0, %v2536
        %v2538 = vpop.f32.mrf.mxu0
        %2539 = vdwg.mxu0
        %v2540 = vadd.f32 %v1913, %v2478
        %v2541 = vadd.f32 %v1914, %v2481
        %v2542 = vadd.f32 %v1915, %v2486
        %v2543 = vadd.f32 %v1916, %v2489
        %v2544 = vadd.f32 %v1917, %v2494
        %v2545 = vadd.f32 %v1918, %v2497
        %v2546 = vadd.f32 %v1919, %v2502
        %v2547 = vadd.f32 %v1920, %v2505
        %v2548 = vadd.f32 %v1921, %v2510
        %v2549 = vadd.f32 %v1922, %v2513
        %v2550 = vadd.f32 %v1923, %v2518
        %v2551 = vadd.f32 %v1924, %v2521
        %v2552 = vadd.f32 %v1925, %v2526
        %v2553 = vadd.f32 %v1926, %v2529
        %v2554 = vadd.f32 %v1927, %v2534
        %v2555 = vadd.f32 %v1928, %v2537
        %2556 = vrot.lane.b32.xlu0 %v682, 32
        %v2557 = vpop.permute.xlu0 %2556
        %2558 = vrot.lane.b32.xlu0 %v683, 32
        %v2559 = vpop.permute.xlu0 %2558
        %2560 = vrot.lane.b32.xlu0 %v684, 32
        %v2561 = vpop.permute.xlu0 %2560
        %2562 = vrot.lane.b32.xlu0 %v685, 32
        %v2563 = vpop.permute.xlu0 %2562
        %2564 = vrot.lane.b32.xlu0 %v686, 32
        %v2565 = vpop.permute.xlu0 %2564
        %2566 = vrot.lane.b32.xlu0 %v687, 32
        %v2567 = vpop.permute.xlu0 %2566
        %2568 = vrot.lane.b32.xlu0 %v688, 32
        %v2569 = vpop.permute.xlu0 %2568
        %2570 = vrot.lane.b32.xlu0 %v689, 32
        %v2571 = vpop.permute.xlu0 %2570
        %2572 = vrot.lane.b32.xlu0 %v690, 32
        %v2573 = vpop.permute.xlu0 %2572
        %2574 = vrot.lane.b32.xlu0 %v691, 32
        %v2575 = vpop.permute.xlu0 %2574
        %2576 = vrot.lane.b32.xlu0 %v692, 32
        %v2577 = vpop.permute.xlu0 %2576
        %2578 = vrot.lane.b32.xlu0 %v693, 32
        %v2579 = vpop.permute.xlu0 %2578
        %2580 = vrot.lane.b32.xlu0 %v694, 32
        %v2581 = vpop.permute.xlu0 %2580
        %2582 = vrot.lane.b32.xlu0 %v695, 32
        %v2583 = vpop.permute.xlu0 %2582
        %2584 = vrot.lane.b32.xlu0 %v696, 32
        %v2585 = vpop.permute.xlu0 %2584
        %2586 = vrot.lane.b32.xlu0 %v697, 32
        %v2587 = vpop.permute.xlu0 %2586
        %v2589 = vsel %vm698, %v2557, 0
        %v2592 = vsel %vm698, %v2559, 0
        %v2595 = vsel %vm698, %v2561, 0
        %v2598 = vsel %vm698, %v2563, 0
        %v2601 = vsel %vm698, %v2565, 0
        %v2604 = vsel %vm698, %v2567, 0
        %v2607 = vsel %vm698, %v2569, 0
        %v2610 = vsel %vm698, %v2571, 0
        %v2613 = vsel %vm698, %v2573, 0
        %v2616 = vsel %vm698, %v2575, 0
        %v2619 = vsel %vm698, %v2577, 0
        %v2622 = vsel %vm698, %v2579, 0
        %v2625 = vsel %vm698, %v2581, 0
        %v2628 = vsel %vm698, %v2583, 0
        %v2631 = vsel %vm698, %v2585, 0
        %v2634 = vsel %vm698, %v2587, 0
        %2636 = vmatprep.subr.bf16.mxu0 0
        %2637 = vmatpush1.bf16.xpose.msra.mxu0 %v2634
        %2638 = vmatprep.subr.bf16.mxu0 0
        %2639 = vmatpush1.bf16.xpose.msra.mxu0 %v2631
        %2640 = vmatprep.subr.bf16.mxu0 0
        %2641 = vmatpush1.bf16.xpose.msra.mxu0 %v2628
        %2642 = vmatprep.subr.bf16.mxu0 0
        %2643 = vmatpush1.bf16.xpose.msra.mxu0 %v2625
        %2644 = vmatprep.subr.bf16.mxu0 0
        %2645 = vmatpush1.bf16.xpose.msra.mxu0 %v2622
        %2646 = vmatprep.subr.bf16.mxu0 0
        %2647 = vmatpush1.bf16.xpose.msra.mxu0 %v2619
        %2648 = vmatprep.subr.bf16.mxu0 0
        %2649 = vmatpush1.bf16.xpose.msra.mxu0 %v2616
        %2650 = vmatprep.subr.bf16.mxu0 0
        %2651 = vmatpush1.bf16.xpose.msra.mxu0 %v2613
        %2652 = vmatprep.subr.bf16.mxu0 0
        %2653 = vmatpush2.bf16.xpose.msra.mxu0 0
        %2654 = vmatprep.subr.bf16.mxu0 0
        %2655 = vmatpush2.bf16.xpose.msra.mxu0 0
        %2656 = vmatprep.subr.bf16.mxu0 0
        %2657 = vmatpush2.bf16.xpose.msra.mxu0 0
        %2658 = vmatprep.subr.bf16.mxu0 0
        %2659 = vmatpush2.bf16.xpose.msra.mxu0 0
        %2660 = vmatprep.subr.bf16.mxu0 0
        %2661 = vmatpush2.bf16.xpose.msra.mxu0 0
        %2662 = vmatprep.subr.bf16.mxu0 0
        %2663 = vmatpush2.bf16.xpose.msra.mxu0 0
        %2664 = vmatprep.subr.bf16.mxu0 0
        %2665 = vmatpush2.bf16.xpose.msra.mxu0 0
        %2666 = vmatprep.subr.bf16.mxu0 0
        %2667 = vmatpush2.bf16.xpose.msra.mxu0 0
        %2668 = vmatprep.mubr.bf16.mxu0 0
        %2669 = vmatmul.mubr.bf16.gmra.mxu0 %v2589
        %v2670 = vpop.f32.mrf.mxu0
        %v2671 = vadd.f32 0.0, %v2670
        %v2672 = vpop.f32.mrf.mxu0
        %v2673 = vpop.f32.mrf.mxu0
        %v2674 = vadd.f32 0.0, %v2673
        %v2675 = vpop.f32.mrf.mxu0
        %2676 = vmatprep.mubr.bf16.mxu0 0
        %2677 = vmatmul.mubr.bf16.gmra.mxu0 %v2592
        %v2678 = vpop.f32.mrf.mxu0
        %v2679 = vadd.f32 0.0, %v2678
        %v2680 = vpop.f32.mrf.mxu0
        %v2681 = vpop.f32.mrf.mxu0
        %v2682 = vadd.f32 0.0, %v2681
        %v2683 = vpop.f32.mrf.mxu0
        %2684 = vmatprep.mubr.bf16.mxu0 0
        %2685 = vmatmul.mubr.bf16.gmra.mxu0 %v2595
        %v2686 = vpop.f32.mrf.mxu0
        %v2687 = vadd.f32 0.0, %v2686
        %v2688 = vpop.f32.mrf.mxu0
        %v2689 = vpop.f32.mrf.mxu0
        %v2690 = vadd.f32 0.0, %v2689
        %v2691 = vpop.f32.mrf.mxu0
        %2692 = vmatprep.mubr.bf16.mxu0 0
        %2693 = vmatmul.mubr.bf16.gmra.mxu0 %v2598
        %v2694 = vpop.f32.mrf.mxu0
        %v2695 = vadd.f32 0.0, %v2694
        %v2696 = vpop.f32.mrf.mxu0
        %v2697 = vpop.f32.mrf.mxu0
        %v2698 = vadd.f32 0.0, %v2697
        %v2699 = vpop.f32.mrf.mxu0
        %2700 = vmatprep.mubr.bf16.mxu0 0
        %2701 = vmatmul.mubr.bf16.gmra.mxu0 %v2601
        %v2702 = vpop.f32.mrf.mxu0
        %v2703 = vadd.f32 0.0, %v2702
        %v2704 = vpop.f32.mrf.mxu0
        %v2705 = vpop.f32.mrf.mxu0
        %v2706 = vadd.f32 0.0, %v2705
        %v2707 = vpop.f32.mrf.mxu0
        %2708 = vmatprep.mubr.bf16.mxu0 0
        %2709 = vmatmul.mubr.bf16.gmra.mxu0 %v2604
        %v2710 = vpop.f32.mrf.mxu0
        %v2711 = vadd.f32 0.0, %v2710
        %v2712 = vpop.f32.mrf.mxu0
        %v2713 = vpop.f32.mrf.mxu0
        %v2714 = vadd.f32 0.0, %v2713
        %v2715 = vpop.f32.mrf.mxu0
        %2716 = vmatprep.mubr.bf16.mxu0 0
        %2717 = vmatmul.mubr.bf16.gmra.mxu0 %v2607
        %v2718 = vpop.f32.mrf.mxu0
        %v2719 = vadd.f32 0.0, %v2718
        %v2720 = vpop.f32.mrf.mxu0
        %v2721 = vpop.f32.mrf.mxu0
        %v2722 = vadd.f32 0.0, %v2721
        %v2723 = vpop.f32.mrf.mxu0
        %2724 = vmatprep.mubr.bf16.mxu0 0
        %2725 = vmatmul.mubr.bf16.gmra.mxu0 %v2610
        %v2726 = vpop.f32.mrf.mxu0
        %v2727 = vadd.f32 0.0, %v2726
        %v2728 = vpop.f32.mrf.mxu0
        %v2729 = vpop.f32.mrf.mxu0
        %v2730 = vadd.f32 0.0, %v2729
        %v2731 = vpop.f32.mrf.mxu0
        %2732 = vdwg.mxu0
        %v2733 = vsel %vm659, %v2671, -inf
        %v2734 = vsel %vm660, %v2674, -inf
        %v2735 = vsel %vm661, %v2679, -inf
        %v2736 = vsel %vm662, %v2682, -inf
        %v2737 = vsel %vm663, %v2687, -inf
        %v2738 = vsel %vm664, %v2690, -inf
        %v2739 = vsel %vm665, %v2695, -inf
        %v2740 = vsel %vm666, %v2698, -inf
        %v2741 = vsel %vm667, %v2703, -inf
        %v2742 = vsel %vm668, %v2706, -inf
        %v2743 = vsel %vm669, %v2711, -inf
        %v2744 = vsel %vm670, %v2714, -inf
        %v2745 = vsel %vm671, %v2719, -inf
        %v2746 = vsel %vm672, %v2722, -inf
        %v2747 = vsel %vm673, %v2727, -inf
        %v2748 = vsel %vm674, %v2730, -inf
        %2749 = vmax.xlane.f32.xlu0 %v2733
        %v2750 = vpop.xlane.xlu0 %2749
        %2751 = vmax.xlane.f32.xlu0 %v2734
        %v2752 = vpop.xlane.xlu0 %2751
        %2753 = vmax.xlane.f32.xlu0 %v2735
        %v2754 = vpop.xlane.xlu0 %2753
        %2755 = vmax.xlane.f32.xlu0 %v2736
        %v2756 = vpop.xlane.xlu0 %2755
        %2757 = vmax.xlane.f32.xlu0 %v2737
        %v2758 = vpop.xlane.xlu0 %2757
        %2759 = vmax.xlane.f32.xlu0 %v2738
        %v2760 = vpop.xlane.xlu0 %2759
        %2761 = vmax.xlane.f32.xlu0 %v2739
        %v2762 = vpop.xlane.xlu0 %2761
        %2763 = vmax.xlane.f32.xlu0 %v2740
        %v2764 = vpop.xlane.xlu0 %2763
        %2765 = vmax.xlane.f32.xlu0 %v2741
        %v2766 = vpop.xlane.xlu0 %2765
        %2767 = vmax.xlane.f32.xlu0 %v2742
        %v2768 = vpop.xlane.xlu0 %2767
        %2769 = vmax.xlane.f32.xlu0 %v2743
        %v2770 = vpop.xlane.xlu0 %2769
        %2771 = vmax.xlane.f32.xlu0 %v2744
        %v2772 = vpop.xlane.xlu0 %2771
        %2773 = vmax.xlane.f32.xlu0 %v2745
        %v2774 = vpop.xlane.xlu0 %2773
        %2775 = vmax.xlane.f32.xlu0 %v2746
        %v2776 = vpop.xlane.xlu0 %2775
        %2777 = vmax.xlane.f32.xlu0 %v2747
        %v2778 = vpop.xlane.xlu0 %2777
        %2779 = vmax.xlane.f32.xlu0 %v2748
        %v2780 = vpop.xlane.xlu0 %2779
        %v2781 = vsub.f32 %v2733, %v2750
        %v2782 = vsub.f32 %v2734, %v2752
        %v2783 = vsub.f32 %v2735, %v2754
        %v2784 = vsub.f32 %v2736, %v2756
        %v2785 = vsub.f32 %v2737, %v2758
        %v2786 = vsub.f32 %v2738, %v2760
        %v2787 = vsub.f32 %v2739, %v2762
        %v2788 = vsub.f32 %v2740, %v2764
        %v2789 = vsub.f32 %v2741, %v2766
        %v2790 = vsub.f32 %v2742, %v2768
        %v2791 = vsub.f32 %v2743, %v2770
        %v2792 = vsub.f32 %v2744, %v2772
        %v2793 = vsub.f32 %v2745, %v2774
        %v2794 = vsub.f32 %v2746, %v2776
        %v2795 = vsub.f32 %v2747, %v2778
        %v2796 = vsub.f32 %v2748, %v2780
        %v2797 = vmul.f32 %v2781, 1.442695
        %v2798 = vpow.pop %v2797
        %v2799 = vmul.f32 %v2782, 1.442695
        %v2800 = vpow.pop %v2799
        %v2801 = vmul.f32 %v2783, 1.442695
        %v2802 = vpow.pop %v2801
        %v2803 = vmul.f32 %v2784, 1.442695
        %v2804 = vpow.pop %v2803
        %v2805 = vmul.f32 %v2785, 1.442695
        %v2806 = vpow.pop %v2805
        %v2807 = vmul.f32 %v2786, 1.442695
        %v2808 = vpow.pop %v2807
        %v2809 = vmul.f32 %v2787, 1.442695
        %v2810 = vpow.pop %v2809
        %v2811 = vmul.f32 %v2788, 1.442695
        %v2812 = vpow.pop %v2811
        %v2813 = vmul.f32 %v2789, 1.442695
        %v2814 = vpow.pop %v2813
        %v2815 = vmul.f32 %v2790, 1.442695
        %v2816 = vpow.pop %v2815
        %v2817 = vmul.f32 %v2791, 1.442695
        %v2818 = vpow.pop %v2817
        %v2819 = vmul.f32 %v2792, 1.442695
        %v2820 = vpow.pop %v2819
        %v2821 = vmul.f32 %v2793, 1.442695
        %v2822 = vpow.pop %v2821
        %v2823 = vmul.f32 %v2794, 1.442695
        %v2824 = vpow.pop %v2823
        %v2825 = vmul.f32 %v2795, 1.442695
        %v2826 = vpow.pop %v2825
        %v2827 = vmul.f32 %v2796, 1.442695
        %v2828 = vpow.pop %v2827
        %2829 = vadd.xlane.f32.xlu0 %v2798
        %v2830 = vpop.xlane.xlu0 %2829
        %2831 = vadd.xlane.f32.xlu0 %v2800
        %v2832 = vpop.xlane.xlu0 %2831
        %2833 = vadd.xlane.f32.xlu0 %v2802
        %v2834 = vpop.xlane.xlu0 %2833
        %2835 = vadd.xlane.f32.xlu0 %v2804
        %v2836 = vpop.xlane.xlu0 %2835
        %2837 = vadd.xlane.f32.xlu0 %v2806
        %v2838 = vpop.xlane.xlu0 %2837
        %2839 = vadd.xlane.f32.xlu0 %v2808
        %v2840 = vpop.xlane.xlu0 %2839
        %2841 = vadd.xlane.f32.xlu0 %v2810
        %v2842 = vpop.xlane.xlu0 %2841
        %2843 = vadd.xlane.f32.xlu0 %v2812
        %v2844 = vpop.xlane.xlu0 %2843
        %2845 = vadd.xlane.f32.xlu0 %v2814
        %v2846 = vpop.xlane.xlu0 %2845
        %2847 = vadd.xlane.f32.xlu0 %v2816
        %v2848 = vpop.xlane.xlu0 %2847
        %2849 = vadd.xlane.f32.xlu0 %v2818
        %v2850 = vpop.xlane.xlu0 %2849
        %2851 = vadd.xlane.f32.xlu0 %v2820
        %v2852 = vpop.xlane.xlu0 %2851
        %2853 = vadd.xlane.f32.xlu0 %v2822
        %v2854 = vpop.xlane.xlu0 %2853
        %2855 = vadd.xlane.f32.xlu0 %v2824
        %v2856 = vpop.xlane.xlu0 %2855
        %2857 = vadd.xlane.f32.xlu0 %v2826
        %v2858 = vpop.xlane.xlu0 %2857
        %2859 = vadd.xlane.f32.xlu0 %v2828
        %v2860 = vpop.xlane.xlu0 %2859
        %v2861 = vrcp.pop %v2830
        %v2862 = vrcp.pop %v2832
        %v2863 = vrcp.pop %v2834
        %v2864 = vrcp.pop %v2836
        %v2865 = vrcp.pop %v2838
        %v2866 = vrcp.pop %v2840
        %v2867 = vrcp.pop %v2842
        %v2868 = vrcp.pop %v2844
        %v2869 = vrcp.pop %v2846
        %v2870 = vrcp.pop %v2848
        %v2871 = vrcp.pop %v2850
        %v2872 = vrcp.pop %v2852
        %v2873 = vrcp.pop %v2854
        %v2874 = vrcp.pop %v2856
        %v2875 = vrcp.pop %v2858
        %v2876 = vrcp.pop %v2860
        %v2877 = vmul.f32 %v2798, %v2861
        %v2878 = vmul.f32 %v2800, %v2862
        %v2879 = vmul.f32 %v2802, %v2863
        %v2880 = vmul.f32 %v2804, %v2864
        %v2881 = vmul.f32 %v2806, %v2865
        %v2882 = vmul.f32 %v2808, %v2866
        %v2883 = vmul.f32 %v2810, %v2867
        %v2884 = vmul.f32 %v2812, %v2868
        %v2885 = vmul.f32 %v2814, %v2869
        %v2886 = vmul.f32 %v2816, %v2870
        %v2887 = vmul.f32 %v2818, %v2871
        %v2888 = vmul.f32 %v2820, %v2872
        %v2889 = vmul.f32 %v2822, %v2873
        %v2890 = vmul.f32 %v2824, %v2874
        %v2891 = vmul.f32 %v2826, %v2875
        %v2892 = vmul.f32 %v2828, %v2876
        %v2893 = vpack.c.bf16 %v2878, %v2877
        %v2894 = vpack.c.bf16 %v2880, %v2879
        %v2895 = vpack.c.bf16 %v2882, %v2881
        %v2896 = vpack.c.bf16 %v2884, %v2883
        %v2897 = vpack.c.bf16 %v2886, %v2885
        %v2898 = vpack.c.bf16 %v2888, %v2887
        %v2899 = vpack.c.bf16 %v2890, %v2889
        %v2900 = vpack.c.bf16 %v2892, %v2891
        %2901 = vrot.lane.b32.xlu0 %v1012, 32
        %v2902 = vpop.permute.xlu0 %2901
        %2903 = vrot.lane.b32.xlu0 %v1013, 32
        %v2904 = vpop.permute.xlu0 %2903
        %2905 = vrot.lane.b32.xlu0 %v1014, 32
        %v2906 = vpop.permute.xlu0 %2905
        %2907 = vrot.lane.b32.xlu0 %v1015, 32
        %v2908 = vpop.permute.xlu0 %2907
        %2909 = vrot.lane.b32.xlu0 %v1016, 32
        %v2910 = vpop.permute.xlu0 %2909
        %2911 = vrot.lane.b32.xlu0 %v1017, 32
        %v2912 = vpop.permute.xlu0 %2911
        %2913 = vrot.lane.b32.xlu0 %v1018, 32
        %v2914 = vpop.permute.xlu0 %2913
        %2915 = vrot.lane.b32.xlu0 %v1019, 32
        %v2916 = vpop.permute.xlu0 %2915
        %2925 = vmatprep.subr.bf16.mxu0 0
        %2926 = vmatpush1.bf16.msra.mxu0 %v2916
        %2927 = vmatprep.subr.bf16.mxu0 0
        %2928 = vmatpush1.bf16.msra.mxu0 %v2914
        %2929 = vmatprep.subr.bf16.mxu0 0
        %2930 = vmatpush1.bf16.msra.mxu0 %v2912
        %2931 = vmatprep.subr.bf16.mxu0 0
        %2932 = vmatpush1.bf16.msra.mxu0 %v2910
        %2933 = vmatprep.subr.bf16.mxu0 0
        %2934 = vmatpush1.bf16.msra.mxu0 %v2908
        %2935 = vmatprep.subr.bf16.mxu0 0
        %2936 = vmatpush1.bf16.msra.mxu0 %v2906
        %2937 = vmatprep.subr.bf16.mxu0 0
        %2938 = vmatpush1.bf16.msra.mxu0 %v2904
        %2939 = vmatprep.subr.bf16.mxu0 0
        %2940 = vmatpush1.bf16.msra.mxu0 %v2902
        %2941 = vmatprep.subr.bf16.mxu0 0
        %2942 = vmatpush2.bf16.msra.mxu0 0
        %2943 = vmatprep.subr.bf16.mxu0 0
        %2944 = vmatpush2.bf16.msra.mxu0 0
        %2945 = vmatprep.subr.bf16.mxu0 0
        %2946 = vmatpush2.bf16.msra.mxu0 0
        %2947 = vmatprep.subr.bf16.mxu0 0
        %2948 = vmatpush2.bf16.msra.mxu0 0
        %2949 = vmatprep.subr.bf16.mxu0 0
        %2950 = vmatpush2.bf16.msra.mxu0 0
        %2951 = vmatprep.subr.bf16.mxu0 0
        %2952 = vmatpush2.bf16.msra.mxu0 0
        %2953 = vmatprep.subr.bf16.mxu0 0
        %2954 = vmatpush2.bf16.msra.mxu0 0
        %2955 = vmatprep.subr.bf16.mxu0 0
        %2956 = vmatpush2.bf16.msra.mxu0 0
        %2957 = vmatprep.mubr.bf16.mxu0 0
        %2958 = vmatmul.mubr.bf16.gmra.mxu0 %v2893
        %v2959 = vpop.f32.mrf.mxu0
        %v2960 = vadd.f32 0.0, %v2959
        %v2961 = vpop.f32.mrf.mxu0
        %v2962 = vpop.f32.mrf.mxu0
        %v2963 = vadd.f32 0.0, %v2962
        %v2964 = vpop.f32.mrf.mxu0
        %2965 = vmatprep.mubr.bf16.mxu0 0
        %2966 = vmatmul.mubr.bf16.gmra.mxu0 %v2894
        %v2967 = vpop.f32.mrf.mxu0
        %v2968 = vadd.f32 0.0, %v2967
        %v2969 = vpop.f32.mrf.mxu0
        %v2970 = vpop.f32.mrf.mxu0
        %v2971 = vadd.f32 0.0, %v2970
        %v2972 = vpop.f32.mrf.mxu0
        %2973 = vmatprep.mubr.bf16.mxu0 0
        %2974 = vmatmul.mubr.bf16.gmra.mxu0 %v2895
        %v2975 = vpop.f32.mrf.mxu0
        %v2976 = vadd.f32 0.0, %v2975
        %v2977 = vpop.f32.mrf.mxu0
        %v2978 = vpop.f32.mrf.mxu0
        %v2979 = vadd.f32 0.0, %v2978
        %v2980 = vpop.f32.mrf.mxu0
        %2981 = vmatprep.mubr.bf16.mxu0 0
        %2982 = vmatmul.mubr.bf16.gmra.mxu0 %v2896
        %v2983 = vpop.f32.mrf.mxu0
        %v2984 = vadd.f32 0.0, %v2983
        %v2985 = vpop.f32.mrf.mxu0
        %v2986 = vpop.f32.mrf.mxu0
        %v2987 = vadd.f32 0.0, %v2986
        %v2988 = vpop.f32.mrf.mxu0
        %2989 = vmatprep.mubr.bf16.mxu0 0
        %2990 = vmatmul.mubr.bf16.gmra.mxu0 %v2897
        %v2991 = vpop.f32.mrf.mxu0
        %v2992 = vadd.f32 0.0, %v2991
        %v2993 = vpop.f32.mrf.mxu0
        %v2994 = vpop.f32.mrf.mxu0
        %v2995 = vadd.f32 0.0, %v2994
        %v2996 = vpop.f32.mrf.mxu0
        %2997 = vmatprep.mubr.bf16.mxu0 0
        %2998 = vmatmul.mubr.bf16.gmra.mxu0 %v2898
        %v2999 = vpop.f32.mrf.mxu0
        %v3000 = vadd.f32 0.0, %v2999
        %v3001 = vpop.f32.mrf.mxu0
        %v3002 = vpop.f32.mrf.mxu0
        %v3003 = vadd.f32 0.0, %v3002
        %v3004 = vpop.f32.mrf.mxu0
        %3005 = vmatprep.mubr.bf16.mxu0 0
        %3006 = vmatmul.mubr.bf16.gmra.mxu0 %v2899
        %v3007 = vpop.f32.mrf.mxu0
        %v3008 = vadd.f32 0.0, %v3007
        %v3009 = vpop.f32.mrf.mxu0
        %v3010 = vpop.f32.mrf.mxu0
        %v3011 = vadd.f32 0.0, %v3010
        %v3012 = vpop.f32.mrf.mxu0
        %3013 = vmatprep.mubr.bf16.mxu0 0
        %3014 = vmatmul.mubr.bf16.gmra.mxu0 %v2900
        %v3015 = vpop.f32.mrf.mxu0
        %v3016 = vadd.f32 0.0, %v3015
        %v3017 = vpop.f32.mrf.mxu0
        %v3018 = vpop.f32.mrf.mxu0
        %v3019 = vadd.f32 0.0, %v3018
        %v3020 = vpop.f32.mrf.mxu0
        %3021 = vdwg.mxu0
        %v3022 = vld [vmem:[#allocation7 + $0x30] sm:$0xf]
        %v3023 = vld [vmem:[#allocation7 + $0x34] sm:$0xf]
        %v3024 = vld [vmem:[#allocation7 + $0x38] sm:$0xf]
        %v3025 = vld [vmem:[#allocation7 + $0x3c] sm:$0xf]
        %v3026 = vpack.c.bf16 %v2963, %v2960
        %v3027 = vpack.c.bf16 %v2971, %v2968
        %v3028 = vpack.c.bf16 %v2979, %v2976
        %v3029 = vpack.c.bf16 %v2987, %v2984
        %v3030 = vpack.c.bf16 %v2995, %v2992
        %v3031 = vpack.c.bf16 %v3003, %v3000
        %v3032 = vpack.c.bf16 %v3011, %v3008
        %v3033 = vpack.c.bf16 %v3019, %v3016
        %v3038 = vunpack.c.l.b16 %v3022
        %v3039 = vunpack.c.l.b16 %v3023
        %v3040 = vunpack.c.l.b16 %v3024
        %v3041 = vunpack.c.l.b16 %v3025
        %v3042 = vpack.c.b16 %v3039, %v3038
        %v3043 = vpack.c.b16 %v3041, %v3040
        %v3047 = vsel %vm698, %v3026, 0
        %v3050 = vsel %vm698, %v3027, 0
        %v3053 = vsel %vm698, %v3028, 0
        %v3056 = vsel %vm698, %v3029, 0
        %v3059 = vsel %vm698, %v3030, 0
        %v3062 = vsel %vm698, %v3031, 0
        %v3065 = vsel %vm698, %v3032, 0
        %v3068 = vsel %vm698, %v3033, 0
        %3070 = vmatprep.subr.bf16.mxu0 0
        %3071 = vmatpush1.bf16.msra.mxu0 0
        %3072 = vmatprep.subr.bf16.mxu0 0
        %3073 = vmatpush1.bf16.msra.mxu0 0
        %3074 = vmatprep.subr.bf16.mxu0 0
        %3075 = vmatpush1.bf16.msra.mxu0 0
        %3076 = vmatprep.subr.bf16.mxu0 0
        %3077 = vmatpush1.bf16.msra.mxu0 0
        %3078 = vmatprep.subr.bf16.mxu0 0
        %3079 = vmatpush1.bf16.msra.mxu0 0
        %3080 = vmatprep.subr.bf16.mxu0 0
        %3081 = vmatpush1.bf16.msra.mxu0 0
        %3082 = vmatprep.subr.bf16.mxu0 0
        %3083 = vmatpush1.bf16.msra.mxu0 %v3043
        %3084 = vmatprep.subr.bf16.mxu0 0
        %3085 = vmatpush1.bf16.msra.mxu0 %v3042
        %3086 = vmatprep.subr.bf16.mxu0 0
        %3087 = vmatpush2.bf16.msra.mxu0 0
        %3088 = vmatprep.subr.bf16.mxu0 0
        %3089 = vmatpush2.bf16.msra.mxu0 0
        %3090 = vmatprep.subr.bf16.mxu0 0
        %3091 = vmatpush2.bf16.msra.mxu0 0
        %3092 = vmatprep.subr.bf16.mxu0 0
        %3093 = vmatpush2.bf16.msra.mxu0 0
        %3094 = vmatprep.subr.bf16.mxu0 0
        %3095 = vmatpush2.bf16.msra.mxu0 0
        %3096 = vmatprep.subr.bf16.mxu0 0
        %3097 = vmatpush2.bf16.msra.mxu0 0
        %3098 = vmatprep.subr.bf16.mxu0 0
        %3099 = vmatpush2.bf16.msra.mxu0 0
        %3100 = vmatprep.subr.bf16.mxu0 0
        %3101 = vmatpush2.bf16.msra.mxu0 0
        %3102 = vmatprep.mubr.bf16.mxu0 0
        %3103 = vmatmul.mubr.bf16.gmra.mxu0 %v3047
        %v3104 = vpop.f32.mrf.mxu0
        %v3105 = vadd.f32 0.0, %v3104
        %v3106 = vpop.f32.mrf.mxu0
        %v3107 = vpop.f32.mrf.mxu0
        %v3108 = vadd.f32 0.0, %v3107
        %v3109 = vpop.f32.mrf.mxu0
        %3110 = vmatprep.mubr.bf16.mxu0 0
        %3111 = vmatmul.mubr.bf16.gmra.mxu0 %v3050
        %v3112 = vpop.f32.mrf.mxu0
        %v3113 = vadd.f32 0.0, %v3112
        %v3114 = vpop.f32.mrf.mxu0
        %v3115 = vpop.f32.mrf.mxu0
        %v3116 = vadd.f32 0.0, %v3115
        %v3117 = vpop.f32.mrf.mxu0
        %3118 = vmatprep.mubr.bf16.mxu0 0
        %3119 = vmatmul.mubr.bf16.gmra.mxu0 %v3053
        %v3120 = vpop.f32.mrf.mxu0
        %v3121 = vadd.f32 0.0, %v3120
        %v3122 = vpop.f32.mrf.mxu0
        %v3123 = vpop.f32.mrf.mxu0
        %v3124 = vadd.f32 0.0, %v3123
        %v3125 = vpop.f32.mrf.mxu0
        %3126 = vmatprep.mubr.bf16.mxu0 0
        %3127 = vmatmul.mubr.bf16.gmra.mxu0 %v3056
        %v3128 = vpop.f32.mrf.mxu0
        %v3129 = vadd.f32 0.0, %v3128
        %v3130 = vpop.f32.mrf.mxu0
        %v3131 = vpop.f32.mrf.mxu0
        %v3132 = vadd.f32 0.0, %v3131
        %v3133 = vpop.f32.mrf.mxu0
        %3134 = vmatprep.mubr.bf16.mxu0 0
        %3135 = vmatmul.mubr.bf16.gmra.mxu0 %v3059
        %v3136 = vpop.f32.mrf.mxu0
        %v3137 = vadd.f32 0.0, %v3136
        %v3138 = vpop.f32.mrf.mxu0
        %v3139 = vpop.f32.mrf.mxu0
        %v3140 = vadd.f32 0.0, %v3139
        %v3141 = vpop.f32.mrf.mxu0
        %3142 = vmatprep.mubr.bf16.mxu0 0
        %3143 = vmatmul.mubr.bf16.gmra.mxu0 %v3062
        %v3144 = vpop.f32.mrf.mxu0
        %v3145 = vadd.f32 0.0, %v3144
        %v3146 = vpop.f32.mrf.mxu0
        %v3147 = vpop.f32.mrf.mxu0
        %v3148 = vadd.f32 0.0, %v3147
        %v3149 = vpop.f32.mrf.mxu0
        %3150 = vmatprep.mubr.bf16.mxu0 0
        %3151 = vmatmul.mubr.bf16.gmra.mxu0 %v3065
        %v3152 = vpop.f32.mrf.mxu0
        %v3153 = vadd.f32 0.0, %v3152
        %v3154 = vpop.f32.mrf.mxu0
        %v3155 = vpop.f32.mrf.mxu0
        %v3156 = vadd.f32 0.0, %v3155
        %v3157 = vpop.f32.mrf.mxu0
        %3158 = vmatprep.mubr.bf16.mxu0 0
        %3159 = vmatmul.mubr.bf16.gmra.mxu0 %v3068
        %v3160 = vpop.f32.mrf.mxu0
        %v3161 = vadd.f32 0.0, %v3160
        %v3162 = vpop.f32.mrf.mxu0
        %v3163 = vpop.f32.mrf.mxu0
        %v3164 = vadd.f32 0.0, %v3163
        %v3165 = vpop.f32.mrf.mxu0
        %3166 = vdwg.mxu0
        %v3167 = vadd.f32 %v2540, %v3105
        %v3168 = vadd.f32 %v2541, %v3108
        %v3169 = vadd.f32 %v2542, %v3113
        %v3170 = vadd.f32 %v2543, %v3116
        %v3171 = vadd.f32 %v2544, %v3121
        %v3172 = vadd.f32 %v2545, %v3124
        %v3173 = vadd.f32 %v2546, %v3129
        %v3174 = vadd.f32 %v2547, %v3132
        %v3175 = vadd.f32 %v2548, %v3137
        %v3176 = vadd.f32 %v2549, %v3140
        %v3177 = vadd.f32 %v2550, %v3145
        %v3178 = vadd.f32 %v2551, %v3148
        %v3179 = vadd.f32 %v2552, %v3153
        %v3180 = vadd.f32 %v2553, %v3156
        %v3181 = vadd.f32 %v2554, %v3161
        %v3182 = vadd.f32 %v2555, %v3164
        %3183 = vst [vmem:[%s244] sm:$0xff] %v3167
        %3184 = vst [vmem:[%s244 + $0x8] sm:$0xff] %v3168
        %3185 = vst [vmem:[%s244 + $0x10] sm:$0xff] %v3169
        %3186 = vst [vmem:[%s244 + $0x18] sm:$0xff] %v3170
        %3187 = vst [vmem:[%s244 + $0x20] sm:$0xff] %v3171
        %3188 = vst [vmem:[%s244 + $0x28] sm:$0xff] %v3172
        %3189 = vst [vmem:[%s244 + $0x30] sm:$0xff] %v3173
        %3190 = vst [vmem:[%s244 + $0x38] sm:$0xff] %v3174
        %3191 = vst [vmem:[%s244 + $0x40] sm:$0xff] %v3175
        %3192 = vst [vmem:[%s244 + $0x48] sm:$0xff] %v3176
        %3193 = vst [vmem:[%s244 + $0x50] sm:$0xff] %v3177
        %3194 = vst [vmem:[%s244 + $0x58] sm:$0xff] %v3178
        %3195 = vst [vmem:[%s244 + $0x60] sm:$0xff] %v3179
        %3196 = vst [vmem:[%s244 + $0x68] sm:$0xff] %v3180
        %3197 = vst [vmem:[%s244 + $0x70] sm:$0xff] %v3181
        %3198 = vst [vmem:[%s244 + $0x78] sm:$0xff] %v3182
        %s3199 = sand.u32 %s119, 1
        %s3200 = scalar_lea.sflag [#allocation4], %s3199
        %s3201 = sand.u32 %s119, 1
        %s3202 = smul.addr %s3201, 128
        %s3203 = scalar_lea.vmem [#allocation8], %s3202
        // Predicated region
        $region49: #{tpu_custom_call.1} parent=35 // pred_check
          %p3204 = pneg %p129
        $region50: #{tpu_custom_call.1} parent=35 // pred_check_branch
          %3206 = sbr.rel (%p3204) target = $region52
        $region51: #{tpu_custom_call.1} parent=35 // pred_region
          %s3208 = ssub.s32 2048, 2048
          %3209 = vsyncadd %s3200, %s3208
          %s3210 = smul.addr %s22, 16
          %s3211 = smul.addr %s3210, 128
          %s3212 = scalar_lea.hbm %s4, %s3211
          %s3213 = sshll.u32 %s3203, 4
          %s3214 = int_to_ptr.vmem [resolvable:$true] %s3213
          %3219 = dma.vmem_to_hbm [thread:$0]  %s3214, 2048, %s3212, %s3200, 128, 128, 8
        $region52: #{tpu_custom_call.1} parent=35 // pred_fallthru
          _
      $region36: #{tpu_custom_call.1} parent=5 // pred_fallthru
        _
      %p3220 = scmp.le.s32.totalorder 2, %s17
      // Predicated region
      $region53: #{tpu_custom_call.1} parent=5 // pred_check
        %p3221 = pneg %p3220
      $region54: #{tpu_custom_call.1} parent=5 // pred_check_branch
        %3223 = sbr.rel (%p3221) target = $region56
      $region55: #{tpu_custom_call.1} parent=5 // pred_region
        %s3224 = ssub.s32 %s17, 2
        // Predicated region
        $region57: #{tpu_custom_call.1} parent=55 // pred_check
          %p3225 = pneg %p135
        $region58: #{tpu_custom_call.1} parent=55 // pred_check_branch
          %3227 = sbr.rel (%p3225) target = $region60
        $region59: #{tpu_custom_call.1} parent=55 // pred_region
          %s3228 = sand.u32 %s120, 1
          %s3229 = scalar_lea.sflag [#allocation4], %s3228
          %s3230 = sand.u32 %s120, 1
          %s3231 = smul.addr %s3230, 128
          %s3232 = scalar_lea.vmem [#allocation8], %s3231
          %3233 = dma.done %s3229, 2048
        $region60: #{tpu_custom_call.1} parent=55 // pred_fallthru
          _
      $region56: #{tpu_custom_call.1} parent=5 // pred_fallthru
        _
    $region6: #{tpu_custom_call.1} parent=1 // loop_footer
      %s21 = sadd.s32 1, %s17
    $region7: #{tpu_custom_call.1} parent=1 // loop_footer_branch
      %16 = sbr.rel target = $region3
    $region8: #{tpu_custom_call.1} parent=1 // loop_exit
      _
    %3234 = vsyncpa [#allocation3], 1
    %s3235 = scalar_lea.sflag [#allocation3], 1
    %3236 = vsyncpa %s3235, 1
    %3237 = vsyncpa [#allocation6], 1
    %3238 = vsyncpa [#allocation4], 1
    %s3239 = scalar_lea.sflag [#allocation4], 1
    %3240 = vsyncpa %s3239, 1

</llo_original>
